<compile_context>
chip_gen: v7x
topology: tpu7x:2x2x1
jax: 0.10.0
libtpu: 0.0.40
codegen_flags: <defaults>
</compile_context>

<pallas_src>
import jax
import jax.numpy as jnp
from jax import lax
from jax.experimental import pallas as pl
from jax.experimental.pallas import tpu as pltpu

EPS = 1e-5


# ----------------------------------------------------------------------------
# Static tap mapping for the column-phase-split layout.
# Output column ow = 2*j + q; filter tap kw reads input column ow + kw - 1,
# which lives in input column phase p at phase-column j + s.
# ----------------------------------------------------------------------------
def _phase_tap(q, kw):
    t = q + kw - 1
    p = t % 2
    s = (t - p) // 2
    return p, s


# ----------------------------------------------------------------------------
# Fused decoder-block kernel factory.
# layer_cfgs: list of (kind, cin, cout) with kind in {"conv", "ds"}.
# ----------------------------------------------------------------------------
def _make_fused_decoder_kernel(layer_cfgs, Hp, Wp, has_dc, cdc, OFF):
    Hf = 2 * Hp            # unpooled rows
    Wc = Wp                # columns per output-column phase
    Wf = 2 * Wp            # unpooled columns (PyTorch flat-index convention)
    Npix = Hf * Wc         # pixels per phase
    n_layers = len(layer_cfgs)
    n_wrefs = [3 if kind == "conv" else 5 for kind, _, _ in layer_cfgs]
    C0 = layer_cfgs[0][1]

    def kernel(*refs):
        pos = 0
        x_ref = refs[pos]; pos += 1            # (1, Hp, Wp, C0)  f32
        idx_ref = refs[pos]; pos += 1          # (1, Hp, Wp, C0)  int32
        mask_ref = refs[pos]; pos += 1         # (2, Npix)        f32
        dc_ref = None
        if has_dc:
            dc_ref = refs[pos]; pos += 1       # (1, 2, cdc, Npix) f32
        wrefs = []
        for c in n_wrefs:
            wrefs.append(refs[pos:pos + c]); pos += c
        o_ref = refs[pos]; pos += 1            # (1, 2, cout_pad, Npix) f32
        buf0 = refs[pos]; pos += 1             # (2, Hf+2, Wc+2, C0) f32
        fbufs = list(refs[pos:pos + n_layers - 1]); pos += n_layers - 1
        sbufs = list(refs[pos:pos + n_layers]); pos += n_layers
        assert pos == len(refs)

        mask_l = mask_ref[0:1, :]              # zero where phase-col j == 0
        mask_r = mask_ref[1:2, :]              # zero where phase-col j == Wc-1

        # ---------------- MaxUnpool2d(k=2), column-phase split ---------------
        # Halo ring re-zeroed every step (cheap, megacore-safe); interior is
        # fully overwritten below.
        x = x_ref[0]                           # (Hp, Wp, C0)
        idx = idx_ref[0]
        ii = lax.broadcasted_iota(jnp.int32, (Hp, Wp, 1), 0)
        jj = lax.broadcasted_iota(jnp.int32, (Hp, Wp, 1), 1)
        for q in range(2):
            buf0[q, 0:1, :, :] = jnp.zeros((1, Wc + 2, C0), jnp.float32)
            buf0[q, Hf + 1:Hf + 2, :, :] = jnp.zeros((1, Wc + 2, C0), jnp.float32)
            buf0[q, :, 0:1, :] = jnp.zeros((Hf + 2, 1, C0), jnp.float32)
            buf0[q, :, Wc + 1:Wc + 2, :] = jnp.zeros((Hf + 2, 1, C0), jnp.float32)
            quads = []
            for di in range(2):
                tgt = (2 * ii + di) * Wf + (2 * jj + q)
                quads.append(jnp.where(idx == tgt, x, 0.0))
            rows = jnp.stack(quads, axis=1).reshape(Hf, Wc, C0)
            buf0[q, 1:Hf + 1, 1:Wc + 1, :] = rows

        # ---------------- conv / depth-separable stack ------------------------
        for li, (kind, cin, cout) in enumerate(layer_cfgs):
            is_last = (li == n_layers - 1)
            sbuf = sbufs[li]
            if not is_last:
                nxt = fbufs[li]
                cnx = layer_cfgs[li + 1][1]
                for q in range(2):   # halo strips only; interior fully rewritten
                    nxt[q, :, OFF - Wc - 1:OFF] = (
                        jnp.zeros((cnx, Wc + 1), jnp.float32))
                    nxt[q, :, OFF + Npix:OFF + Npix + Wc + 1] = (
                        jnp.zeros((cnx, Wc + 1), jnp.float32))

            if li == 0:
                # Pixel-major source (unpool buffer); stage both phases into a
                # (2*Npix, K) bf16 slab and use one NT matmul so the result is
                # already channel-major / lane-dense.
                if kind == "conv":
                    w_ref, sc_ref, b_ref = wrefs[li]
                    for q in range(2):
                        for kh in range(3):
                            for kw in range(3):
                                p, s = _phase_tap(q, kw)
                                t = kh * 3 + kw
                                piece = buf0[p, kh:kh + Hf, 1 + s:1 + s + Wc, :]
                                sbuf[q * Npix:(q + 1) * Npix,
                                     t * cin:(t + 1) * cin] = (
                                    piece.reshape(Npix, cin).astype(jnp.bfloat16))
                    y = lax.dot_general(
                        w_ref[...], sbuf[...],
                        dimension_numbers=(((1,), (1,)), ((), ())),
                        preferred_element_type=jnp.float32)
                else:
                    dww_ref, dwb_ref, pw_ref, sc_ref, b_ref = wrefs[li]
                    for q in range(2):
                        acc = jnp.zeros((Hf, Wc, cin), jnp.float32)
                        for kh in range(3):
                            for kw in range(3):
                                p, s = _phase_tap(q, kw)
                                acc = acc + (
                                    buf0[p, kh:kh + Hf, 1 + s:1 + s + Wc, :]
                                    * dww_ref[kh * 3 + kw])
                        acc = (acc + dwb_ref[0]).reshape(Npix, cin)
                        sbuf[q * Npix:(q + 1) * Npix, :] = acc.astype(jnp.bfloat16)
                    y = lax.dot_general(
                        pw_ref[...], sbuf[...],
                        dimension_numbers=(((1,), (1,)), ((), ())),
                        preferred_element_type=jnp.float32)
            else:
                # Channel-major flat source; stage into (K, 2*Npix) bf16 (full
                # 128-lane stores) and issue a single NN matmul for both phases.
                src = fbufs[li - 1]
                if kind == "conv":
                    w_ref, sc_ref, b_ref = wrefs[li]
                    for q in range(2):
                        for kh in range(3):
                            for kw in range(3):
                                p, s = _phase_tap(q, kw)
                                t = kh * 3 + kw
                                start = OFF + (kh - 1) * Wc + s
                                sl = src[p, :, start:start + Npix]
                                if s == -1:
                                    sl = sl * mask_l
                                elif s == 1:
                                    sl = sl * mask_r
                                sbuf[t * cin:(t + 1) * cin,
                                     q * Npix:(q + 1) * Npix] = (
                                    sl.astype(jnp.bfloat16))
                    y = lax.dot_general(
                        w_ref[...], sbuf[...],
                        dimension_numbers=(((1,), (0,)), ((), ())),
                        preferred_element_type=jnp.float32)
                else:
                    dww_ref, dwb_ref, pw_ref, sc_ref, b_ref = wrefs[li]
                    for q in range(2):
                        acc = jnp.zeros((cin, Npix), jnp.float32)
                        for kh in range(3):
                            for kw in range(3):
                                p, s = _phase_tap(q, kw)
                                t = kh * 3 + kw
                                start = OFF + (kh - 1) * Wc + s
                                sl = src[p, :, start:start + Npix]
                                if s == -1:
                                    sl = sl * mask_l
                                elif s == 1:
                                    sl = sl * mask_r
                                acc = acc + sl * dww_ref[:, t:t + 1]
                        acc = acc + dwb_ref[...]
                        sbuf[:, q * Npix:(q + 1) * Npix] = acc.astype(jnp.bfloat16)
                    y = lax.dot_general(
                        pw_ref[...], sbuf[...],
                        dimension_numbers=(((1,), (0,)), ((), ())),
                        preferred_element_type=jnp.float32)

            # Folded BN (eval) + ReLU, once per layer on the fused slab.
            y = jnp.maximum(y * sc_ref[...] + b_ref[...], 0.0)

            if is_last:
                o_ref[0, 0] = y[:, 0:Npix]
                o_ref[0, 1] = y[:, Npix:2 * Npix]
            else:
                nxt[0, 0:cout, OFF:OFF + Npix] = y[:, 0:Npix]
                nxt[1, 0:cout, OFF:OFF + Npix] = y[:, Npix:2 * Npix]
                if has_dc and li == 0:   # seq==3: channel concat with dc_out
                    nxt[0, cout:cout + cdc, OFF:OFF + Npix] = dc_ref[0, 0]
                    nxt[1, cout:cout + cdc, OFF:OFF + Npix] = dc_ref[0, 1]

    return kernel


# ----------------------------------------------------------------------------
# Deterministic parameter init (BatchNorm folded: inference mode).
# ----------------------------------------------------------------------------
def init_conv_bn_relu(key, cin, cout):
    ks = jax.random.split(key, 6)
    w = jax.random.normal(ks[0], (3, 3, cin, cout), jnp.float32) / (3.0 * cin ** 0.5)
    b = 0.1 * jax.random.normal(ks[1], (cout,), jnp.float32)
    gamma = 1.0 + 0.1 * jax.random.normal(ks[2], (cout,), jnp.float32)
    beta = 0.1 * jax.random.normal(ks[3], (cout,), jnp.float32)
    mean = 0.1 * jax.random.normal(ks[4], (cout,), jnp.float32)
    var = jnp.abs(jax.random.normal(ks[5], (cout,), jnp.float32)) + 0.5
    scale = gamma / jnp.sqrt(var + EPS)
    bias = (b - mean) * scale + beta
    # MXU operands are bf16; rows ordered (kh, kw, cin) to match im2col.
    w9 = w.reshape(9 * cin, cout).astype(jnp.bfloat16)
    return {"w9": w9, "scale": scale, "bias": bias}


def init_depthsep(key, cin, cout):
    ks = jax.random.split(key, 8)
    dw_w = jax.random.normal(ks[0], (3, 3, cin), jnp.float32) / 3.0
    dw_b = 0.1 * jax.random.normal(ks[1], (cin,), jnp.float32)
    pw_w = jax.random.normal(ks[2], (cin, cout), jnp.float32) / (cin ** 0.5)
    pw_b = 0.1 * jax.random.normal(ks[3], (cout,), jnp.float32)
    gamma = 1.0 + 0.1 * jax.random.normal(ks[4], (cout,), jnp.float32)
    beta = 0.1 * jax.random.normal(ks[5], (cout,), jnp.float32)
    mean = 0.1 * jax.random.normal(ks[6], (cout,), jnp.float32)
    var = jnp.abs(jax.random.normal(ks[7], (cout,), jnp.float32)) + 0.5
    scale = gamma / jnp.sqrt(var + EPS)
    bias = (pw_b - mean) * scale + beta
    return {"dw_w": dw_w, "dw_b": dw_b, "pw_w": pw_w.astype(jnp.bfloat16),
            "scale": scale, "bias": bias}


# ----------------------------------------------------------------------------
# DecoderBlock
# ----------------------------------------------------------------------------
class DecoderBlockPallas:
    def __init__(self, seq, num_classes=2, key=None):
        if key is None:
            key = jax.random.PRNGKey(42)
        self.seq = seq
        if seq == 3:
            ks = jax.random.split(key, 2)
            self.layers = [("conv", init_conv_bn_relu(ks[0], 8, 8)),
                           ("conv", init_conv_bn_relu(ks[1], 16, num_classes))]
        elif seq == 2:
            ks = jax.random.split(key, 2)
            self.layers = [("conv", init_conv_bn_relu(ks[0], 16, 16)),
                           ("conv", init_conv_bn_relu(ks[1], 16, 8))]
        elif seq == 1:
            ks = jax.random.split(key, 3)
            self.layers = [("ds", init_depthsep(ks[0], 32, 32)),
                           ("ds", init_depthsep(ks[1], 32, 32)),
                           ("conv", init_conv_bn_relu(ks[2], 32, 16))]
        elif seq == 0:
            ks = jax.random.split(key, 3)
            self.layers = [("ds", init_depthsep(ks[0], 128, 128)),
                           ("ds", init_depthsep(ks[1], 128, 64)),
                           ("ds", init_depthsep(ks[2], 64, 32))]
        else:
            raise ValueError("Invalid number of Decoder blocks: expected 4 got %d" % seq)

    def __call__(self, x_nchw, indices_nchw, dc_out_nchw=None):
        N, C0, Hp, Wp = x_nchw.shape
        Hf, Wc, Wf = 2 * Hp, Wp, 2 * Wp
        npix = Hf * Wc
        has_dc = dc_out_nchw is not None

        cfgs = self.layers[:2] if has_dc else list(self.layers)
        layer_cfgs = []
        for kind, p in cfgs:
            if kind == "conv":
                cin = p["w9"].shape[0] // 9
                cout = p["w9"].shape[1]
            else:
                cin, cout = p["pw_w"].shape
            layer_cfgs.append((kind, cin, cout))
        n_layers = len(layer_cfgs)
        cout_last = layer_cfgs[-1][2]
        cout_pad = ((cout_last + 7) // 8) * 8
        assert layer_cfgs[0][1] == C0

        # Flat per-phase buffers: interior starts at the lane-aligned offset OFF
        # (>= Wc+1 so the top-left tap read stays in-bounds), halo strips of
        # width Wc+1 on either side.
        OFF = ((Wc + 1 + 127) // 128) * 128
        Lphase = ((OFF + npix + Wc + 1 + 127) // 128) * 128

        # Pooled-resolution (cheap) channel-last inputs.
        x = jnp.transpose(x_nchw, (0, 2, 3, 1)).astype(jnp.float32)
        idx = jnp.transpose(indices_nchw, (0, 2, 3, 1)).astype(jnp.int32)

        # Column-edge masks (precomputed once, reused for all layers/taps).
        jmod = jnp.arange(npix, dtype=jnp.int32) % Wc
        masks = jnp.stack([(jmod != 0), (jmod != Wc - 1)],
                          axis=0).astype(jnp.float32)              # (2, npix)

        operands = [x, idx, masks]
        in_specs = [
            pl.BlockSpec((1, Hp, Wp, C0), lambda n: (n, 0, 0, 0)),
            pl.BlockSpec((1, Hp, Wp, C0), lambda n: (n, 0, 0, 0)),
            pl.BlockSpec((2, npix), lambda n: (0, 0)),
        ]
        cdc = 0
        if has_dc:
            cdc = dc_out_nchw.shape[1]
            # NCHW -> column-phase-split, channel-major: (N, 2, Cdc, Hf*Wc)
            dc = jnp.transpose(
                dc_out_nchw.reshape(N, cdc, Hf, Wc, 2),
                (0, 4, 1, 2, 3)).reshape(N, 2, cdc, npix).astype(jnp.float32)
            operands.append(dc)
            in_specs.append(
                pl.BlockSpec((1, 2, cdc, npix), lambda n: (n, 0, 0, 0)))
            assert layer_cfgs[0][2] + cdc == layer_cfgs[1][1]

        def _wspec(a):
            r = a.ndim
            return pl.BlockSpec(a.shape, lambda n, _r=r: (0,) * _r)

        for li, (kind, p) in enumerate(cfgs):
            last = (li == n_layers - 1)
            pad = cout_pad - layer_cfgs[li][2] if last else 0
            sc = p["scale"].reshape(-1, 1)
            b = p["bias"].reshape(-1, 1)
            if kind == "conv":
                w2 = p["w9"].T                       # (cout, 9*cin) bf16
                if pad:
                    w2 = jnp.pad(w2, ((0, pad), (0, 0)))
                ops = [w2]
            else:
                dww = p["dw_w"].reshape(9, -1)       # (9, cin) f32
                dwb = p["dw_b"].reshape(1, -1)       # (1, cin) f32
                if li > 0:                           # channel-major layers
                    dww = dww.T                      # (cin, 9)
                    dwb = dwb.T                      # (cin, 1)
                pw = p["pw_w"].T                     # (cout, cin) bf16
                if pad:
                    pw = jnp.pad(pw, ((0, pad), (0, 0)))
                ops = [dww, dwb, pw]
            if pad:
                sc = jnp.pad(sc, ((0, pad), (0, 0)))
                b = jnp.pad(b, ((0, pad), (0, 0)))
            ops += [sc, b]
            for a in ops:
                operands.append(a)
                in_specs.append(_wspec(a))

        # Scratch: layer-0 pixel-major padded buffer, channel-major flat
        # activation buffers for layers >= 1, and one bf16 staging buffer per
        # layer (im2col patches / depthwise accumulator, both phases fused).
        scratch = [pltpu.VMEM((2, Hf + 2, Wc + 2, C0), jnp.float32)]
        for li in range(1, n_layers):
            scratch.append(pltpu.VMEM((2, layer_cfgs[li][1], Lphase), jnp.float32))
        for li, (kind, cin, _c) in enumerate(layer_cfgs):
            k = 9 * cin if kind == "conv" else cin
            if li == 0:
                scratch.append(pltpu.VMEM((2 * npix, k), jnp.bfloat16))
            else:
                scratch.append(pltpu.VMEM((k, 2 * npix), jnp.bfloat16))

        # Derived VMEM budget (scratch + double-buffered I/O + weights + slack)
        # instead of a hard-coded limit equal to a full v7x VMEM.
        def _nbytes(shape, dtype):
            n = 1
            for d in shape:
                n *= int(d)
            return n * jnp.dtype(dtype).itemsize

        scratch_bytes = _nbytes((2, Hf + 2, Wc + 2, C0), jnp.float32)
        for li in range(1, n_layers):
            scratch_bytes += _nbytes((2, layer_cfgs[li][1], Lphase), jnp.float32)
        for li, (kind, cin, _c) in enumerate(layer_cfgs):
            k = 9 * cin if kind == "conv" else cin
            scratch_bytes += _nbytes((2 * npix, k), jnp.bfloat16)
        io_bytes = 2 * (2 * _nbytes((1, Hp, Wp, C0), jnp.float32)
                        + _nbytes((2, npix), jnp.float32)
                        + (_nbytes((1, 2, cdc, npix), jnp.float32) if has_dc else 0)
                        + _nbytes((1, 2, cout_pad, npix), jnp.float32))
        w_start = 4 if has_dc else 3
        w_bytes = 2 * sum(int(a.size) * a.dtype.itemsize for a in operands[w_start:])
        vmem_limit = max(int(1.4 * (scratch_bytes + io_bytes + w_bytes)) + (4 << 20),
                         24 << 20)

        kernel = _make_fused_decoder_kernel(layer_cfgs, Hp, Wp, has_dc, cdc, OFF)
        out = pl.pallas_call(
            kernel,
            out_shape=jax.ShapeDtypeStruct((N, 2, cout_pad, npix), jnp.float32),
            grid=(N,),
            in_specs=in_specs,
            out_specs=pl.BlockSpec((1, 2, cout_pad, npix),
                                   lambda n: (n, 0, 0, 0)),
            scratch_shapes=scratch,
            compiler_params=pltpu.CompilerParams(
                dimension_semantics=("parallel",),
                vmem_limit_bytes=vmem_limit),
        )(*operands)

        # (N, 2, Cpad, Hf*Wc) -> NCHW (N, Cout, Hf, Wf): interleave column phases.
        out = out.reshape(N, 2, cout_pad, Hf, Wc)
        out = jnp.transpose(out, (0, 2, 3, 4, 1)).reshape(N, cout_pad, Hf, Wf)
        return out[:, :cout_last]


# ----------------------------------------------------------------------------
# Pure-JAX reference (lax.conv), mirroring the kernel's bf16 MXU operands.
# ----------------------------------------------------------------------------
def _bf16_round(a):
    return a.astype(jnp.bfloat16).astype(jnp.float32)


def max_unpool2d_ref(x_nhwc, idx_nhwc):
    N, H, W, C = x_nhwc.shape
    Ho, Wo = 2 * H, 2 * W
    x_up = jnp.repeat(jnp.repeat(x_nhwc, 2, axis=1), 2, axis=2)
    idx_up = jnp.repeat(jnp.repeat(idx_nhwc, 2, axis=1), 2, axis=2)
    oh = jnp.arange(Ho, dtype=jnp.int32)[:, None]
    ow = jnp.arange(Wo, dtype=jnp.int32)[None, :]
    target = (oh * Wo + ow)[None, :, :, None]
    return jnp.where(idx_up == target, x_up, jnp.zeros_like(x_up))


def _ref_apply(kind, x, p):
    if kind == "conv":
        k9, cout = p["w9"].shape
        cin = k9 // 9
        w = p["w9"].astype(jnp.float32).reshape(3, 3, cin, cout)
        y = jax.lax.conv_general_dilated(
            _bf16_round(x), w, (1, 1), ((1, 1), (1, 1)),
            dimension_numbers=("NHWC", "HWIO", "NHWC"))
        return jnp.maximum(y * p["scale"] + p["bias"], 0.0)
    cin = p["dw_w"].shape[-1]
    dw = p["dw_w"].reshape(3, 3, 1, cin)
    y = jax.lax.conv_general_dilated(
        x, dw, (1, 1), ((1, 1), (1, 1)),
        dimension_numbers=("NHWC", "HWIO", "NHWC"), feature_group_count=cin)
    y = y + p["dw_b"]
    y = jnp.einsum("nhwc,cd->nhwd", _bf16_round(y), p["pw_w"].astype(jnp.float32))
    return jnp.maximum(y * p["scale"] + p["bias"], 0.0)


def ref_forward(block, x_nchw, idx_nchw, dc_out_nchw=None):
    x = jnp.transpose(x_nchw, (0, 2, 3, 1))
    idx = jnp.transpose(idx_nchw, (0, 2, 3, 1))
    x = max_unpool2d_ref(x, idx)
    if dc_out_nchw is None:
        for kind, p in block.layers:
            x = _ref_apply(kind, x, p)
    else:
        k0, p0 = block.layers[0]
        x = _ref_apply(k0, x, p0)
        x = jnp.concatenate([x, jnp.transpose(dc_out_nchw, (0, 2, 3, 1))], axis=-1)
        k1, p1 = block.layers[1]
        x = _ref_apply(k1, x, p1)
    return jnp.transpose(x, (0, 3, 1, 2))


def make_pool_indices(kdi, kdj, shape, W):
    """Valid MaxPool2d(2) indices: within each 2x2 window of the (2H,2W) plane."""
    N, C, H, Wd = shape
    di = jax.random.randint(kdi, shape, 0, 2)
    dj = jax.random.randint(kdj, shape, 0, 2)
    ii = jnp.arange(H).reshape(1, 1, H, 1)
    jj = jnp.arange(Wd).reshape(1, 1, 1, Wd)
    return ((2 * ii + di) * (2 * W) + (2 * jj + dj)).astype(jnp.int32)


if __name__ == "__main__":
    root = jax.random.PRNGKey(0)
    (kx, kdi, kdj, kdc, kp1, kp2, kp3,
     kx1, kdi1, kdj1, kx2, kdi2, kdj2) = jax.random.split(root, 13)

    # ----- seq=3 path (uses dc_out + channel concat): x is NCHW pooled map ----
    N, C, H, W = 2, 8, 8, 8
    x = jax.random.normal(kx, (N, C, H, W), jnp.float32)
    indices = make_pool_indices(kdi, kdj, (N, C, H, W), W)
    dc_out = jax.random.normal(kdc, (N, 8, 2 * H, 2 * W), jnp.float32)

    blk3 = DecoderBlockPallas(seq=3, num_classes=2, key=kp1)
    y3 = jax.block_until_ready(blk3(x, indices, dc_out))
    r3 = ref_forward(blk3, x, indices, dc_out)
    assert y3.shape == (N, 2, 2 * H, 2 * W), y3.shape
    assert jnp.allclose(y3, r3, atol=1e-2, rtol=1e-2), float(jnp.abs(y3 - r3).max())

    # ----- seq=1 path (depthwise-separable + conv), no dc_out -----------------
    C1 = 32
    x1 = jax.random.normal(kx1, (N, C1, H, W), jnp.float32)
    indices1 = make_pool_indices(kdi1, kdj1, (N, C1, H, W), W)

    blk1 = DecoderBlockPallas(seq=1, key=kp2)
    y1 = jax.block_until_ready(blk1(x1, indices1))
    r1 = ref_forward(blk1, x1, indices1)
    assert y1.shape == (N, 16, 2 * H, 2 * W), y1.shape
    assert jnp.allclose(y1, r1, atol=1e-2, rtol=1e-2), float(jnp.abs(y1 - r1).max())

    # ----- seq=0 path (all depth-separable; last layer is ds) -----------------
    C2 = 128
    x2 = jax.random.normal(kx2, (N, C2, H, W), jnp.float32)
    indices2 = make_pool_indices(kdi2, kdj2, (N, C2, H, W), W)

    blk0 = DecoderBlockPallas(seq=0, key=kp3)
    y0 = jax.block_until_ready(blk0(x2, indices2))
    r0 = ref_forward(blk0, x2, indices2)
    assert y0.shape == (N, 32, 2 * H, 2 * W), y0.shape
    assert jnp.allclose(y0, r0, atol=1e-2, rtol=1e-2), float(jnp.abs(y0 - r0).max())

    print("KERNEL_OK")
</pallas_src>

<mosaic_0001>
module attributes {stable_mosaic.version = 11 : i64} {
  func.func @kernel(%arg0: i32, %arg1: memref<1x8x8x8xf32, #tpu.memory_space<vmem>>, %arg2: memref<1x8x8x8xi32, #tpu.memory_space<vmem>>, %arg3: memref<2x128xf32, #tpu.memory_space<vmem>>, %arg4: memref<1x2x8x128xf32, #tpu.memory_space<vmem>>, %arg5: memref<8x72xbf16, #tpu.memory_space<vmem>>, %arg6: memref<8x1xf32, #tpu.memory_space<vmem>>, %arg7: memref<8x1xf32, #tpu.memory_space<vmem>>, %arg8: memref<8x144xbf16, #tpu.memory_space<vmem>>, %arg9: memref<8x1xf32, #tpu.memory_space<vmem>>, %arg10: memref<8x1xf32, #tpu.memory_space<vmem>>, %arg11: memref<1x2x8x128xf32, #tpu.memory_space<vmem>>, %arg12: memref<2x18x10x8xf32, #tpu.memory_space<vmem>>, %arg13: memref<2x16x384xf32, #tpu.memory_space<vmem>>, %arg14: memref<256x72xbf16, #tpu.memory_space<vmem>>, %arg15: memref<144x256xbf16, #tpu.memory_space<vmem>>) attributes {dimension_semantics = [#tpu.dimension_semantics<parallel>], iteration_bounds = array<i64: 2>, scalar_prefetch = 0 : i64, scratch_operands = 4 : i64, tpu.core_type = #tpu.core_type<tc>, window_params = [{transform_indices = @transform_0, window_bounds = array<i64: 1, 8, 8, 8>}, {transform_indices = @transform_1, window_bounds = array<i64: 1, 8, 8, 8>}, {pipeline_mode = #tpu.pipeline_mode<synchronous>, transform_indices = @transform_2, window_bounds = array<i64: 2, 128>}, {transform_indices = @transform_3, window_bounds = array<i64: 1, 2, 8, 128>}, {pipeline_mode = #tpu.pipeline_mode<synchronous>, transform_indices = @transform_4, window_bounds = array<i64: 8, 72>}, {pipeline_mode = #tpu.pipeline_mode<synchronous>, transform_indices = @transform_5, window_bounds = array<i64: 8, 1>}, {pipeline_mode = #tpu.pipeline_mode<synchronous>, transform_indices = @transform_6, window_bounds = array<i64: 8, 1>}, {pipeline_mode = #tpu.pipeline_mode<synchronous>, transform_indices = @transform_7, window_bounds = array<i64: 8, 144>}, {pipeline_mode = #tpu.pipeline_mode<synchronous>, transform_indices = @transform_8, window_bounds = array<i64: 8, 1>}, {pipeline_mode = #tpu.pipeline_mode<synchronous>, transform_indices = @transform_9, window_bounds = array<i64: 8, 1>}, {transform_indices = @transform_10, window_bounds = array<i64: 1, 2, 8, 128>}]} {
    %c0 = arith.constant 0 : index
    %c0_0 = arith.constant 0 : index
    %0 = vector.load %arg3[%c0, %c0_0] : memref<2x128xf32, #tpu.memory_space<vmem>>, vector<1x128xf32>
    %c1 = arith.constant 1 : index
    %c0_1 = arith.constant 0 : index
    %1 = vector.load %arg3[%c1, %c0_1] : memref<2x128xf32, #tpu.memory_space<vmem>>, vector<1x128xf32>
    %c0_2 = arith.constant 0 : index
    %c0_3 = arith.constant 0 : index
    %c0_4 = arith.constant 0 : index
    %c0_5 = arith.constant 0 : index
    %2 = vector.load %arg1[%c0_2, %c0_3, %c0_4, %c0_5] : memref<1x8x8x8xf32, #tpu.memory_space<vmem>>, vector<1x8x8x8xf32>
    %3 = vector.shape_cast %2 : vector<1x8x8x8xf32> to vector<8x8x8xf32>
    %c0_6 = arith.constant 0 : index
    %c0_7 = arith.constant 0 : index
    %c0_8 = arith.constant 0 : index
    %c0_9 = arith.constant 0 : index
    %4 = vector.load %arg2[%c0_6, %c0_7, %c0_8, %c0_9] : memref<1x8x8x8xi32, #tpu.memory_space<vmem>>, vector<1x8x8x8xi32>
    %5 = vector.shape_cast %4 : vector<1x8x8x8xi32> to vector<8x8x8xi32>
    %6 = tpu.iota {dimensions = array<i32: 0>} : vector<8x8x1xi32>
    %7 = tpu.iota {dimensions = array<i32: 1>} : vector<8x8x1xi32>
    %cst = arith.constant 0.000000e+00 : f32
    %8 = vector.broadcast %cst : f32 to vector<1x10x8xf32>
    %c0_10 = arith.constant 0 : index
    %c0_11 = arith.constant 0 : index
    %c0_12 = arith.constant 0 : index
    %c0_13 = arith.constant 0 : index
    %9 = vector.load %arg12[%c0_10, %c0_11, %c0_12, %c0_13] : memref<2x18x10x8xf32, #tpu.memory_space<vmem>>, vector<1x1x10x8xf32>
    %10 = vector.shape_cast %9 : vector<1x1x10x8xf32> to vector<1x10x8xf32>
    %11 = vector.shape_cast %8 : vector<1x10x8xf32> to vector<1x1x10x8xf32>
    tpu.vector_store %arg12[%c0_10, %c0_11, %c0_12, %c0_13], %11 {strides = array<i32>} : memref<2x18x10x8xf32, #tpu.memory_space<vmem>>, vector<1x1x10x8xf32>,
    %cst_14 = arith.constant 0.000000e+00 : f32
    %12 = vector.broadcast %cst_14 : f32 to vector<1x10x8xf32>
    %c0_15 = arith.constant 0 : index
    %c17 = arith.constant 17 : index
    %c0_16 = arith.constant 0 : index
    %c0_17 = arith.constant 0 : index
    %13 = vector.load %arg12[%c0_15, %c17, %c0_16, %c0_17] : memref<2x18x10x8xf32, #tpu.memory_space<vmem>>, vector<1x1x10x8xf32>
    %14 = vector.shape_cast %13 : vector<1x1x10x8xf32> to vector<1x10x8xf32>
    %15 = vector.shape_cast %12 : vector<1x10x8xf32> to vector<1x1x10x8xf32>
    tpu.vector_store %arg12[%c0_15, %c17, %c0_16, %c0_17], %15 {strides = array<i32>} : memref<2x18x10x8xf32, #tpu.memory_space<vmem>>, vector<1x1x10x8xf32>,
    %cst_18 = arith.constant 0.000000e+00 : f32
    %16 = vector.broadcast %cst_18 : f32 to vector<18x1x8xf32>
    %c0_19 = arith.constant 0 : index
    %c0_20 = arith.constant 0 : index
    %c0_21 = arith.constant 0 : index
    %c0_22 = arith.constant 0 : index
    %17 = vector.load %arg12[%c0_19, %c0_20, %c0_21, %c0_22] : memref<2x18x10x8xf32, #tpu.memory_space<vmem>>, vector<1x18x1x8xf32>
    %18 = vector.shape_cast %17 : vector<1x18x1x8xf32> to vector<18x1x8xf32>
    %19 = vector.shape_cast %16 : vector<18x1x8xf32> to vector<1x18x1x8xf32>
    tpu.vector_store %arg12[%c0_19, %c0_20, %c0_21, %c0_22], %19 {strides = array<i32>} : memref<2x18x10x8xf32, #tpu.memory_space<vmem>>, vector<1x18x1x8xf32>,
    %cst_23 = arith.constant 0.000000e+00 : f32
    %20 = vector.broadcast %cst_23 : f32 to vector<18x1x8xf32>
    %c0_24 = arith.constant 0 : index
    %c0_25 = arith.constant 0 : index
    %c9 = arith.constant 9 : index
    %c0_26 = arith.constant 0 : index
    %21 = vector.load %arg12[%c0_24, %c0_25, %c9, %c0_26] : memref<2x18x10x8xf32, #tpu.memory_space<vmem>>, vector<1x18x1x8xf32>
    %22 = vector.shape_cast %21 : vector<1x18x1x8xf32> to vector<18x1x8xf32>
    %23 = vector.shape_cast %20 : vector<18x1x8xf32> to vector<1x18x1x8xf32>
    tpu.vector_store %arg12[%c0_24, %c0_25, %c9, %c0_26], %23 {strides = array<i32>} : memref<2x18x10x8xf32, #tpu.memory_space<vmem>>, vector<1x18x1x8xf32>,
    %c2_i32 = arith.constant 2 : i32
    %24 = vector.broadcast %c2_i32 : i32 to vector<8x8x1xi32>
    %25 = arith.muli %24, %6 : vector<8x8x1xi32>
    %c0_i32 = arith.constant 0 : i32
    %26 = vector.broadcast %c0_i32 : i32 to vector<8x8x1xi32>
    %27 = arith.addi %25, %26 : vector<8x8x1xi32>
    %c16_i32 = arith.constant 16 : i32
    %28 = vector.broadcast %c16_i32 : i32 to vector<8x8x1xi32>
    %29 = arith.muli %27, %28 : vector<8x8x1xi32>
    %c2_i32_27 = arith.constant 2 : i32
    %30 = vector.broadcast %c2_i32_27 : i32 to vector<8x8x1xi32>
    %31 = arith.muli %30, %7 : vector<8x8x1xi32>
    %c0_i32_28 = arith.constant 0 : i32
    %32 = vector.broadcast %c0_i32_28 : i32 to vector<8x8x1xi32>
    %33 = arith.addi %31, %32 : vector<8x8x1xi32>
    %34 = arith.addi %29, %33 : vector<8x8x1xi32>
    %35 = vector.broadcast %34 : vector<8x8x1xi32> to vector<8x8x8xi32>
    %36 = arith.cmpi eq, %5, %35 : vector<8x8x8xi32>
    %cst_29 = arith.constant 0.000000e+00 : f32
    %37 = vector.broadcast %cst_29 : f32 to vector<8x8x8xf32>
    %38 = arith.select %36, %3, %37 : vector<8x8x8xi1>, vector<8x8x8xf32>
    %c2_i32_30 = arith.constant 2 : i32
    %39 = vector.broadcast %c2_i32_30 : i32 to vector<8x8x1xi32>
    %40 = arith.muli %39, %6 : vector<8x8x1xi32>
    %c1_i32 = arith.constant 1 : i32
    %41 = vector.broadcast %c1_i32 : i32 to vector<8x8x1xi32>
    %42 = arith.addi %40, %41 : vector<8x8x1xi32>
    %c16_i32_31 = arith.constant 16 : i32
    %43 = vector.broadcast %c16_i32_31 : i32 to vector<8x8x1xi32>
    %44 = arith.muli %42, %43 : vector<8x8x1xi32>
    %c2_i32_32 = arith.constant 2 : i32
    %45 = vector.broadcast %c2_i32_32 : i32 to vector<8x8x1xi32>
    %46 = arith.muli %45, %7 : vector<8x8x1xi32>
    %c0_i32_33 = arith.constant 0 : i32
    %47 = vector.broadcast %c0_i32_33 : i32 to vector<8x8x1xi32>
    %48 = arith.addi %46, %47 : vector<8x8x1xi32>
    %49 = arith.addi %44, %48 : vector<8x8x1xi32>
    %50 = vector.broadcast %49 : vector<8x8x1xi32> to vector<8x8x8xi32>
    %51 = arith.cmpi eq, %5, %50 : vector<8x8x8xi32>
    %cst_34 = arith.constant 0.000000e+00 : f32
    %52 = vector.broadcast %cst_34 : f32 to vector<8x8x8xf32>
    %53 = arith.select %51, %3, %52 : vector<8x8x8xi1>, vector<8x8x8xf32>
    %54 = vector.shape_cast %38 : vector<8x8x8xf32> to vector<8x1x8x8xf32>
    %55 = vector.shape_cast %53 : vector<8x8x8xf32> to vector<8x1x8x8xf32>
    %56 = tpu.concatenate %54, %55 in 1 : vector<8x1x8x8xf32>, vector<8x1x8x8xf32> -> vector<8x2x8x8xf32>
    %57 = vector.shape_cast %56 : vector<8x2x8x8xf32> to vector<16x8x8xf32>
    %c0_35 = arith.constant 0 : index
    %c1_36 = arith.constant 1 : index
    %c1_37 = arith.constant 1 : index
    %c0_38 = arith.constant 0 : index
    %58 = vector.load %arg12[%c0_35, %c1_36, %c1_37, %c0_38] : memref<2x18x10x8xf32, #tpu.memory_space<vmem>>, vector<1x16x8x8xf32>
    %59 = vector.shape_cast %58 : vector<1x16x8x8xf32> to vector<16x8x8xf32>
    %60 = vector.shape_cast %57 : vector<16x8x8xf32> to vector<1x16x8x8xf32>
    tpu.vector_store %arg12[%c0_35, %c1_36, %c1_37, %c0_38], %60 {strides = array<i32>} : memref<2x18x10x8xf32, #tpu.memory_space<vmem>>, vector<1x16x8x8xf32>,
    %cst_39 = arith.constant 0.000000e+00 : f32
    %61 = vector.broadcast %cst_39 : f32 to vector<1x10x8xf32>
    %c1_40 = arith.constant 1 : index
    %c0_41 = arith.constant 0 : index
    %c0_42 = arith.constant 0 : index
    %c0_43 = arith.constant 0 : index
    %62 = vector.load %arg12[%c1_40, %c0_41, %c0_42, %c0_43] : memref<2x18x10x8xf32, #tpu.memory_space<vmem>>, vector<1x1x10x8xf32>
    %63 = vector.shape_cast %62 : vector<1x1x10x8xf32> to vector<1x10x8xf32>
    %64 = vector.shape_cast %61 : vector<1x10x8xf32> to vector<1x1x10x8xf32>
    tpu.vector_store %arg12[%c1_40, %c0_41, %c0_42, %c0_43], %64 {strides = array<i32>} : memref<2x18x10x8xf32, #tpu.memory_space<vmem>>, vector<1x1x10x8xf32>,
    %cst_44 = arith.constant 0.000000e+00 : f32
    %65 = vector.broadcast %cst_44 : f32 to vector<1x10x8xf32>
    %c1_45 = arith.constant 1 : index
    %c17_46 = arith.constant 17 : index
    %c0_47 = arith.constant 0 : index
    %c0_48 = arith.constant 0 : index
    %66 = vector.load %arg12[%c1_45, %c17_46, %c0_47, %c0_48] : memref<2x18x10x8xf32, #tpu.memory_space<vmem>>, vector<1x1x10x8xf32>
    %67 = vector.shape_cast %66 : vector<1x1x10x8xf32> to vector<1x10x8xf32>
    %68 = vector.shape_cast %65 : vector<1x10x8xf32> to vector<1x1x10x8xf32>
    tpu.vector_store %arg12[%c1_45, %c17_46, %c0_47, %c0_48], %68 {strides = array<i32>} : memref<2x18x10x8xf32, #tpu.memory_space<vmem>>, vector<1x1x10x8xf32>,
    %cst_49 = arith.constant 0.000000e+00 : f32
    %69 = vector.broadcast %cst_49 : f32 to vector<18x1x8xf32>
    %c1_50 = arith.constant 1 : index
    %c0_51 = arith.constant 0 : index
    %c0_52 = arith.constant 0 : index
    %c0_53 = arith.constant 0 : index
    %70 = vector.load %arg12[%c1_50, %c0_51, %c0_52, %c0_53] : memref<2x18x10x8xf32, #tpu.memory_space<vmem>>, vector<1x18x1x8xf32>
    %71 = vector.shape_cast %70 : vector<1x18x1x8xf32> to vector<18x1x8xf32>
    %72 = vector.shape_cast %69 : vector<18x1x8xf32> to vector<1x18x1x8xf32>
    tpu.vector_store %arg12[%c1_50, %c0_51, %c0_52, %c0_53], %72 {strides = array<i32>} : memref<2x18x10x8xf32, #tpu.memory_space<vmem>>, vector<1x18x1x8xf32>,
    %cst_54 = arith.constant 0.000000e+00 : f32
    %73 = vector.broadcast %cst_54 : f32 to vector<18x1x8xf32>
    %c1_55 = arith.constant 1 : index
    %c0_56 = arith.constant 0 : index
    %c9_57 = arith.constant 9 : index
    %c0_58 = arith.constant 0 : index
    %74 = vector.load %arg12[%c1_55, %c0_56, %c9_57, %c0_58] : memref<2x18x10x8xf32, #tpu.memory_space<vmem>>, vector<1x18x1x8xf32>
    %75 = vector.shape_cast %74 : vector<1x18x1x8xf32> to vector<18x1x8xf32>
    %76 = vector.shape_cast %73 : vector<18x1x8xf32> to vector<1x18x1x8xf32>
    tpu.vector_store %arg12[%c1_55, %c0_56, %c9_57, %c0_58], %76 {strides = array<i32>} : memref<2x18x10x8xf32, #tpu.memory_space<vmem>>, vector<1x18x1x8xf32>,
    %c2_i32_59 = arith.constant 2 : i32
    %77 = vector.broadcast %c2_i32_59 : i32 to vector<8x8x1xi32>
    %78 = arith.muli %77, %6 : vector<8x8x1xi32>
    %c0_i32_60 = arith.constant 0 : i32
    %79 = vector.broadcast %c0_i32_60 : i32 to vector<8x8x1xi32>
    %80 = arith.addi %78, %79 : vector<8x8x1xi32>
    %c16_i32_61 = arith.constant 16 : i32
    %81 = vector.broadcast %c16_i32_61 : i32 to vector<8x8x1xi32>
    %82 = arith.muli %80, %81 : vector<8x8x1xi32>
    %c2_i32_62 = arith.constant 2 : i32
    %83 = vector.broadcast %c2_i32_62 : i32 to vector<8x8x1xi32>
    %84 = arith.muli %83, %7 : vector<8x8x1xi32>
    %c1_i32_63 = arith.constant 1 : i32
    %85 = vector.broadcast %c1_i32_63 : i32 to vector<8x8x1xi32>
    %86 = arith.addi %84, %85 : vector<8x8x1xi32>
    %87 = arith.addi %82, %86 : vector<8x8x1xi32>
    %88 = vector.broadcast %87 : vector<8x8x1xi32> to vector<8x8x8xi32>
    %89 = arith.cmpi eq, %5, %88 : vector<8x8x8xi32>
    %cst_64 = arith.constant 0.000000e+00 : f32
    %90 = vector.broadcast %cst_64 : f32 to vector<8x8x8xf32>
    %91 = arith.select %89, %3, %90 : vector<8x8x8xi1>, vector<8x8x8xf32>
    %c2_i32_65 = arith.constant 2 : i32
    %92 = vector.broadcast %c2_i32_65 : i32 to vector<8x8x1xi32>
    %93 = arith.muli %92, %6 : vector<8x8x1xi32>
    %c1_i32_66 = arith.constant 1 : i32
    %94 = vector.broadcast %c1_i32_66 : i32 to vector<8x8x1xi32>
    %95 = arith.addi %93, %94 : vector<8x8x1xi32>
    %c16_i32_67 = arith.constant 16 : i32
    %96 = vector.broadcast %c16_i32_67 : i32 to vector<8x8x1xi32>
    %97 = arith.muli %95, %96 : vector<8x8x1xi32>
    %c2_i32_68 = arith.constant 2 : i32
    %98 = vector.broadcast %c2_i32_68 : i32 to vector<8x8x1xi32>
    %99 = arith.muli %98, %7 : vector<8x8x1xi32>
    %c1_i32_69 = arith.constant 1 : i32
    %100 = vector.broadcast %c1_i32_69 : i32 to vector<8x8x1xi32>
    %101 = arith.addi %99, %100 : vector<8x8x1xi32>
    %102 = arith.addi %97, %101 : vector<8x8x1xi32>
    %103 = vector.broadcast %102 : vector<8x8x1xi32> to vector<8x8x8xi32>
    %104 = arith.cmpi eq, %5, %103 : vector<8x8x8xi32>
    %cst_70 = arith.constant 0.000000e+00 : f32
    %105 = vector.broadcast %cst_70 : f32 to vector<8x8x8xf32>
    %106 = arith.select %104, %3, %105 : vector<8x8x8xi1>, vector<8x8x8xf32>
    %107 = vector.shape_cast %91 : vector<8x8x8xf32> to vector<8x1x8x8xf32>
    %108 = vector.shape_cast %106 : vector<8x8x8xf32> to vector<8x1x8x8xf32>
    %109 = tpu.concatenate %107, %108 in 1 : vector<8x1x8x8xf32>, vector<8x1x8x8xf32> -> vector<8x2x8x8xf32>
    %110 = vector.shape_cast %109 : vector<8x2x8x8xf32> to vector<16x8x8xf32>
    %c1_71 = arith.constant 1 : index
    %c1_72 = arith.constant 1 : index
    %c1_73 = arith.constant 1 : index
    %c0_74 = arith.constant 0 : index
    %111 = vector.load %arg12[%c1_71, %c1_72, %c1_73, %c0_74] : memref<2x18x10x8xf32, #tpu.memory_space<vmem>>, vector<1x16x8x8xf32>
    %112 = vector.shape_cast %111 : vector<1x16x8x8xf32> to vector<16x8x8xf32>
    %113 = vector.shape_cast %110 : vector<16x8x8xf32> to vector<1x16x8x8xf32>
    tpu.vector_store %arg12[%c1_71, %c1_72, %c1_73, %c0_74], %113 {strides = array<i32>} : memref<2x18x10x8xf32, #tpu.memory_space<vmem>>, vector<1x16x8x8xf32>,
    %cst_75 = arith.constant 0.000000e+00 : f32
    %114 = vector.broadcast %cst_75 : f32 to vector<16x9xf32>
    %c0_76 = arith.constant 0 : index
    %c0_77 = arith.constant 0 : index
    %c119 = arith.constant 119 : index
    %115 = vector.load %arg13[%c0_76, %c0_77, %c119] : memref<2x16x384xf32, #tpu.memory_space<vmem>>, vector<1x16x9xf32>
    %116 = vector.shape_cast %115 : vector<1x16x9xf32> to vector<16x9xf32>
    %117 = vector.shape_cast %114 : vector<16x9xf32> to vector<1x16x9xf32>
    tpu.vector_store %arg13[%c0_76, %c0_77, %c119], %117 {strides = array<i32>} : memref<2x16x384xf32, #tpu.memory_space<vmem>>, vector<1x16x9xf32>,
    %cst_78 = arith.constant 0.000000e+00 : f32
    %118 = vector.broadcast %cst_78 : f32 to vector<16x9xf32>
    %c0_79 = arith.constant 0 : index
    %c0_80 = arith.constant 0 : index
    %c256 = arith.constant 256 : index
    %119 = vector.load %arg13[%c0_79, %c0_80, %c256] : memref<2x16x384xf32, #tpu.memory_space<vmem>>, vector<1x16x9xf32>
    %120 = vector.shape_cast %119 : vector<1x16x9xf32> to vector<16x9xf32>
    %121 = vector.shape_cast %118 : vector<16x9xf32> to vector<1x16x9xf32>
    tpu.vector_store %arg13[%c0_79, %c0_80, %c256], %121 {strides = array<i32>} : memref<2x16x384xf32, #tpu.memory_space<vmem>>, vector<1x16x9xf32>,
    %cst_81 = arith.constant 0.000000e+00 : f32
    %122 = vector.broadcast %cst_81 : f32 to vector<16x9xf32>
    %c1_82 = arith.constant 1 : index
    %c0_83 = arith.constant 0 : index
    %c119_84 = arith.constant 119 : index
    %123 = vector.load %arg13[%c1_82, %c0_83, %c119_84] : memref<2x16x384xf32, #tpu.memory_space<vmem>>, vector<1x16x9xf32>
    %124 = vector.shape_cast %123 : vector<1x16x9xf32> to vector<16x9xf32>
    %125 = vector.shape_cast %122 : vector<16x9xf32> to vector<1x16x9xf32>
    tpu.vector_store %arg13[%c1_82, %c0_83, %c119_84], %125 {strides = array<i32>} : memref<2x16x384xf32, #tpu.memory_space<vmem>>, vector<1x16x9xf32>,
    %cst_85 = arith.constant 0.000000e+00 : f32
    %126 = vector.broadcast %cst_85 : f32 to vector<16x9xf32>
    %c1_86 = arith.constant 1 : index
    %c0_87 = arith.constant 0 : index
    %c256_88 = arith.constant 256 : index
    %127 = vector.load %arg13[%c1_86, %c0_87, %c256_88] : memref<2x16x384xf32, #tpu.memory_space<vmem>>, vector<1x16x9xf32>
    %128 = vector.shape_cast %127 : vector<1x16x9xf32> to vector<16x9xf32>
    %129 = vector.shape_cast %126 : vector<16x9xf32> to vector<1x16x9xf32>
    tpu.vector_store %arg13[%c1_86, %c0_87, %c256_88], %129 {strides = array<i32>} : memref<2x16x384xf32, #tpu.memory_space<vmem>>, vector<1x16x9xf32>,
    %c1_89 = arith.constant 1 : index
    %c0_90 = arith.constant 0 : index
    %c0_91 = arith.constant 0 : index
    %c0_92 = arith.constant 0 : index
    %130 = vector.load %arg12[%c1_89, %c0_90, %c0_91, %c0_92] : memref<2x18x10x8xf32, #tpu.memory_space<vmem>>, vector<1x16x8x8xf32>
    %131 = vector.shape_cast %130 : vector<1x16x8x8xf32> to vector<16x8x8xf32>
    %132 = vector.shape_cast %131 : vector<16x8x8xf32> to vector<128x8xf32>
    %133 = arith.truncf %132 : vector<128x8xf32> to vector<128x8xbf16>
    %c0_93 = arith.constant 0 : index
    %c0_94 = arith.constant 0 : index
    %134 = vector.load %arg14[%c0_93, %c0_94] : memref<256x72xbf16, #tpu.memory_space<vmem>>, vector<128x8xbf16>
    tpu.vector_store %arg14[%c0_93, %c0_94], %133 {strides = array<i32>} : memref<256x72xbf16, #tpu.memory_space<vmem>>, vector<128x8xbf16>,
    %c0_95 = arith.constant 0 : index
    %c0_96 = arith.constant 0 : index
    %c1_97 = arith.constant 1 : index
    %c0_98 = arith.constant 0 : index
    %135 = vector.load %arg12[%c0_95, %c0_96, %c1_97, %c0_98] : memref<2x18x10x8xf32, #tpu.memory_space<vmem>>, vector<1x16x8x8xf32>
    %136 = vector.shape_cast %135 : vector<1x16x8x8xf32> to vector<16x8x8xf32>
    %137 = vector.shape_cast %136 : vector<16x8x8xf32> to vector<128x8xf32>
    %138 = arith.truncf %137 : vector<128x8xf32> to vector<128x8xbf16>
    %c0_99 = arith.constant 0 : index
    %c8 = arith.constant 8 : index
    %139 = vector.load %arg14[%c0_99, %c8] : memref<256x72xbf16, #tpu.memory_space<vmem>>, vector<128x8xbf16>
    tpu.vector_store %arg14[%c0_99, %c8], %138 {strides = array<i32>} : memref<256x72xbf16, #tpu.memory_space<vmem>>, vector<128x8xbf16>,
    %c1_100 = arith.constant 1 : index
    %c0_101 = arith.constant 0 : index
    %c1_102 = arith.constant 1 : index
    %c0_103 = arith.constant 0 : index
    %140 = vector.load %arg12[%c1_100, %c0_101, %c1_102, %c0_103] : memref<2x18x10x8xf32, #tpu.memory_space<vmem>>, vector<1x16x8x8xf32>
    %141 = vector.shape_cast %140 : vector<1x16x8x8xf32> to vector<16x8x8xf32>
    %142 = vector.shape_cast %141 : vector<16x8x8xf32> to vector<128x8xf32>
    %143 = arith.truncf %142 : vector<128x8xf32> to vector<128x8xbf16>
    %c0_104 = arith.constant 0 : index
    %c16 = arith.constant 16 : index
    %144 = vector.load %arg14[%c0_104, %c16] : memref<256x72xbf16, #tpu.memory_space<vmem>>, vector<128x8xbf16>
    tpu.vector_store %arg14[%c0_104, %c16], %143 {strides = array<i32>} : memref<256x72xbf16, #tpu.memory_space<vmem>>, vector<128x8xbf16>,
    %c1_105 = arith.constant 1 : index
    %c1_106 = arith.constant 1 : index
    %c0_107 = arith.constant 0 : index
    %c0_108 = arith.constant 0 : index
    %145 = vector.load %arg12[%c1_105, %c1_106, %c0_107, %c0_108] : memref<2x18x10x8xf32, #tpu.memory_space<vmem>>, vector<1x16x8x8xf32>
    %146 = vector.shape_cast %145 : vector<1x16x8x8xf32> to vector<16x8x8xf32>
    %147 = vector.shape_cast %146 : vector<16x8x8xf32> to vector<128x8xf32>
    %148 = arith.truncf %147 : vector<128x8xf32> to vector<128x8xbf16>
    %c0_109 = arith.constant 0 : index
    %c24 = arith.constant 24 : index
    %149 = vector.load %arg14[%c0_109, %c24] : memref<256x72xbf16, #tpu.memory_space<vmem>>, vector<128x8xbf16>
    tpu.vector_store %arg14[%c0_109, %c24], %148 {strides = array<i32>} : memref<256x72xbf16, #tpu.memory_space<vmem>>, vector<128x8xbf16>,
    %c0_110 = arith.constant 0 : index
    %c1_111 = arith.constant 1 : index
    %c1_112 = arith.constant 1 : index
    %c0_113 = arith.constant 0 : index
    %150 = vector.load %arg12[%c0_110, %c1_111, %c1_112, %c0_113] : memref<2x18x10x8xf32, #tpu.memory_space<vmem>>, vector<1x16x8x8xf32>
    %151 = vector.shape_cast %150 : vector<1x16x8x8xf32> to vector<16x8x8xf32>
    %152 = vector.shape_cast %151 : vector<16x8x8xf32> to vector<128x8xf32>
    %153 = arith.truncf %152 : vector<128x8xf32> to vector<128x8xbf16>
    %c0_114 = arith.constant 0 : index
    %c32 = arith.constant 32 : index
    %154 = vector.load %arg14[%c0_114, %c32] : memref<256x72xbf16, #tpu.memory_space<vmem>>, vector<128x8xbf16>
    tpu.vector_store %arg14[%c0_114, %c32], %153 {strides = array<i32>} : memref<256x72xbf16, #tpu.memory_space<vmem>>, vector<128x8xbf16>,
    %c1_115 = arith.constant 1 : index
    %c1_116 = arith.constant 1 : index
    %c1_117 = arith.constant 1 : index
    %c0_118 = arith.constant 0 : index
    %155 = vector.load %arg12[%c1_115, %c1_116, %c1_117, %c0_118] : memref<2x18x10x8xf32, #tpu.memory_space<vmem>>, vector<1x16x8x8xf32>
    %156 = vector.shape_cast %155 : vector<1x16x8x8xf32> to vector<16x8x8xf32>
    %157 = vector.shape_cast %156 : vector<16x8x8xf32> to vector<128x8xf32>
    %158 = arith.truncf %157 : vector<128x8xf32> to vector<128x8xbf16>
    %c0_119 = arith.constant 0 : index
    %c40 = arith.constant 40 : index
    %159 = vector.load %arg14[%c0_119, %c40] : memref<256x72xbf16, #tpu.memory_space<vmem>>, vector<128x8xbf16>
    tpu.vector_store %arg14[%c0_119, %c40], %158 {strides = array<i32>} : memref<256x72xbf16, #tpu.memory_space<vmem>>, vector<128x8xbf16>,
    %c1_120 = arith.constant 1 : index
    %c2 = arith.constant 2 : index
    %c0_121 = arith.constant 0 : index
    %c0_122 = arith.constant 0 : index
    %160 = vector.load %arg12[%c1_120, %c2, %c0_121, %c0_122] : memref<2x18x10x8xf32, #tpu.memory_space<vmem>>, vector<1x16x8x8xf32>
    %161 = vector.shape_cast %160 : vector<1x16x8x8xf32> to vector<16x8x8xf32>
    %162 = vector.shape_cast %161 : vector<16x8x8xf32> to vector<128x8xf32>
    %163 = arith.truncf %162 : vector<128x8xf32> to vector<128x8xbf16>
    %c0_123 = arith.constant 0 : index
    %c48 = arith.constant 48 : index
    %164 = vector.load %arg14[%c0_123, %c48] : memref<256x72xbf16, #tpu.memory_space<vmem>>, vector<128x8xbf16>
    tpu.vector_store %arg14[%c0_123, %c48], %163 {strides = array<i32>} : memref<256x72xbf16, #tpu.memory_space<vmem>>, vector<128x8xbf16>,
    %c0_124 = arith.constant 0 : index
    %c2_125 = arith.constant 2 : index
    %c1_126 = arith.constant 1 : index
    %c0_127 = arith.constant 0 : index
    %165 = vector.load %arg12[%c0_124, %c2_125, %c1_126, %c0_127] : memref<2x18x10x8xf32, #tpu.memory_space<vmem>>, vector<1x16x8x8xf32>
    %166 = vector.shape_cast %165 : vector<1x16x8x8xf32> to vector<16x8x8xf32>
    %167 = vector.shape_cast %166 : vector<16x8x8xf32> to vector<128x8xf32>
    %168 = arith.truncf %167 : vector<128x8xf32> to vector<128x8xbf16>
    %c0_128 = arith.constant 0 : index
    %c56 = arith.constant 56 : index
    %169 = vector.load %arg14[%c0_128, %c56] : memref<256x72xbf16, #tpu.memory_space<vmem>>, vector<128x8xbf16>
    tpu.vector_store %arg14[%c0_128, %c56], %168 {strides = array<i32>} : memref<256x72xbf16, #tpu.memory_space<vmem>>, vector<128x8xbf16>,
    %c1_129 = arith.constant 1 : index
    %c2_130 = arith.constant 2 : index
    %c1_131 = arith.constant 1 : index
    %c0_132 = arith.constant 0 : index
    %170 = vector.load %arg12[%c1_129, %c2_130, %c1_131, %c0_132] : memref<2x18x10x8xf32, #tpu.memory_space<vmem>>, vector<1x16x8x8xf32>
    %171 = vector.shape_cast %170 : vector<1x16x8x8xf32> to vector<16x8x8xf32>
    %172 = vector.shape_cast %171 : vector<16x8x8xf32> to vector<128x8xf32>
    %173 = arith.truncf %172 : vector<128x8xf32> to vector<128x8xbf16>
    %c0_133 = arith.constant 0 : index
    %c64 = arith.constant 64 : index
    %174 = vector.load %arg14[%c0_133, %c64] : memref<256x72xbf16, #tpu.memory_space<vmem>>, vector<128x8xbf16>
    tpu.vector_store %arg14[%c0_133, %c64], %173 {strides = array<i32>} : memref<256x72xbf16, #tpu.memory_space<vmem>>, vector<128x8xbf16>,
    %c0_134 = arith.constant 0 : index
    %c0_135 = arith.constant 0 : index
    %c1_136 = arith.constant 1 : index
    %c0_137 = arith.constant 0 : index
    %175 = vector.load %arg12[%c0_134, %c0_135, %c1_136, %c0_137] : memref<2x18x10x8xf32, #tpu.memory_space<vmem>>, vector<1x16x8x8xf32>
    %176 = vector.shape_cast %175 : vector<1x16x8x8xf32> to vector<16x8x8xf32>
    %177 = vector.shape_cast %176 : vector<16x8x8xf32> to vector<128x8xf32>
    %178 = arith.truncf %177 : vector<128x8xf32> to vector<128x8xbf16>
    %c128 = arith.constant 128 : index
    %c0_138 = arith.constant 0 : index
    %179 = vector.load %arg14[%c128, %c0_138] : memref<256x72xbf16, #tpu.memory_space<vmem>>, vector<128x8xbf16>
    tpu.vector_store %arg14[%c128, %c0_138], %178 {strides = array<i32>} : memref<256x72xbf16, #tpu.memory_space<vmem>>, vector<128x8xbf16>,
    %c1_139 = arith.constant 1 : index
    %c0_140 = arith.constant 0 : index
    %c1_141 = arith.constant 1 : index
    %c0_142 = arith.constant 0 : index
    %180 = vector.load %arg12[%c1_139, %c0_140, %c1_141, %c0_142] : memref<2x18x10x8xf32, #tpu.memory_space<vmem>>, vector<1x16x8x8xf32>
    %181 = vector.shape_cast %180 : vector<1x16x8x8xf32> to vector<16x8x8xf32>
    %182 = vector.shape_cast %181 : vector<16x8x8xf32> to vector<128x8xf32>
    %183 = arith.truncf %182 : vector<128x8xf32> to vector<128x8xbf16>
    %c128_143 = arith.constant 128 : index
    %c8_144 = arith.constant 8 : index
    %184 = vector.load %arg14[%c128_143, %c8_144] : memref<256x72xbf16, #tpu.memory_space<vmem>>, vector<128x8xbf16>
    tpu.vector_store %arg14[%c128_143, %c8_144], %183 {strides = array<i32>} : memref<256x72xbf16, #tpu.memory_space<vmem>>, vector<128x8xbf16>,
    %c0_145 = arith.constant 0 : index
    %c0_146 = arith.constant 0 : index
    %c2_147 = arith.constant 2 : index
    %c0_148 = arith.constant 0 : index
    %185 = vector.load %arg12[%c0_145, %c0_146, %c2_147, %c0_148] : memref<2x18x10x8xf32, #tpu.memory_space<vmem>>, vector<1x16x8x8xf32>
    %186 = vector.shape_cast %185 : vector<1x16x8x8xf32> to vector<16x8x8xf32>
    %187 = vector.shape_cast %186 : vector<16x8x8xf32> to vector<128x8xf32>
    %188 = arith.truncf %187 : vector<128x8xf32> to vector<128x8xbf16>
    %c128_149 = arith.constant 128 : index
    %c16_150 = arith.constant 16 : index
    %189 = vector.load %arg14[%c128_149, %c16_150] : memref<256x72xbf16, #tpu.memory_space<vmem>>, vector<128x8xbf16>
    tpu.vector_store %arg14[%c128_149, %c16_150], %188 {strides = array<i32>} : memref<256x72xbf16, #tpu.memory_space<vmem>>, vector<128x8xbf16>,
    %c0_151 = arith.constant 0 : index
    %c1_152 = arith.constant 1 : index
    %c1_153 = arith.constant 1 : index
    %c0_154 = arith.constant 0 : index
    %190 = vector.load %arg12[%c0_151, %c1_152, %c1_153, %c0_154] : memref<2x18x10x8xf32, #tpu.memory_space<vmem>>, vector<1x16x8x8xf32>
    %191 = vector.shape_cast %190 : vector<1x16x8x8xf32> to vector<16x8x8xf32>
    %192 = vector.shape_cast %191 : vector<16x8x8xf32> to vector<128x8xf32>
    %193 = arith.truncf %192 : vector<128x8xf32> to vector<128x8xbf16>
    %c128_155 = arith.constant 128 : index
    %c24_156 = arith.constant 24 : index
    %194 = vector.load %arg14[%c128_155, %c24_156] : memref<256x72xbf16, #tpu.memory_space<vmem>>, vector<128x8xbf16>
    tpu.vector_store %arg14[%c128_155, %c24_156], %193 {strides = array<i32>} : memref<256x72xbf16, #tpu.memory_space<vmem>>, vector<128x8xbf16>,
    %c1_157 = arith.constant 1 : index
    %c1_158 = arith.constant 1 : index
    %c1_159 = arith.constant 1 : index
    %c0_160 = arith.constant 0 : index
    %195 = vector.load %arg12[%c1_157, %c1_158, %c1_159, %c0_160] : memref<2x18x10x8xf32, #tpu.memory_space<vmem>>, vector<1x16x8x8xf32>
    %196 = vector.shape_cast %195 : vector<1x16x8x8xf32> to vector<16x8x8xf32>
    %197 = vector.shape_cast %196 : vector<16x8x8xf32> to vector<128x8xf32>
    %198 = arith.truncf %197 : vector<128x8xf32> to vector<128x8xbf16>
    %c128_161 = arith.constant 128 : index
    %c32_162 = arith.constant 32 : index
    %199 = vector.load %arg14[%c128_161, %c32_162] : memref<256x72xbf16, #tpu.memory_space<vmem>>, vector<128x8xbf16>
    tpu.vector_store %arg14[%c128_161, %c32_162], %198 {strides = array<i32>} : memref<256x72xbf16, #tpu.memory_space<vmem>>, vector<128x8xbf16>,
    %c0_163 = arith.constant 0 : index
    %c1_164 = arith.constant 1 : index
    %c2_165 = arith.constant 2 : index
    %c0_166 = arith.constant 0 : index
    %200 = vector.load %arg12[%c0_163, %c1_164, %c2_165, %c0_166] : memref<2x18x10x8xf32, #tpu.memory_space<vmem>>, vector<1x16x8x8xf32>
    %201 = vector.shape_cast %200 : vector<1x16x8x8xf32> to vector<16x8x8xf32>
    %202 = vector.shape_cast %201 : vector<16x8x8xf32> to vector<128x8xf32>
    %203 = arith.truncf %202 : vector<128x8xf32> to vector<128x8xbf16>
    %c128_167 = arith.constant 128 : index
    %c40_168 = arith.constant 40 : index
    %204 = vector.load %arg14[%c128_167, %c40_168] : memref<256x72xbf16, #tpu.memory_space<vmem>>, vector<128x8xbf16>
    tpu.vector_store %arg14[%c128_167, %c40_168], %203 {strides = array<i32>} : memref<256x72xbf16, #tpu.memory_space<vmem>>, vector<128x8xbf16>,
    %c0_169 = arith.constant 0 : index
    %c2_170 = arith.constant 2 : index
    %c1_171 = arith.constant 1 : index
    %c0_172 = arith.constant 0 : index
    %205 = vector.load %arg12[%c0_169, %c2_170, %c1_171, %c0_172] : memref<2x18x10x8xf32, #tpu.memory_space<vmem>>, vector<1x16x8x8xf32>
    %206 = vector.shape_cast %205 : vector<1x16x8x8xf32> to vector<16x8x8xf32>
    %207 = vector.shape_cast %206 : vector<16x8x8xf32> to vector<128x8xf32>
    %208 = arith.truncf %207 : vector<128x8xf32> to vector<128x8xbf16>
    %c128_173 = arith.constant 128 : index
    %c48_174 = arith.constant 48 : index
    %209 = vector.load %arg14[%c128_173, %c48_174] : memref<256x72xbf16, #tpu.memory_space<vmem>>, vector<128x8xbf16>
    tpu.vector_store %arg14[%c128_173, %c48_174], %208 {strides = array<i32>} : memref<256x72xbf16, #tpu.memory_space<vmem>>, vector<128x8xbf16>,
    %c1_175 = arith.constant 1 : index
    %c2_176 = arith.constant 2 : index
    %c1_177 = arith.constant 1 : index
    %c0_178 = arith.constant 0 : index
    %210 = vector.load %arg12[%c1_175, %c2_176, %c1_177, %c0_178] : memref<2x18x10x8xf32, #tpu.memory_space<vmem>>, vector<1x16x8x8xf32>
    %211 = vector.shape_cast %210 : vector<1x16x8x8xf32> to vector<16x8x8xf32>
    %212 = vector.shape_cast %211 : vector<16x8x8xf32> to vector<128x8xf32>
    %213 = arith.truncf %212 : vector<128x8xf32> to vector<128x8xbf16>
    %c128_179 = arith.constant 128 : index
    %c56_180 = arith.constant 56 : index
    %214 = vector.load %arg14[%c128_179, %c56_180] : memref<256x72xbf16, #tpu.memory_space<vmem>>, vector<128x8xbf16>
    tpu.vector_store %arg14[%c128_179, %c56_180], %213 {strides = array<i32>} : memref<256x72xbf16, #tpu.memory_space<vmem>>, vector<128x8xbf16>,
    %c0_181 = arith.constant 0 : index
    %c2_182 = arith.constant 2 : index
    %c2_183 = arith.constant 2 : index
    %c0_184 = arith.constant 0 : index
    %215 = vector.load %arg12[%c0_181, %c2_182, %c2_183, %c0_184] : memref<2x18x10x8xf32, #tpu.memory_space<vmem>>, vector<1x16x8x8xf32>
    %216 = vector.shape_cast %215 : vector<1x16x8x8xf32> to vector<16x8x8xf32>
    %217 = vector.shape_cast %216 : vector<16x8x8xf32> to vector<128x8xf32>
    %218 = arith.truncf %217 : vector<128x8xf32> to vector<128x8xbf16>
    %c128_185 = arith.constant 128 : index
    %c64_186 = arith.constant 64 : index
    %219 = vector.load %arg14[%c128_185, %c64_186] : memref<256x72xbf16, #tpu.memory_space<vmem>>, vector<128x8xbf16>
    tpu.vector_store %arg14[%c128_185, %c64_186], %218 {strides = array<i32>} : memref<256x72xbf16, #tpu.memory_space<vmem>>, vector<128x8xbf16>,
    %c0_187 = arith.constant 0 : index
    %c0_188 = arith.constant 0 : index
    %220 = vector.load %arg5[%c0_187, %c0_188] : memref<8x72xbf16, #tpu.memory_space<vmem>>, vector<8x72xbf16>
    %c0_189 = arith.constant 0 : index
    %c0_190 = arith.constant 0 : index
    %221 = vector.load %arg14[%c0_189, %c0_190] : memref<256x72xbf16, #tpu.memory_space<vmem>>, vector<256x72xbf16>
    %cst_191 = arith.constant dense<0.000000e+00> : vector<8x256xf32>
    %222 = tpu.matmul %220, %221, %cst_191 {dimension_numbers = #tpu.dot_dimension_numbers<[1], [1], [0], [0], [0, 0, 1, 0], [], []>} : vector<8x72xbf16>, vector<256x72xbf16>, vector<8x256xf32> -> vector<8x256xf32>
    %c0_192 = arith.constant 0 : index
    %c0_193 = arith.constant 0 : index
    %223 = vector.load %arg6[%c0_192, %c0_193] : memref<8x1xf32, #tpu.memory_space<vmem>>, vector<8x1xf32>
    %224 = vector.broadcast %223 : vector<8x1xf32> to vector<8x256xf32>
    %225 = arith.mulf %222, %224 : vector<8x256xf32>
    %c0_194 = arith.constant 0 : index
    %c0_195 = arith.constant 0 : index
    %226 = vector.load %arg7[%c0_194, %c0_195] : memref<8x1xf32, #tpu.memory_space<vmem>>, vector<8x1xf32>
    %227 = vector.broadcast %226 : vector<8x1xf32> to vector<8x256xf32>
    %228 = arith.addf %225, %227 : vector<8x256xf32>
    %cst_196 = arith.constant 0.000000e+00 : f32
    %229 = vector.broadcast %cst_196 : f32 to vector<8x256xf32>
    %230 = arith.maximumf %228, %229 : vector<8x256xf32>
    %231 = vector.extract_strided_slice %230 {offsets = [0, 0], sizes = [8, 128], strides = [1, 1]} : vector<8x256xf32> to vector<8x128xf32>
    %c0_197 = arith.constant 0 : index
    %c0_198 = arith.constant 0 : index
    %c128_199 = arith.constant 128 : index
    %232 = vector.load %arg13[%c0_197, %c0_198, %c128_199] : memref<2x16x384xf32, #tpu.memory_space<vmem>>, vector<1x8x128xf32>
    %233 = vector.shape_cast %232 : vector<1x8x128xf32> to vector<8x128xf32>
    %234 = vector.shape_cast %231 : vector<8x128xf32> to vector<1x8x128xf32>
    tpu.vector_store %arg13[%c0_197, %c0_198, %c128_199], %234 {strides = array<i32>} : memref<2x16x384xf32, #tpu.memory_space<vmem>>, vector<1x8x128xf32>,
    %235 = vector.extract_strided_slice %230 {offsets = [0, 128], sizes = [8, 128], strides = [1, 1]} : vector<8x256xf32> to vector<8x128xf32>
    %c1_200 = arith.constant 1 : index
    %c0_201 = arith.constant 0 : index
    %c128_202 = arith.constant 128 : index
    %236 = vector.load %arg13[%c1_200, %c0_201, %c128_202] : memref<2x16x384xf32, #tpu.memory_space<vmem>>, vector<1x8x128xf32>
    %237 = vector.shape_cast %236 : vector<1x8x128xf32> to vector<8x128xf32>
    %238 = vector.shape_cast %235 : vector<8x128xf32> to vector<1x8x128xf32>
    tpu.vector_store %arg13[%c1_200, %c0_201, %c128_202], %238 {strides = array<i32>} : memref<2x16x384xf32, #tpu.memory_space<vmem>>, vector<1x8x128xf32>,
    %c0_203 = arith.constant 0 : index
    %c0_204 = arith.constant 0 : index
    %c0_205 = arith.constant 0 : index
    %c0_206 = arith.constant 0 : index
    %239 = vector.load %arg4[%c0_203, %c0_204, %c0_205, %c0_206] : memref<1x2x8x128xf32, #tpu.memory_space<vmem>>, vector<1x1x8x128xf32>
    %240 = vector.shape_cast %239 : vector<1x1x8x128xf32> to vector<8x128xf32>
    %c0_207 = arith.constant 0 : index
    %c8_208 = arith.constant 8 : index
    %c128_209 = arith.constant 128 : index
    %241 = vector.load %arg13[%c0_207, %c8_208, %c128_209] : memref<2x16x384xf32, #tpu.memory_space<vmem>>, vector<1x8x128xf32>
    %242 = vector.shape_cast %241 : vector<1x8x128xf32> to vector<8x128xf32>
    %243 = vector.shape_cast %240 : vector<8x128xf32> to vector<1x8x128xf32>
    tpu.vector_store %arg13[%c0_207, %c8_208, %c128_209], %243 {strides = array<i32>} : memref<2x16x384xf32, #tpu.memory_space<vmem>>, vector<1x8x128xf32>,
    %c0_210 = arith.constant 0 : index
    %c1_211 = arith.constant 1 : index
    %c0_212 = arith.constant 0 : index
    %c0_213 = arith.constant 0 : index
    %244 = vector.load %arg4[%c0_210, %c1_211, %c0_212, %c0_213] : memref<1x2x8x128xf32, #tpu.memory_space<vmem>>, vector<1x1x8x128xf32>
    %245 = vector.shape_cast %244 : vector<1x1x8x128xf32> to vector<8x128xf32>
    %c1_214 = arith.constant 1 : index
    %c8_215 = arith.constant 8 : index
    %c128_216 = arith.constant 128 : index
    %246 = vector.load %arg13[%c1_214, %c8_215, %c128_216] : memref<2x16x384xf32, #tpu.memory_space<vmem>>, vector<1x8x128xf32>
    %247 = vector.shape_cast %246 : vector<1x8x128xf32> to vector<8x128xf32>
    %248 = vector.shape_cast %245 : vector<8x128xf32> to vector<1x8x128xf32>
    tpu.vector_store %arg13[%c1_214, %c8_215, %c128_216], %248 {strides = array<i32>} : memref<2x16x384xf32, #tpu.memory_space<vmem>>, vector<1x8x128xf32>,
    %c1_217 = arith.constant 1 : index
    %c0_218 = arith.constant 0 : index
    %c119_219 = arith.constant 119 : index
    %249 = vector.load %arg13[%c1_217, %c0_218, %c119_219] : memref<2x16x384xf32, #tpu.memory_space<vmem>>, vector<1x16x128xf32>
    %250 = vector.shape_cast %249 : vector<1x16x128xf32> to vector<16x128xf32>
    %251 = vector.broadcast %0 : vector<1x128xf32> to vector<16x128xf32>
    %252 = arith.mulf %250, %251 : vector<16x128xf32>
    %253 = arith.truncf %252 : vector<16x128xf32> to vector<16x128xbf16>
    %c0_220 = arith.constant 0 : index
    %c0_221 = arith.constant 0 : index
    %254 = vector.load %arg15[%c0_220, %c0_221] : memref<144x256xbf16, #tpu.memory_space<vmem>>, vector<16x128xbf16>
    tpu.vector_store %arg15[%c0_220, %c0_221], %253 {strides = array<i32>} : memref<144x256xbf16, #tpu.memory_space<vmem>>, vector<16x128xbf16>,
    %c0_222 = arith.constant 0 : index
    %c0_223 = arith.constant 0 : index
    %c120 = arith.constant 120 : index
    %255 = vector.load %arg13[%c0_222, %c0_223, %c120] : memref<2x16x384xf32, #tpu.memory_space<vmem>>, vector<1x16x128xf32>
    %256 = vector.shape_cast %255 : vector<1x16x128xf32> to vector<16x128xf32>
    %257 = arith.truncf %256 : vector<16x128xf32> to vector<16x128xbf16>
    %c16_224 = arith.constant 16 : index
    %c0_225 = arith.constant 0 : index
    %258 = vector.load %arg15[%c16_224, %c0_225] : memref<144x256xbf16, #tpu.memory_space<vmem>>, vector<16x128xbf16>
    tpu.vector_store %arg15[%c16_224, %c0_225], %257 {strides = array<i32>} : memref<144x256xbf16, #tpu.memory_space<vmem>>, vector<16x128xbf16>,
    %c1_226 = arith.constant 1 : index
    %c0_227 = arith.constant 0 : index
    %c120_228 = arith.constant 120 : index
    %259 = vector.load %arg13[%c1_226, %c0_227, %c120_228] : memref<2x16x384xf32, #tpu.memory_space<vmem>>, vector<1x16x128xf32>
    %260 = vector.shape_cast %259 : vector<1x16x128xf32> to vector<16x128xf32>
    %261 = arith.truncf %260 : vector<16x128xf32> to vector<16x128xbf16>
    %c32_229 = arith.constant 32 : index
    %c0_230 = arith.constant 0 : index
    %262 = vector.load %arg15[%c32_229, %c0_230] : memref<144x256xbf16, #tpu.memory_space<vmem>>, vector<16x128xbf16>
    tpu.vector_store %arg15[%c32_229, %c0_230], %261 {strides = array<i32>} : memref<144x256xbf16, #tpu.memory_space<vmem>>, vector<16x128xbf16>,
    %c1_231 = arith.constant 1 : index
    %c0_232 = arith.constant 0 : index
    %c127 = arith.constant 127 : index
    %263 = vector.load %arg13[%c1_231, %c0_232, %c127] : memref<2x16x384xf32, #tpu.memory_space<vmem>>, vector<1x16x128xf32>
    %264 = vector.shape_cast %263 : vector<1x16x128xf32> to vector<16x128xf32>
    %265 = vector.broadcast %0 : vector<1x128xf32> to vector<16x128xf32>
    %266 = arith.mulf %264, %265 : vector<16x128xf32>
    %267 = arith.truncf %266 : vector<16x128xf32> to vector<16x128xbf16>
    %c48_233 = arith.constant 48 : index
    %c0_234 = arith.constant 0 : index
    %268 = vector.load %arg15[%c48_233, %c0_234] : memref<144x256xbf16, #tpu.memory_space<vmem>>, vector<16x128xbf16>
    tpu.vector_store %arg15[%c48_233, %c0_234], %267 {strides = array<i32>} : memref<144x256xbf16, #tpu.memory_space<vmem>>, vector<16x128xbf16>,
    %c0_235 = arith.constant 0 : index
    %c0_236 = arith.constant 0 : index
    %c128_237 = arith.constant 128 : index
    %269 = vector.load %arg13[%c0_235, %c0_236, %c128_237] : memref<2x16x384xf32, #tpu.memory_space<vmem>>, vector<1x16x128xf32>
    %270 = vector.shape_cast %269 : vector<1x16x128xf32> to vector<16x128xf32>
    %271 = arith.truncf %270 : vector<16x128xf32> to vector<16x128xbf16>
    %c64_238 = arith.constant 64 : index
    %c0_239 = arith.constant 0 : index
    %272 = vector.load %arg15[%c64_238, %c0_239] : memref<144x256xbf16, #tpu.memory_space<vmem>>, vector<16x128xbf16>
    tpu.vector_store %arg15[%c64_238, %c0_239], %271 {strides = array<i32>} : memref<144x256xbf16, #tpu.memory_space<vmem>>, vector<16x128xbf16>,
    %c1_240 = arith.constant 1 : index
    %c0_241 = arith.constant 0 : index
    %c128_242 = arith.constant 128 : index
    %273 = vector.load %arg13[%c1_240, %c0_241, %c128_242] : memref<2x16x384xf32, #tpu.memory_space<vmem>>, vector<1x16x128xf32>
    %274 = vector.shape_cast %273 : vector<1x16x128xf32> to vector<16x128xf32>
    %275 = arith.truncf %274 : vector<16x128xf32> to vector<16x128xbf16>
    %c80 = arith.constant 80 : index
    %c0_243 = arith.constant 0 : index
    %276 = vector.load %arg15[%c80, %c0_243] : memref<144x256xbf16, #tpu.memory_space<vmem>>, vector<16x128xbf16>
    tpu.vector_store %arg15[%c80, %c0_243], %275 {strides = array<i32>} : memref<144x256xbf16, #tpu.memory_space<vmem>>, vector<16x128xbf16>,
    %c1_244 = arith.constant 1 : index
    %c0_245 = arith.constant 0 : index
    %c135 = arith.constant 135 : index
    %277 = vector.load %arg13[%c1_244, %c0_245, %c135] : memref<2x16x384xf32, #tpu.memory_space<vmem>>, vector<1x16x128xf32>
    %278 = vector.shape_cast %277 : vector<1x16x128xf32> to vector<16x128xf32>
    %279 = vector.broadcast %0 : vector<1x128xf32> to vector<16x128xf32>
    %280 = arith.mulf %278, %279 : vector<16x128xf32>
    %281 = arith.truncf %280 : vector<16x128xf32> to vector<16x128xbf16>
    %c96 = arith.constant 96 : index
    %c0_246 = arith.constant 0 : index
    %282 = vector.load %arg15[%c96, %c0_246] : memref<144x256xbf16, #tpu.memory_space<vmem>>, vector<16x128xbf16>
    tpu.vector_store %arg15[%c96, %c0_246], %281 {strides = array<i32>} : memref<144x256xbf16, #tpu.memory_space<vmem>>, vector<16x128xbf16>,
    %c0_247 = arith.constant 0 : index
    %c0_248 = arith.constant 0 : index
    %c136 = arith.constant 136 : index
    %283 = vector.load %arg13[%c0_247, %c0_248, %c136] : memref<2x16x384xf32, #tpu.memory_space<vmem>>, vector<1x16x128xf32>
    %284 = vector.shape_cast %283 : vector<1x16x128xf32> to vector<16x128xf32>
    %285 = arith.truncf %284 : vector<16x128xf32> to vector<16x128xbf16>
    %c112 = arith.constant 112 : index
    %c0_249 = arith.constant 0 : index
    %286 = vector.load %arg15[%c112, %c0_249] : memref<144x256xbf16, #tpu.memory_space<vmem>>, vector<16x128xbf16>
    tpu.vector_store %arg15[%c112, %c0_249], %285 {strides = array<i32>} : memref<144x256xbf16, #tpu.memory_space<vmem>>, vector<16x128xbf16>,
    %c1_250 = arith.constant 1 : index
    %c0_251 = arith.constant 0 : index
    %c136_252 = arith.constant 136 : index
    %287 = vector.load %arg13[%c1_250, %c0_251, %c136_252] : memref<2x16x384xf32, #tpu.memory_space<vmem>>, vector<1x16x128xf32>
    %288 = vector.shape_cast %287 : vector<1x16x128xf32> to vector<16x128xf32>
    %289 = arith.truncf %288 : vector<16x128xf32> to vector<16x128xbf16>
    %c128_253 = arith.constant 128 : index
    %c0_254 = arith.constant 0 : index
    %290 = vector.load %arg15[%c128_253, %c0_254] : memref<144x256xbf16, #tpu.memory_space<vmem>>, vector<16x128xbf16>
    tpu.vector_store %arg15[%c128_253, %c0_254], %289 {strides = array<i32>} : memref<144x256xbf16, #tpu.memory_space<vmem>>, vector<16x128xbf16>,
    %c0_255 = arith.constant 0 : index
    %c0_256 = arith.constant 0 : index
    %c120_257 = arith.constant 120 : index
    %291 = vector.load %arg13[%c0_255, %c0_256, %c120_257] : memref<2x16x384xf32, #tpu.memory_space<vmem>>, vector<1x16x128xf32>
    %292 = vector.shape_cast %291 : vector<1x16x128xf32> to vector<16x128xf32>
    %293 = arith.truncf %292 : vector<16x128xf32> to vector<16x128xbf16>
    %c0_258 = arith.constant 0 : index
    %c128_259 = arith.constant 128 : index
    %294 = vector.load %arg15[%c0_258, %c128_259] : memref<144x256xbf16, #tpu.memory_space<vmem>>, vector<16x128xbf16>
    tpu.vector_store %arg15[%c0_258, %c128_259], %293 {strides = array<i32>} : memref<144x256xbf16, #tpu.memory_space<vmem>>, vector<16x128xbf16>,
    %c1_260 = arith.constant 1 : index
    %c0_261 = arith.constant 0 : index
    %c120_262 = arith.constant 120 : index
    %295 = vector.load %arg13[%c1_260, %c0_261, %c120_262] : memref<2x16x384xf32, #tpu.memory_space<vmem>>, vector<1x16x128xf32>
    %296 = vector.shape_cast %295 : vector<1x16x128xf32> to vector<16x128xf32>
    %297 = arith.truncf %296 : vector<16x128xf32> to vector<16x128xbf16>
    %c16_263 = arith.constant 16 : index
    %c128_264 = arith.constant 128 : index
    %298 = vector.load %arg15[%c16_263, %c128_264] : memref<144x256xbf16, #tpu.memory_space<vmem>>, vector<16x128xbf16>
    tpu.vector_store %arg15[%c16_263, %c128_264], %297 {strides = array<i32>} : memref<144x256xbf16, #tpu.memory_space<vmem>>, vector<16x128xbf16>,
    %c0_265 = arith.constant 0 : index
    %c0_266 = arith.constant 0 : index
    %c121 = arith.constant 121 : index
    %299 = vector.load %arg13[%c0_265, %c0_266, %c121] : memref<2x16x384xf32, #tpu.memory_space<vmem>>, vector<1x16x128xf32>
    %300 = vector.shape_cast %299 : vector<1x16x128xf32> to vector<16x128xf32>
    %301 = vector.broadcast %1 : vector<1x128xf32> to vector<16x128xf32>
    %302 = arith.mulf %300, %301 : vector<16x128xf32>
    %303 = arith.truncf %302 : vector<16x128xf32> to vector<16x128xbf16>
    %c32_267 = arith.constant 32 : index
    %c128_268 = arith.constant 128 : index
    %304 = vector.load %arg15[%c32_267, %c128_268] : memref<144x256xbf16, #tpu.memory_space<vmem>>, vector<16x128xbf16>
    tpu.vector_store %arg15[%c32_267, %c128_268], %303 {strides = array<i32>} : memref<144x256xbf16, #tpu.memory_space<vmem>>, vector<16x128xbf16>,
    %c0_269 = arith.constant 0 : index
    %c0_270 = arith.constant 0 : index
    %c128_271 = arith.constant 128 : index
    %305 = vector.load %arg13[%c0_269, %c0_270, %c128_271] : memref<2x16x384xf32, #tpu.memory_space<vmem>>, vector<1x16x128xf32>
    %306 = vector.shape_cast %305 : vector<1x16x128xf32> to vector<16x128xf32>
    %307 = arith.truncf %306 : vector<16x128xf32> to vector<16x128xbf16>
    %c48_272 = arith.constant 48 : index
    %c128_273 = arith.constant 128 : index
    %308 = vector.load %arg15[%c48_272, %c128_273] : memref<144x256xbf16, #tpu.memory_space<vmem>>, vector<16x128xbf16>
    tpu.vector_store %arg15[%c48_272, %c128_273], %307 {strides = array<i32>} : memref<144x256xbf16, #tpu.memory_space<vmem>>, vector<16x128xbf16>,
    %c1_274 = arith.constant 1 : index
    %c0_275 = arith.constant 0 : index
    %c128_276 = arith.constant 128 : index
    %309 = vector.load %arg13[%c1_274, %c0_275, %c128_276] : memref<2x16x384xf32, #tpu.memory_space<vmem>>, vector<1x16x128xf32>
    %310 = vector.shape_cast %309 : vector<1x16x128xf32> to vector<16x128xf32>
    %311 = arith.truncf %310 : vector<16x128xf32> to vector<16x128xbf16>
    %c64_277 = arith.constant 64 : index
    %c128_278 = arith.constant 128 : index
    %312 = vector.load %arg15[%c64_277, %c128_278] : memref<144x256xbf16, #tpu.memory_space<vmem>>, vector<16x128xbf16>
    tpu.vector_store %arg15[%c64_277, %c128_278], %311 {strides = array<i32>} : memref<144x256xbf16, #tpu.memory_space<vmem>>, vector<16x128xbf16>,
    %c0_279 = arith.constant 0 : index
    %c0_280 = arith.constant 0 : index
    %c129 = arith.constant 129 : index
    %313 = vector.load %arg13[%c0_279, %c0_280, %c129] : memref<2x16x384xf32, #tpu.memory_space<vmem>>, vector<1x16x128xf32>
    %314 = vector.shape_cast %313 : vector<1x16x128xf32> to vector<16x128xf32>
    %315 = vector.broadcast %1 : vector<1x128xf32> to vector<16x128xf32>
    %316 = arith.mulf %314, %315 : vector<16x128xf32>
    %317 = arith.truncf %316 : vector<16x128xf32> to vector<16x128xbf16>
    %c80_281 = arith.constant 80 : index
    %c128_282 = arith.constant 128 : index
    %318 = vector.load %arg15[%c80_281, %c128_282] : memref<144x256xbf16, #tpu.memory_space<vmem>>, vector<16x128xbf16>
    tpu.vector_store %arg15[%c80_281, %c128_282], %317 {strides = array<i32>} : memref<144x256xbf16, #tpu.memory_space<vmem>>, vector<16x128xbf16>,
    %c0_283 = arith.constant 0 : index
    %c0_284 = arith.constant 0 : index
    %c136_285 = arith.constant 136 : index
    %319 = vector.load %arg13[%c0_283, %c0_284, %c136_285] : memref<2x16x384xf32, #tpu.memory_space<vmem>>, vector<1x16x128xf32>
    %320 = vector.shape_cast %319 : vector<1x16x128xf32> to vector<16x128xf32>
    %321 = arith.truncf %320 : vector<16x128xf32> to vector<16x128xbf16>
    %c96_286 = arith.constant 96 : index
    %c128_287 = arith.constant 128 : index
    %322 = vector.load %arg15[%c96_286, %c128_287] : memref<144x256xbf16, #tpu.memory_space<vmem>>, vector<16x128xbf16>
    tpu.vector_store %arg15[%c96_286, %c128_287], %321 {strides = array<i32>} : memref<144x256xbf16, #tpu.memory_space<vmem>>, vector<16x128xbf16>,
    %c1_288 = arith.constant 1 : index
    %c0_289 = arith.constant 0 : index
    %c136_290 = arith.constant 136 : index
    %323 = vector.load %arg13[%c1_288, %c0_289, %c136_290] : memref<2x16x384xf32, #tpu.memory_space<vmem>>, vector<1x16x128xf32>
    %324 = vector.shape_cast %323 : vector<1x16x128xf32> to vector<16x128xf32>
    %325 = arith.truncf %324 : vector<16x128xf32> to vector<16x128xbf16>
    %c112_291 = arith.constant 112 : index
    %c128_292 = arith.constant 128 : index
    %326 = vector.load %arg15[%c112_291, %c128_292] : memref<144x256xbf16, #tpu.memory_space<vmem>>, vector<16x128xbf16>
    tpu.vector_store %arg15[%c112_291, %c128_292], %325 {strides = array<i32>} : memref<144x256xbf16, #tpu.memory_space<vmem>>, vector<16x128xbf16>,
    %c0_293 = arith.constant 0 : index
    %c0_294 = arith.constant 0 : index
    %c137 = arith.constant 137 : index
    %327 = vector.load %arg13[%c0_293, %c0_294, %c137] : memref<2x16x384xf32, #tpu.memory_space<vmem>>, vector<1x16x128xf32>
    %328 = vector.shape_cast %327 : vector<1x16x128xf32> to vector<16x128xf32>
    %329 = vector.broadcast %1 : vector<1x128xf32> to vector<16x128xf32>
    %330 = arith.mulf %328, %329 : vector<16x128xf32>
    %331 = arith.truncf %330 : vector<16x128xf32> to vector<16x128xbf16>
    %c128_295 = arith.constant 128 : index
    %c128_296 = arith.constant 128 : index
    %332 = vector.load %arg15[%c128_295, %c128_296] : memref<144x256xbf16, #tpu.memory_space<vmem>>, vector<16x128xbf16>
    tpu.vector_store %arg15[%c128_295, %c128_296], %331 {strides = array<i32>} : memref<144x256xbf16, #tpu.memory_space<vmem>>, vector<16x128xbf16>,
    %c0_297 = arith.constant 0 : index
    %c0_298 = arith.constant 0 : index
    %333 = vector.load %arg8[%c0_297, %c0_298] : memref<8x144xbf16, #tpu.memory_space<vmem>>, vector<8x144xbf16>
    %c0_299 = arith.constant 0 : index
    %c0_300 = arith.constant 0 : index
    %334 = vector.load %arg15[%c0_299, %c0_300] : memref<144x256xbf16, #tpu.memory_space<vmem>>, vector<144x256xbf16>
    %cst_301 = arith.constant dense<0.000000e+00> : vector<8x256xf32>
    %335 = tpu.matmul %333, %334, %cst_301 {dimension_numbers = #tpu.dot_dimension_numbers<[1], [0], [0], [1], [0, 0, 1, 1], [], []>} : vector<8x144xbf16>, vector<144x256xbf16>, vector<8x256xf32> -> vector<8x256xf32>
    %c0_302 = arith.constant 0 : index
    %c0_303 = arith.constant 0 : index
    %336 = vector.load %arg9[%c0_302, %c0_303] : memref<8x1xf32, #tpu.memory_space<vmem>>, vector<8x1xf32>
    %337 = vector.broadcast %336 : vector<8x1xf32> to vector<8x256xf32>
    %338 = arith.mulf %335, %337 : vector<8x256xf32>
    %c0_304 = arith.constant 0 : index
    %c0_305 = arith.constant 0 : index
    %339 = vector.load %arg10[%c0_304, %c0_305] : memref<8x1xf32, #tpu.memory_space<vmem>>, vector<8x1xf32>
    %340 = vector.broadcast %339 : vector<8x1xf32> to vector<8x256xf32>
    %341 = arith.addf %338, %340 : vector<8x256xf32>
    %cst_306 = arith.constant 0.000000e+00 : f32
    %342 = vector.broadcast %cst_306 : f32 to vector<8x256xf32>
    %343 = arith.maximumf %341, %342 : vector<8x256xf32>
    %344 = vector.extract_strided_slice %343 {offsets = [0, 0], sizes = [8, 128], strides = [1, 1]} : vector<8x256xf32> to vector<8x128xf32>
    %c0_307 = arith.constant 0 : index
    %c0_308 = arith.constant 0 : index
    %c0_309 = arith.constant 0 : index
    %c0_310 = arith.constant 0 : index
    %345 = vector.load %arg11[%c0_307, %c0_308, %c0_309, %c0_310] : memref<1x2x8x128xf32, #tpu.memory_space<vmem>>, vector<1x1x8x128xf32>
    %346 = vector.shape_cast %345 : vector<1x1x8x128xf32> to vector<8x128xf32>
    %347 = vector.shape_cast %344 : vector<8x128xf32> to vector<1x1x8x128xf32>
    tpu.vector_store %arg11[%c0_307, %c0_308, %c0_309, %c0_310], %347 {strides = array<i32>} : memref<1x2x8x128xf32, #tpu.memory_space<vmem>>, vector<1x1x8x128xf32>,
    %348 = vector.extract_strided_slice %343 {offsets = [0, 128], sizes = [8, 128], strides = [1, 1]} : vector<8x256xf32> to vector<8x128xf32>
    %c0_311 = arith.constant 0 : index
    %c1_312 = arith.constant 1 : index
    %c0_313 = arith.constant 0 : index
    %c0_314 = arith.constant 0 : index
    %349 = vector.load %arg11[%c0_311, %c1_312, %c0_313, %c0_314] : memref<1x2x8x128xf32, #tpu.memory_space<vmem>>, vector<1x1x8x128xf32>
    %350 = vector.shape_cast %349 : vector<1x1x8x128xf32> to vector<8x128xf32>
    %351 = vector.shape_cast %348 : vector<8x128xf32> to vector<1x1x8x128xf32>
    tpu.vector_store %arg11[%c0_311, %c1_312, %c0_313, %c0_314], %351 {strides = array<i32>} : memref<1x2x8x128xf32, #tpu.memory_space<vmem>>, vector<1x1x8x128xf32>,
    return
  }
  func.func @transform_0(%arg0: i32) -> (i32, i32, i32, i32) {
    %c0_i32 = arith.constant 0 : i32
    %c0_i32_0 = arith.constant 0 : i32
    %c0_i32_1 = arith.constant 0 : i32
    %c0_i32_2 = arith.constant 0 : i32
    return %arg0, %c0_i32, %c0_i32_0, %c0_i32_1 : i32, i32, i32, i32
  }
  func.func @transform_1(%arg0: i32) -> (i32, i32, i32, i32) {
    %c0_i32 = arith.constant 0 : i32
    %c0_i32_0 = arith.constant 0 : i32
    %c0_i32_1 = arith.constant 0 : i32
    %c0_i32_2 = arith.constant 0 : i32
    return %arg0, %c0_i32, %c0_i32_0, %c0_i32_1 : i32, i32, i32, i32
  }
  func.func @transform_2(%arg0: i32) -> (i32, i32) {
    %c0_i32 = arith.constant 0 : i32
    %c0_i32_0 = arith.constant 0 : i32
    %c0_i32_1 = arith.constant 0 : i32
    return %c0_i32, %c0_i32_0 : i32, i32
  }
  func.func @transform_3(%arg0: i32) -> (i32, i32, i32, i32) {
    %c0_i32 = arith.constant 0 : i32
    %c0_i32_0 = arith.constant 0 : i32
    %c0_i32_1 = arith.constant 0 : i32
    %c0_i32_2 = arith.constant 0 : i32
    return %arg0, %c0_i32, %c0_i32_0, %c0_i32_1 : i32, i32, i32, i32
  }
  func.func @transform_4(%arg0: i32) -> (i32, i32) {
    %c0_i32 = arith.constant 0 : i32
    %c0_i32_0 = arith.constant 0 : i32
    %c0_i32_1 = arith.constant 0 : i32
    return %c0_i32, %c0_i32_0 : i32, i32
  }
  func.func @transform_5(%arg0: i32) -> (i32, i32) {
    %c0_i32 = arith.constant 0 : i32
    %c0_i32_0 = arith.constant 0 : i32
    %c0_i32_1 = arith.constant 0 : i32
    return %c0_i32, %c0_i32_0 : i32, i32
  }
  func.func @transform_6(%arg0: i32) -> (i32, i32) {
    %c0_i32 = arith.constant 0 : i32
    %c0_i32_0 = arith.constant 0 : i32
    %c0_i32_1 = arith.constant 0 : i32
    return %c0_i32, %c0_i32_0 : i32, i32
  }
  func.func @transform_7(%arg0: i32) -> (i32, i32) {
    %c0_i32 = arith.constant 0 : i32
    %c0_i32_0 = arith.constant 0 : i32
    %c0_i32_1 = arith.constant 0 : i32
    return %c0_i32, %c0_i32_0 : i32, i32
  }
  func.func @transform_8(%arg0: i32) -> (i32, i32) {
    %c0_i32 = arith.constant 0 : i32
    %c0_i32_0 = arith.constant 0 : i32
    %c0_i32_1 = arith.constant 0 : i32
    return %c0_i32, %c0_i32_0 : i32, i32
  }
  func.func @transform_9(%arg0: i32) -> (i32, i32) {
    %c0_i32 = arith.constant 0 : i32
    %c0_i32_0 = arith.constant 0 : i32
    %c0_i32_1 = arith.constant 0 : i32
    return %c0_i32, %c0_i32_0 : i32, i32
  }
  func.func @transform_10(%arg0: i32) -> (i32, i32, i32, i32) {
    %c0_i32 = arith.constant 0 : i32
    %c0_i32_0 = arith.constant 0 : i32
    %c0_i32_1 = arith.constant 0 : i32
    %c0_i32_2 = arith.constant 0 : i32
    return %arg0, %c0_i32, %c0_i32_0, %c0_i32_1 : i32, i32, i32, i32
  }
}

</mosaic_0001>

<llo_original>
// kernel: tpu_custom_call.1
$region0: #{tpu_custom_call.1}
  #allocation0 [shape = 'u32[]', space=smem, size = 0x4, offset = 0x4, fixed_abs, tag = 'smem constant byte address 0x4 - core index']
  #allocation1 [shape = 'u32[144,128]{1,0:T(1,128)}', space=vmem, size = 0x12000, scoped, tag = 'internal scratch']
  #allocation2 [shape = 'f32[2,18,10,8]{3,2,1,0:T(8,128)}', space=vmem, size = 0x48000, scoped, tag = 'scratch operand']
  #allocation3 [shape = 'f32[2,16,384]{2,1,0:T(8,128)}', space=vmem, size = 0xc000, scoped, tag = 'scratch operand']
  #allocation4 [shape = 'bf16[256,72]{1,0:T(16,128)(2,1)}', space=vmem, size = 0x10000, scoped, tag = 'scratch operand']
  #allocation5 [shape = 'bf16[144,256]{1,0:T(16,128)(2,1)}', space=vmem, size = 0x12000, scoped, tag = 'scratch operand']
  %s0 = inlined_call_operand.hbm [shape: f32[2,8,8,8], index: 0, kind: input, shape index: {}]
  %s1 = inlined_call_operand.hbm [shape: s32[2,8,8,8], index: 1, kind: input, shape index: {}]
  %s2 = inlined_call_operand.vmem [shape: f32[2,128], index: 2, kind: input, shape index: {}]
  %s3 = inlined_call_operand.vmem [shape: f32[2,2,8,128], index: 3, kind: input, shape index: {}]
  %s4 = inlined_call_operand.vmem [shape: bf16[8,72], index: 4, kind: input, shape index: {}]
  %s5 = inlined_call_operand.vmem [shape: f32[8,1], index: 5, kind: input, shape index: {}]
  %s6 = inlined_call_operand.vmem [shape: f32[8,1], index: 6, kind: input, shape index: {}]
  %s7 = inlined_call_operand.vmem [shape: bf16[8,144], index: 7, kind: input, shape index: {}]
  %s8 = inlined_call_operand.vmem [shape: f32[8,1], index: 8, kind: input, shape index: {}]
  %s9 = inlined_call_operand.vmem [shape: f32[8,1], index: 9, kind: input, shape index: {}]
  %s10 = inlined_call_operand.hbm [shape: f32[2,2,8,128], index: 10, kind: output, shape index: {}]
  %s11 = sld [smem:[#allocation0]]
  $region81: #{tpu_custom_call.1} parent=0
    _
  %s13 = ssub.s32 1, %s11
  %s14 = scalar_select 0, %s13, %s11
  $region1: #{tpu_custom_call.1} parent=0
    #allocation6 [shape = 'u8[65536]{0}', space=vmem, size = 0x10000, scoped, tag = 'input window, operand 0']
    #allocation7 [shape = 's32[2]{0}', space=sflag, size = 0x8, scoped, tag = 'scoped memory for tpu_custom_call.1']
    #allocation8 [shape = 's32[2]{0}', space=sflag, size = 0x8, scoped, tag = 'scoped memory for tpu_custom_call.1']
    #allocation9 [shape = 'u8[65536]{0}', space=vmem, size = 0x10000, scoped, tag = 'input window, operand 1']
    #allocation10 [shape = 's32[2]{0}', space=sflag, size = 0x8, scoped, tag = 'scoped memory for tpu_custom_call.1']
    #allocation11 [shape = 'u8[16384]{0}', space=vmem, size = 0x4000, scoped, tag = 'output window, operand 0']
    %15 = vsyncpa [#allocation7], 0
    %s16 = scalar_lea.sflag [#allocation7], 1
    %17 = vsyncpa %s16, 0
    %18 = vsyncpa [#allocation10], 0
    %s19 = scalar_lea.sflag [#allocation10], 1
    %20 = vsyncpa %s19, 0
    %21 = vsyncpa [#allocation8], 0
    %s22 = scalar_lea.sflag [#allocation8], 1
    %23 = vsyncpa %s22, 0
    loop: start=0, step=1, limit=4
    $region2: #{tpu_custom_call.1} parent=1 // loop_pre_header
      _
    $region3: #{tpu_custom_call.1} parent=1 // loop_header
      %s25 = sphi 0, %s29
      %p26 = scmp.ge.s32.totalorder %s25, 4
      %s35 = sphi 0, %s37
      %s38 = sphi 0, %s35
      %s39 = sphi 0, %s38
      %s55 = sphi 0, %s39
      %s61 = sphi 0, %s63
      %s64 = sphi 0, %s61
      %s65 = sphi 0, %s64
      %s81 = sphi 0, %s65
      %s85 = sphi 0, %s85
      %s87 = sphi 0, %s85
      %s88 = sphi 0, %s87
      %s102 = sphi 0, %s88
      %s108 = sphi 0, %s110
      %s111 = sphi 0, %s108
      %s112 = sphi 0, %s111
      %s128 = sphi 0, %s112
      %s132 = sphi 0, %s132
      %s134 = sphi 0, %s132
      %s135 = sphi 0, %s134
      %s149 = sphi 0, %s135
      %s153 = sphi 0, %s153
      %s155 = sphi 0, %s153
      %s156 = sphi 0, %s155
      %s170 = sphi 0, %s156
      %s174 = sphi 0, %s174
      %s176 = sphi 0, %s174
      %s177 = sphi 0, %s176
      %s191 = sphi 0, %s177
      %s195 = sphi 0, %s195
      %s197 = sphi 0, %s195
      %s198 = sphi 0, %s197
      %s212 = sphi 0, %s198
      %s216 = sphi 0, %s216
      %s218 = sphi 0, %s216
      %s219 = sphi 0, %s218
      %s233 = sphi 0, %s219
      %s237 = sphi 0, %s237
      %s239 = sphi 0, %s237
      %s240 = sphi 0, %s239
      %s254 = sphi 0, %s240
      %s260 = sphi 0, %s262
      %s263 = sphi 0, %s260
      %s264 = sphi 0, %s263
      %s280 = sphi 0, %s264
    $region4: #{tpu_custom_call.1} parent=1 // loop_header_branch
      %28 = sbr.rel (%p26) target = $region8
    $region5: #{tpu_custom_call.1} parent=1 // loop_body
      %s30 = ssub.s32 %s25, 1
      %s31 = ssub.s32 %s25, 2
      %s32 = sadd.s32 %s25, 1
      %s33 = ssub.s32 %s25, %s32
      %p34 = scmp.eq.s32.totalorder %s33, 0
      %s36 = sadd.s32 %s35, 1
      %s37 = scalar_select %p34, %s35, %s36
      %p40 = pneg %p34
      %p41 = scmp.eq.s32.totalorder %s25, 1
      %p42 = por %p40, %p41
      %p43 = scmp.ne.s32.totalorder %s35, %s38
      %p44 = scmp.eq.s32.totalorder %s25, 0
      %p45 = por %p43, %p44
      %p46 = scmp.ne.s32.totalorder %s35, %s38
      %p47 = scmp.eq.s32.totalorder %s30, 1
      %p48 = por %p46, %p47
      %p49 = scmp.ne.s32.totalorder %s38, %s39
      %p50 = scmp.eq.s32.totalorder %s30, 0
      %p51 = por %p49, %p50
      %p52 = scmp.ne.s32.totalorder %s38, %s39
      %p53 = scmp.eq.s32.totalorder %s31, 1
      %p54 = por %p52, %p53
      %p56 = scmp.ne.s32.totalorder %s39, %s55
      %p57 = scmp.eq.s32.totalorder %s31, 0
      %p58 = por %p56, %p57
      %s59 = ssub.s32 %s25, %s32
      %p60 = scmp.eq.s32.totalorder %s59, 0
      %s62 = sadd.s32 %s61, 1
      %s63 = scalar_select %p60, %s61, %s62
      %p66 = pneg %p60
      %p67 = scmp.eq.s32.totalorder %s25, 1
      %p68 = por %p66, %p67
      %p69 = scmp.ne.s32.totalorder %s61, %s64
      %p70 = scmp.eq.s32.totalorder %s25, 0
      %p71 = por %p69, %p70
      %p72 = scmp.ne.s32.totalorder %s61, %s64
      %p73 = scmp.eq.s32.totalorder %s30, 1
      %p74 = por %p72, %p73
      %p75 = scmp.ne.s32.totalorder %s64, %s65
      %p76 = scmp.eq.s32.totalorder %s30, 0
      %p77 = por %p75, %p76
      %p78 = scmp.ne.s32.totalorder %s64, %s65
      %p79 = scmp.eq.s32.totalorder %s31, 1
      %p80 = por %p78, %p79
      %p82 = scmp.ne.s32.totalorder %s65, %s81
      %p83 = scmp.eq.s32.totalorder %s31, 0
      %p84 = por %p82, %p83
      %s86 = sadd.s32 %s85, 1
      %p89 = scmp.eq.s32.totalorder %s25, 1
      %p90 = scmp.ne.s32.totalorder %s85, %s87
      %p91 = scmp.eq.s32.totalorder %s25, 0
      %p92 = por %p90, %p91
      %p93 = scmp.ne.s32.totalorder %s85, %s87
      %p94 = scmp.eq.s32.totalorder %s30, 1
      %p95 = por %p93, %p94
      %p96 = scmp.ne.s32.totalorder %s87, %s88
      %p97 = scmp.eq.s32.totalorder %s30, 0
      %p98 = por %p96, %p97
      %p99 = scmp.ne.s32.totalorder %s87, %s88
      %p100 = scmp.eq.s32.totalorder %s31, 1
      %p101 = por %p99, %p100
      %p103 = scmp.ne.s32.totalorder %s88, %s102
      %p104 = scmp.eq.s32.totalorder %s31, 0
      %p105 = por %p103, %p104
      %s106 = ssub.s32 %s25, %s32
      %p107 = scmp.eq.s32.totalorder %s106, 0
      %s109 = sadd.s32 %s108, 1
      %s110 = scalar_select %p107, %s108, %s109
      %p113 = pneg %p107
      %p114 = scmp.eq.s32.totalorder %s25, 1
      %p115 = por %p113, %p114
      %p116 = scmp.ne.s32.totalorder %s108, %s111
      %p117 = scmp.eq.s32.totalorder %s25, 0
      %p118 = por %p116, %p117
      %p119 = scmp.ne.s32.totalorder %s108, %s111
      %p120 = scmp.eq.s32.totalorder %s30, 1
      %p121 = por %p119, %p120
      %p122 = scmp.ne.s32.totalorder %s111, %s112
      %p123 = scmp.eq.s32.totalorder %s30, 0
      %p124 = por %p122, %p123
      %p125 = scmp.ne.s32.totalorder %s111, %s112
      %p126 = scmp.eq.s32.totalorder %s31, 1
      %p127 = por %p125, %p126
      %p129 = scmp.ne.s32.totalorder %s112, %s128
      %p130 = scmp.eq.s32.totalorder %s31, 0
      %p131 = por %p129, %p130
      %s133 = sadd.s32 %s132, 1
      %p136 = scmp.eq.s32.totalorder %s25, 1
      %p137 = scmp.ne.s32.totalorder %s132, %s134
      %p138 = scmp.eq.s32.totalorder %s25, 0
      %p139 = por %p137, %p138
      %p140 = scmp.ne.s32.totalorder %s132, %s134
      %p141 = scmp.eq.s32.totalorder %s30, 1
      %p142 = por %p140, %p141
      %p143 = scmp.ne.s32.totalorder %s134, %s135
      %p144 = scmp.eq.s32.totalorder %s30, 0
      %p145 = por %p143, %p144
      %p146 = scmp.ne.s32.totalorder %s134, %s135
      %p147 = scmp.eq.s32.totalorder %s31, 1
      %p148 = por %p146, %p147
      %p150 = scmp.ne.s32.totalorder %s135, %s149
      %p151 = scmp.eq.s32.totalorder %s31, 0
      %p152 = por %p150, %p151
      %s154 = sadd.s32 %s153, 1
      %p157 = scmp.eq.s32.totalorder %s25, 1
      %p158 = scmp.ne.s32.totalorder %s153, %s155
      %p159 = scmp.eq.s32.totalorder %s25, 0
      %p160 = por %p158, %p159
      %p161 = scmp.ne.s32.totalorder %s153, %s155
      %p162 = scmp.eq.s32.totalorder %s30, 1
      %p163 = por %p161, %p162
      %p164 = scmp.ne.s32.totalorder %s155, %s156
      %p165 = scmp.eq.s32.totalorder %s30, 0
      %p166 = por %p164, %p165
      %p167 = scmp.ne.s32.totalorder %s155, %s156
      %p168 = scmp.eq.s32.totalorder %s31, 1
      %p169 = por %p167, %p168
      %p171 = scmp.ne.s32.totalorder %s156, %s170
      %p172 = scmp.eq.s32.totalorder %s31, 0
      %p173 = por %p171, %p172
      %s175 = sadd.s32 %s174, 1
      %p178 = scmp.eq.s32.totalorder %s25, 1
      %p179 = scmp.ne.s32.totalorder %s174, %s176
      %p180 = scmp.eq.s32.totalorder %s25, 0
      %p181 = por %p179, %p180
      %p182 = scmp.ne.s32.totalorder %s174, %s176
      %p183 = scmp.eq.s32.totalorder %s30, 1
      %p184 = por %p182, %p183
      %p185 = scmp.ne.s32.totalorder %s176, %s177
      %p186 = scmp.eq.s32.totalorder %s30, 0
      %p187 = por %p185, %p186
      %p188 = scmp.ne.s32.totalorder %s176, %s177
      %p189 = scmp.eq.s32.totalorder %s31, 1
      %p190 = por %p188, %p189
      %p192 = scmp.ne.s32.totalorder %s177, %s191
      %p193 = scmp.eq.s32.totalorder %s31, 0
      %p194 = por %p192, %p193
      %s196 = sadd.s32 %s195, 1
      %p199 = scmp.eq.s32.totalorder %s25, 1
      %p200 = scmp.ne.s32.totalorder %s195, %s197
      %p201 = scmp.eq.s32.totalorder %s25, 0
      %p202 = por %p200, %p201
      %p203 = scmp.ne.s32.totalorder %s195, %s197
      %p204 = scmp.eq.s32.totalorder %s30, 1
      %p205 = por %p203, %p204
      %p206 = scmp.ne.s32.totalorder %s197, %s198
      %p207 = scmp.eq.s32.totalorder %s30, 0
      %p208 = por %p206, %p207
      %p209 = scmp.ne.s32.totalorder %s197, %s198
      %p210 = scmp.eq.s32.totalorder %s31, 1
      %p211 = por %p209, %p210
      %p213 = scmp.ne.s32.totalorder %s198, %s212
      %p214 = scmp.eq.s32.totalorder %s31, 0
      %p215 = por %p213, %p214
      %s217 = sadd.s32 %s216, 1
      %p220 = scmp.eq.s32.totalorder %s25, 1
      %p221 = scmp.ne.s32.totalorder %s216, %s218
      %p222 = scmp.eq.s32.totalorder %s25, 0
      %p223 = por %p221, %p222
      %p224 = scmp.ne.s32.totalorder %s216, %s218
      %p225 = scmp.eq.s32.totalorder %s30, 1
      %p226 = por %p224, %p225
      %p227 = scmp.ne.s32.totalorder %s218, %s219
      %p228 = scmp.eq.s32.totalorder %s30, 0
      %p229 = por %p227, %p228
      %p230 = scmp.ne.s32.totalorder %s218, %s219
      %p231 = scmp.eq.s32.totalorder %s31, 1
      %p232 = por %p230, %p231
      %p234 = scmp.ne.s32.totalorder %s219, %s233
      %p235 = scmp.eq.s32.totalorder %s31, 0
      %p236 = por %p234, %p235
      %s238 = sadd.s32 %s237, 1
      %p241 = scmp.eq.s32.totalorder %s25, 1
      %p242 = scmp.ne.s32.totalorder %s237, %s239
      %p243 = scmp.eq.s32.totalorder %s25, 0
      %p244 = por %p242, %p243
      %p245 = scmp.ne.s32.totalorder %s237, %s239
      %p246 = scmp.eq.s32.totalorder %s30, 1
      %p247 = por %p245, %p246
      %p248 = scmp.ne.s32.totalorder %s239, %s240
      %p249 = scmp.eq.s32.totalorder %s30, 0
      %p250 = por %p248, %p249
      %p251 = scmp.ne.s32.totalorder %s239, %s240
      %p252 = scmp.eq.s32.totalorder %s31, 1
      %p253 = por %p251, %p252
      %p255 = scmp.ne.s32.totalorder %s240, %s254
      %p256 = scmp.eq.s32.totalorder %s31, 0
      %p257 = por %p255, %p256
      %s258 = ssub.s32 %s25, %s32
      %p259 = scmp.eq.s32.totalorder %s258, 0
      %s261 = sadd.s32 %s260, 1
      %s262 = scalar_select %p259, %s260, %s261
      %p265 = pneg %p259
      %p266 = scmp.eq.s32.totalorder %s25, 1
      %p267 = por %p265, %p266
      %p268 = scmp.ne.s32.totalorder %s260, %s263
      %p269 = scmp.eq.s32.totalorder %s25, 0
      %p270 = por %p268, %p269
      %p271 = scmp.ne.s32.totalorder %s260, %s263
      %p272 = scmp.eq.s32.totalorder %s30, 1
      %p273 = por %p271, %p272
      %p274 = scmp.ne.s32.totalorder %s263, %s264
      %p275 = scmp.eq.s32.totalorder %s30, 0
      %p276 = por %p274, %p275
      %p277 = scmp.ne.s32.totalorder %s263, %s264
      %p278 = scmp.eq.s32.totalorder %s31, 1
      %p279 = por %p277, %p278
      %p281 = scmp.ne.s32.totalorder %s264, %s280
      %p282 = scmp.eq.s32.totalorder %s31, 0
      %p283 = por %p281, %p282
      %p284 = scmp.le.s32.totalorder 1, %s25
      %p285 = scmp.lt.s32.totalorder %s25, 3
      %p286 = pnand %p284, %p285
      %p287 = pneg %p286
      // Predicated region
      $region9: #{tpu_custom_call.1} parent=5 // pred_check
        _
      $region10: #{tpu_custom_call.1} parent=5 // pred_check_branch
        %289 = sbr.rel (%p286) target = $region12
      $region11: #{tpu_custom_call.1} parent=5 // pred_region
        %s290 = ssub.s32 %s25, 1
        // Predicated region
        $region13: #{tpu_custom_call.1} parent=11 // pred_check
          %p291 = pneg %p98
        $region14: #{tpu_custom_call.1} parent=11 // pred_check_branch
          %293 = sbr.rel (%p291) target = $region16
        $region15: #{tpu_custom_call.1} parent=11 // pred_region
          _
        $region16: #{tpu_custom_call.1} parent=11 // pred_fallthru
          _
        // Predicated region
        $region17: #{tpu_custom_call.1} parent=11 // pred_check
          %p294 = pneg %p145
        $region18: #{tpu_custom_call.1} parent=11 // pred_check_branch
          %296 = sbr.rel (%p294) target = $region20
        $region19: #{tpu_custom_call.1} parent=11 // pred_region
          _
        $region20: #{tpu_custom_call.1} parent=11 // pred_fallthru
          _
        // Predicated region
        $region21: #{tpu_custom_call.1} parent=11 // pred_check
          %p297 = pneg %p166
        $region22: #{tpu_custom_call.1} parent=11 // pred_check_branch
          %299 = sbr.rel (%p297) target = $region24
        $region23: #{tpu_custom_call.1} parent=11 // pred_region
          _
        $region24: #{tpu_custom_call.1} parent=11 // pred_fallthru
          _
        // Predicated region
        $region25: #{tpu_custom_call.1} parent=11 // pred_check
          %p300 = pneg %p187
        $region26: #{tpu_custom_call.1} parent=11 // pred_check_branch
          %302 = sbr.rel (%p300) target = $region28
        $region27: #{tpu_custom_call.1} parent=11 // pred_region
          _
        $region28: #{tpu_custom_call.1} parent=11 // pred_fallthru
          _
        // Predicated region
        $region29: #{tpu_custom_call.1} parent=11 // pred_check
          %p303 = pneg %p208
        $region30: #{tpu_custom_call.1} parent=11 // pred_check_branch
          %305 = sbr.rel (%p303) target = $region32
        $region31: #{tpu_custom_call.1} parent=11 // pred_region
          _
        $region32: #{tpu_custom_call.1} parent=11 // pred_fallthru
          _
        // Predicated region
        $region33: #{tpu_custom_call.1} parent=11 // pred_check
          %p306 = pneg %p229
        $region34: #{tpu_custom_call.1} parent=11 // pred_check_branch
          %308 = sbr.rel (%p306) target = $region36
        $region35: #{tpu_custom_call.1} parent=11 // pred_region
          _
        $region36: #{tpu_custom_call.1} parent=11 // pred_fallthru
          _
        // Predicated region
        $region37: #{tpu_custom_call.1} parent=11 // pred_check
          %p309 = pneg %p250
        $region38: #{tpu_custom_call.1} parent=11 // pred_check_branch
          %311 = sbr.rel (%p309) target = $region40
        $region39: #{tpu_custom_call.1} parent=11 // pred_region
          _
        $region40: #{tpu_custom_call.1} parent=11 // pred_fallthru
          _
      $region12: #{tpu_custom_call.1} parent=5 // pred_fallthru
        _
      %p312 = scmp.lt.s32.totalorder %s25, 2
      // Predicated region
      $region41: #{tpu_custom_call.1} parent=5 // pred_check
        %p313 = pneg %p312
      $region42: #{tpu_custom_call.1} parent=5 // pred_check_branch
        %315 = sbr.rel (%p313) target = $region44
      $region43: #{tpu_custom_call.1} parent=5 // pred_region
        // Predicated region
        $region45: #{tpu_custom_call.1} parent=43 // pred_check
          %p316 = pneg %p45
        $region46: #{tpu_custom_call.1} parent=43 // pred_check_branch
          %318 = sbr.rel (%p316) target = $region48
        $region47: #{tpu_custom_call.1} parent=43 // pred_region
          %s319 = sand.u32 %s35, 1
          %s320 = scalar_lea.sflag [#allocation7], %s319
          %s321 = sand.u32 %s35, 1
          %s322 = smul.addr %s321, 64
          %s323 = scalar_lea.vmem [#allocation6], %s322
          %s325 = ssub.s32 1024, 1024
          %326 = vsyncadd %s320, %s325
          %s327 = smul.addr %s25, 8
          %s328 = smul.addr %s327, 128
          %s329 = scalar_lea.hbm %s0, %s328
          %s330 = sshll.u32 %s323, 4
          %s331 = int_to_ptr.vmem [resolvable:$true] %s330
          %336 = dma.hbm_to_vmem [thread:$0]  %s329, 1024, %s331, %s320, 128, 128, 8
        $region48: #{tpu_custom_call.1} parent=43 // pred_fallthru
          _
        // Predicated region
        $region49: #{tpu_custom_call.1} parent=43 // pred_check
          %p337 = pneg %p71
        $region50: #{tpu_custom_call.1} parent=43 // pred_check_branch
          %339 = sbr.rel (%p337) target = $region52
        $region51: #{tpu_custom_call.1} parent=43 // pred_region
          %s340 = sand.u32 %s61, 1
          %s341 = scalar_lea.sflag [#allocation10], %s340
          %s342 = sand.u32 %s61, 1
          %s343 = smul.addr %s342, 64
          %s344 = scalar_lea.vmem [#allocation9], %s343
          %s346 = ssub.s32 1024, 1024
          %347 = vsyncadd %s341, %s346
          %s348 = smul.addr %s25, 8
          %s349 = smul.addr %s348, 128
          %s350 = scalar_lea.hbm %s1, %s349
          %s351 = sshll.u32 %s344, 4
          %s352 = int_to_ptr.vmem [resolvable:$true] %s351
          %357 = dma.hbm_to_vmem [thread:$0]  %s350, 1024, %s352, %s341, 128, 128, 8
        $region52: #{tpu_custom_call.1} parent=43 // pred_fallthru
          _
        // Predicated region
        $region53: #{tpu_custom_call.1} parent=43 // pred_check
          %p358 = pneg %p118
        $region54: #{tpu_custom_call.1} parent=43 // pred_check_branch
          %360 = sbr.rel (%p358) target = $region56
        $region55: #{tpu_custom_call.1} parent=43 // pred_region
          %p361 = scmp.lt.s32.totalorder %s25, 1
          %s362 = scalar_select %p361, %s25, 1
          %s363 = smul.addr %s362, 2
          %s364 = smul.addr %s363, 8
          %s365 = scalar_lea.vmem %s3, %s364
        $region56: #{tpu_custom_call.1} parent=43 // pred_fallthru
          _
      $region44: #{tpu_custom_call.1} parent=5 // pred_fallthru
        _
      %p366 = scmp.le.s32.totalorder 1, %s25
      %p367 = scmp.lt.s32.totalorder %s25, 3
      %p368 = pnand %p366, %p367
      %p369 = pneg %p368
      // Predicated region
      $region57: #{tpu_custom_call.1} parent=5 // pred_check
        _
      $region58: #{tpu_custom_call.1} parent=5 // pred_check_branch
        %371 = sbr.rel (%p368) target = $region60
      $region59: #{tpu_custom_call.1} parent=5 // pred_region
        %s372 = ssub.s32 %s25, 1
        %s373 = sand.u32 %s38, 1
        %s374 = scalar_lea.sflag [#allocation7], %s373
        %s375 = sand.u32 %s38, 1
        %s376 = smul.addr %s375, 64
        %s377 = scalar_lea.vmem [#allocation6], %s376
        // Predicated region
        $region61: #{tpu_custom_call.1} parent=59 // pred_check
          %p378 = pneg %p51
        $region62: #{tpu_custom_call.1} parent=59 // pred_check_branch
          %380 = sbr.rel (%p378) target = $region64
        $region63: #{tpu_custom_call.1} parent=59 // pred_region
          %381 = dma.done %s374, 1024
        $region64: #{tpu_custom_call.1} parent=59 // pred_fallthru
          _
        %s382 = sand.u32 %s64, 1
        %s383 = scalar_lea.sflag [#allocation10], %s382
        %s384 = sand.u32 %s64, 1
        %s385 = smul.addr %s384, 64
        %s386 = scalar_lea.vmem [#allocation9], %s385
        // Predicated region
        $region65: #{tpu_custom_call.1} parent=59 // pred_check
          %p387 = pneg %p77
        $region66: #{tpu_custom_call.1} parent=59 // pred_check_branch
          %389 = sbr.rel (%p387) target = $region68
        $region67: #{tpu_custom_call.1} parent=59 // pred_region
          %390 = dma.done %s383, 1024
        $region68: #{tpu_custom_call.1} parent=59 // pred_fallthru
          _
        %s391 = sand.u32 %s38, 1
        %s392 = scalar_lea.sflag [#allocation7], %s391
        %s393 = sand.u32 %s38, 1
        %s394 = smul.addr %s393, 64
        %s395 = scalar_lea.vmem [#allocation6], %s394
        %p396 = pneg %p51
        %p397 = pneg %p48
        %s398 = sand.u32 %s64, 1
        %s399 = scalar_lea.sflag [#allocation10], %s398
        %s400 = sand.u32 %s64, 1
        %s401 = smul.addr %s400, 64
        %s402 = scalar_lea.vmem [#allocation9], %s401
        %p403 = pneg %p77
        %p404 = pneg %p74
        %p405 = pneg %p98
        %p406 = pneg %p95
        %p407 = scmp.lt.s32.totalorder %s30, 1
        %s408 = scalar_select %p407, %s30, 1
        %s409 = smul.addr %s408, 2
        %s410 = smul.addr %s409, 8
        %s411 = scalar_lea.vmem %s3, %s410
        %p412 = pneg %p124
        %p413 = pneg %p121
        %p414 = pneg %p145
        %p415 = pneg %p142
        %p416 = pneg %p166
        %p417 = pneg %p163
        %p418 = pneg %p187
        %p419 = pneg %p184
        %p420 = pneg %p208
        %p421 = pneg %p205
        %p422 = pneg %p229
        %p423 = pneg %p226
        %p424 = pneg %p250
        %p425 = pneg %p247
        %p426 = pneg %p276
        %p427 = pneg %p273
        %s428 = sand.u32 %s263, 1
        %s429 = scalar_lea.sflag [#allocation8], %s428
        %s430 = sand.u32 %s263, 1
        %s431 = smul.addr %s430, 16
        %s432 = scalar_lea.vmem [#allocation11], %s431
        %p433 = scmp.lt.s32.totalorder %s30, 1
        %s434 = scalar_select %p433, %s30, 1
        %s435 = smul.addr %s434, 2
        %s436 = smul.addr %s435, 8
        %s437 = scalar_lea.vmem %s3, %s436
        %v439 = vld [vmem:[%s2] sm:$0x1]
        %v440 = vld [vmem:[%s2 + $0x1] sm:$0x1]
        %v441 = vld [vmem:[%s377] sm:$0xff]
        %v442 = vld [vmem:[%s377 + $0x8] sm:$0xff]
        %v443 = vld [vmem:[%s377 + $0x10] sm:$0xff]
        %v444 = vld [vmem:[%s377 + $0x18] sm:$0xff]
        %v445 = vld [vmem:[%s377 + $0x20] sm:$0xff]
        %v446 = vld [vmem:[%s377 + $0x28] sm:$0xff]
        %v447 = vld [vmem:[%s377 + $0x30] sm:$0xff]
        %v448 = vld [vmem:[%s377 + $0x38] sm:$0xff]
        %v449 = vld [vmem:[%s386] sm:$0xff]
        %v450 = vld [vmem:[%s386 + $0x8] sm:$0xff]
        %v451 = vld [vmem:[%s386 + $0x10] sm:$0xff]
        %v452 = vld [vmem:[%s386 + $0x18] sm:$0xff]
        %v453 = vld [vmem:[%s386 + $0x20] sm:$0xff]
        %v454 = vld [vmem:[%s386 + $0x28] sm:$0xff]
        %v455 = vld [vmem:[%s386 + $0x30] sm:$0xff]
        %v456 = vld [vmem:[%s386 + $0x38] sm:$0xff]
        %v457 = vlaneseq
        %v458 = vshrl.u32 %v457, 7
        %vm459 = vcmask 64512
        %460 = vst.msk [vmem:[#allocation2] sm:$0xff] %vm459, 0.0
        %vm461 = vcmask 58368
        %462 = vst.msk [vmem:[#allocation2 + $0x8] sm:$0x3] %vm461, 0.0
        %s463 = scalar_lea.vmem [#allocation2], 272
        %464 = vst.msk [vmem:[%s463] sm:$0xff] %vm459, 0.0
        %465 = vst.msk [vmem:[%s463 + $0x8] sm:$0x3] %vm461, 0.0
        %vm466 = vcmask 57344
        %467 = vst.msk [vmem:[#allocation2] sm:$0x1] %vm466, 0.0
        %468 = vst.msk [vmem:[#allocation2 + $0x10] sm:$0x1] %vm466, 0.0
        %469 = vst.msk [vmem:[#allocation2 + $0x20] sm:$0x1] %vm466, 0.0
        %470 = vst.msk [vmem:[#allocation2 + $0x30] sm:$0x1] %vm466, 0.0
        %471 = vst.msk [vmem:[#allocation2 + $0x40] sm:$0x1] %vm466, 0.0
        %472 = vst.msk [vmem:[#allocation2 + $0x50] sm:$0x1] %vm466, 0.0
        %473 = vst.msk [vmem:[#allocation2 + $0x60] sm:$0x1] %vm466, 0.0
        %474 = vst.msk [vmem:[#allocation2 + $0x70] sm:$0x1] %vm466, 0.0
        %475 = vst.msk [vmem:[#allocation2 + $0x80] sm:$0x1] %vm466, 0.0
        %476 = vst.msk [vmem:[#allocation2 + $0x90] sm:$0x1] %vm466, 0.0
        %477 = vst.msk [vmem:[#allocation2 + $0xa0] sm:$0x1] %vm466, 0.0
        %478 = vst.msk [vmem:[#allocation2 + $0xb0] sm:$0x1] %vm466, 0.0
        %479 = vst.msk [vmem:[#allocation2 + $0xc0] sm:$0x1] %vm466, 0.0
        %480 = vst.msk [vmem:[#allocation2 + $0xd0] sm:$0x1] %vm466, 0.0
        %481 = vst.msk [vmem:[#allocation2 + $0xe0] sm:$0x1] %vm466, 0.0
        %482 = vst.msk [vmem:[#allocation2 + $0xf0] sm:$0x1] %vm466, 0.0
        %483 = vst.msk [vmem:[#allocation2 + $0x100] sm:$0x1] %vm466, 0.0
        %484 = vst.msk [vmem:[#allocation2 + $0x110] sm:$0x1] %vm466, 0.0
        %485 = vst.msk [vmem:[#allocation2 + $0x9] sm:$0x1] %vm466, 0.0
        %486 = vst.msk [vmem:[#allocation2 + $0x19] sm:$0x1] %vm466, 0.0
        %487 = vst.msk [vmem:[#allocation2 + $0x29] sm:$0x1] %vm466, 0.0
        %488 = vst.msk [vmem:[#allocation2 + $0x39] sm:$0x1] %vm466, 0.0
        %489 = vst.msk [vmem:[#allocation2 + $0x49] sm:$0x1] %vm466, 0.0
        %490 = vst.msk [vmem:[#allocation2 + $0x59] sm:$0x1] %vm466, 0.0
        %491 = vst.msk [vmem:[#allocation2 + $0x69] sm:$0x1] %vm466, 0.0
        %492 = vst.msk [vmem:[#allocation2 + $0x79] sm:$0x1] %vm466, 0.0
        %493 = vst.msk [vmem:[#allocation2 + $0x89] sm:$0x1] %vm466, 0.0
        %494 = vst.msk [vmem:[#allocation2 + $0x99] sm:$0x1] %vm466, 0.0
        %495 = vst.msk [vmem:[#allocation2 + $0xa9] sm:$0x1] %vm466, 0.0
        %496 = vst.msk [vmem:[#allocation2 + $0xb9] sm:$0x1] %vm466, 0.0
        %497 = vst.msk [vmem:[#allocation2 + $0xc9] sm:$0x1] %vm466, 0.0
        %498 = vst.msk [vmem:[#allocation2 + $0xd9] sm:$0x1] %vm466, 0.0
        %499 = vst.msk [vmem:[#allocation2 + $0xe9] sm:$0x1] %vm466, 0.0
        %500 = vst.msk [vmem:[#allocation2 + $0xf9] sm:$0x1] %vm466, 0.0
        %501 = vst.msk [vmem:[#allocation2 + $0x109] sm:$0x1] %vm466, 0.0
        %502 = vst.msk [vmem:[#allocation2 + $0x119] sm:$0x1] %vm466, 0.0
        %v503 = vmul.u32 %v458, 2
        %v504 = vadd.s32 %v503, 32
        %v505 = vadd.s32 %v503, 64
        %v506 = vadd.s32 %v503, 96
        %v507 = vadd.s32 %v503, 128
        %v508 = vadd.s32 %v503, 160
        %v509 = vadd.s32 %v503, 192
        %v510 = vadd.s32 %v503, 224
        %vm511 = vcmp.eq.s32.totalorder %v449, %v503
        %vm512 = vcmp.eq.s32.totalorder %v450, %v504
        %vm513 = vcmp.eq.s32.totalorder %v451, %v505
        %vm514 = vcmp.eq.s32.totalorder %v452, %v506
        %vm515 = vcmp.eq.s32.totalorder %v453, %v507
        %vm516 = vcmp.eq.s32.totalorder %v454, %v508
        %vm517 = vcmp.eq.s32.totalorder %v455, %v509
        %vm518 = vcmp.eq.s32.totalorder %v456, %v510
        %v519 = vsel %vm511, %v441, 0.0
        %v520 = vsel %vm512, %v442, 0.0
        %v521 = vsel %vm513, %v443, 0.0
        %v522 = vsel %vm514, %v444, 0.0
        %v523 = vsel %vm515, %v445, 0.0
        %v524 = vsel %vm516, %v446, 0.0
        %v525 = vsel %vm517, %v447, 0.0
        %v526 = vsel %vm518, %v448, 0.0
        %v527 = vadd.s32 %v503, 16
        %v528 = vadd.s32 %v503, 48
        %v529 = vadd.s32 %v503, 80
        %v530 = vadd.s32 %v503, 112
        %v531 = vadd.s32 %v503, 144
        %v532 = vadd.s32 %v503, 176
        %v533 = vadd.s32 %v503, 208
        %v534 = vadd.s32 %v503, 240
        %vm535 = vcmp.eq.s32.totalorder %v449, %v527
        %vm536 = vcmp.eq.s32.totalorder %v450, %v528
        %vm537 = vcmp.eq.s32.totalorder %v451, %v529
        %vm538 = vcmp.eq.s32.totalorder %v452, %v530
        %vm539 = vcmp.eq.s32.totalorder %v453, %v531
        %vm540 = vcmp.eq.s32.totalorder %v454, %v532
        %vm541 = vcmp.eq.s32.totalorder %v455, %v533
        %vm542 = vcmp.eq.s32.totalorder %v456, %v534
        %v543 = vsel %vm535, %v441, 0.0
        %v544 = vsel %vm536, %v442, 0.0
        %v545 = vsel %vm537, %v443, 0.0
        %v546 = vsel %vm538, %v444, 0.0
        %v547 = vsel %vm539, %v445, 0.0
        %v548 = vsel %vm540, %v446, 0.0
        %v549 = vsel %vm541, %v447, 0.0
        %v550 = vsel %vm542, %v448, 0.0
        %s551 = scalar_lea.vmem [#allocation2], 16
        %552 = vst.msk [vmem:[%s551 + $0x1] sm:$0xff] %vm459, %v519
        %553 = vst.msk [vmem:[%s551 + $0x11] sm:$0xff] %vm459, %v543
        %554 = vst.msk [vmem:[%s551 + $0x21] sm:$0xff] %vm459, %v520
        %555 = vst.msk [vmem:[%s551 + $0x31] sm:$0xff] %vm459, %v544
        %556 = vst.msk [vmem:[%s551 + $0x41] sm:$0xff] %vm459, %v521
        %557 = vst.msk [vmem:[%s551 + $0x51] sm:$0xff] %vm459, %v545
        %558 = vst.msk [vmem:[%s551 + $0x61] sm:$0xff] %vm459, %v522
        %559 = vst.msk [vmem:[%s551 + $0x71] sm:$0xff] %vm459, %v546
        %560 = vst.msk [vmem:[%s551 + $0x81] sm:$0xff] %vm459, %v523
        %561 = vst.msk [vmem:[%s551 + $0x91] sm:$0xff] %vm459, %v547
        %562 = vst.msk [vmem:[%s551 + $0xa1] sm:$0xff] %vm459, %v524
        %563 = vst.msk [vmem:[%s551 + $0xb1] sm:$0xff] %vm459, %v548
        %564 = vst.msk [vmem:[%s551 + $0xc1] sm:$0xff] %vm459, %v525
        %565 = vst.msk [vmem:[%s551 + $0xd1] sm:$0xff] %vm459, %v549
        %566 = vst.msk [vmem:[%s551 + $0xe1] sm:$0xff] %vm459, %v526
        %567 = vst.msk [vmem:[%s551 + $0xf1] sm:$0xff] %vm459, %v550
        %s568 = scalar_lea.vmem [#allocation2], 288
        %569 = vst.msk [vmem:[%s568] sm:$0xff] %vm459, 0.0
        %570 = vst.msk [vmem:[%s568 + $0x8] sm:$0x3] %vm461, 0.0
        %s571 = scalar_lea.vmem [#allocation2], 560
        %572 = vst.msk [vmem:[%s571] sm:$0xff] %vm459, 0.0
        %573 = vst.msk [vmem:[%s571 + $0x8] sm:$0x3] %vm461, 0.0
        %574 = vst.msk [vmem:[%s568] sm:$0x1] %vm466, 0.0
        %575 = vst.msk [vmem:[%s568 + $0x10] sm:$0x1] %vm466, 0.0
        %576 = vst.msk [vmem:[%s568 + $0x20] sm:$0x1] %vm466, 0.0
        %577 = vst.msk [vmem:[%s568 + $0x30] sm:$0x1] %vm466, 0.0
        %578 = vst.msk [vmem:[%s568 + $0x40] sm:$0x1] %vm466, 0.0
        %579 = vst.msk [vmem:[%s568 + $0x50] sm:$0x1] %vm466, 0.0
        %580 = vst.msk [vmem:[%s568 + $0x60] sm:$0x1] %vm466, 0.0
        %581 = vst.msk [vmem:[%s568 + $0x70] sm:$0x1] %vm466, 0.0
        %582 = vst.msk [vmem:[%s568 + $0x80] sm:$0x1] %vm466, 0.0
        %583 = vst.msk [vmem:[%s568 + $0x90] sm:$0x1] %vm466, 0.0
        %584 = vst.msk [vmem:[%s568 + $0xa0] sm:$0x1] %vm466, 0.0
        %585 = vst.msk [vmem:[%s568 + $0xb0] sm:$0x1] %vm466, 0.0
        %586 = vst.msk [vmem:[%s568 + $0xc0] sm:$0x1] %vm466, 0.0
        %587 = vst.msk [vmem:[%s568 + $0xd0] sm:$0x1] %vm466, 0.0
        %588 = vst.msk [vmem:[%s568 + $0xe0] sm:$0x1] %vm466, 0.0
        %589 = vst.msk [vmem:[%s568 + $0xf0] sm:$0x1] %vm466, 0.0
        %590 = vst.msk [vmem:[%s568 + $0x100] sm:$0x1] %vm466, 0.0
        %591 = vst.msk [vmem:[%s568 + $0x110] sm:$0x1] %vm466, 0.0
        %592 = vst.msk [vmem:[%s568 + $0x9] sm:$0x1] %vm466, 0.0
        %593 = vst.msk [vmem:[%s568 + $0x19] sm:$0x1] %vm466, 0.0
        %594 = vst.msk [vmem:[%s568 + $0x29] sm:$0x1] %vm466, 0.0
        %595 = vst.msk [vmem:[%s568 + $0x39] sm:$0x1] %vm466, 0.0
        %596 = vst.msk [vmem:[%s568 + $0x49] sm:$0x1] %vm466, 0.0
        %597 = vst.msk [vmem:[%s568 + $0x59] sm:$0x1] %vm466, 0.0
        %598 = vst.msk [vmem:[%s568 + $0x69] sm:$0x1] %vm466, 0.0
        %599 = vst.msk [vmem:[%s568 + $0x79] sm:$0x1] %vm466, 0.0
        %600 = vst.msk [vmem:[%s568 + $0x89] sm:$0x1] %vm466, 0.0
        %601 = vst.msk [vmem:[%s568 + $0x99] sm:$0x1] %vm466, 0.0
        %602 = vst.msk [vmem:[%s568 + $0xa9] sm:$0x1] %vm466, 0.0
        %603 = vst.msk [vmem:[%s568 + $0xb9] sm:$0x1] %vm466, 0.0
        %604 = vst.msk [vmem:[%s568 + $0xc9] sm:$0x1] %vm466, 0.0
        %605 = vst.msk [vmem:[%s568 + $0xd9] sm:$0x1] %vm466, 0.0
        %606 = vst.msk [vmem:[%s568 + $0xe9] sm:$0x1] %vm466, 0.0
        %607 = vst.msk [vmem:[%s568 + $0xf9] sm:$0x1] %vm466, 0.0
        %608 = vst.msk [vmem:[%s568 + $0x109] sm:$0x1] %vm466, 0.0
        %609 = vst.msk [vmem:[%s568 + $0x119] sm:$0x1] %vm466, 0.0
        %v610 = vadd.s32 %v503, 1
        %v611 = vadd.s32 %v610, 32
        %v612 = vadd.s32 %v610, 64
        %v613 = vadd.s32 %v610, 96
        %v614 = vadd.s32 %v610, 128
        %v615 = vadd.s32 %v610, 160
        %v616 = vadd.s32 %v610, 192
        %v617 = vadd.s32 %v610, 224
        %vm618 = vcmp.eq.s32.totalorder %v449, %v610
        %vm619 = vcmp.eq.s32.totalorder %v450, %v611
        %vm620 = vcmp.eq.s32.totalorder %v451, %v612
        %vm621 = vcmp.eq.s32.totalorder %v452, %v613
        %vm622 = vcmp.eq.s32.totalorder %v453, %v614
        %vm623 = vcmp.eq.s32.totalorder %v454, %v615
        %vm624 = vcmp.eq.s32.totalorder %v455, %v616
        %vm625 = vcmp.eq.s32.totalorder %v456, %v617
        %v626 = vsel %vm618, %v441, 0.0
        %v627 = vsel %vm619, %v442, 0.0
        %v628 = vsel %vm620, %v443, 0.0
        %v629 = vsel %vm621, %v444, 0.0
        %v630 = vsel %vm622, %v445, 0.0
        %v631 = vsel %vm623, %v446, 0.0
        %v632 = vsel %vm624, %v447, 0.0
        %v633 = vsel %vm625, %v448, 0.0
        %v634 = vadd.s32 %v610, 16
        %v635 = vadd.s32 %v610, 48
        %v636 = vadd.s32 %v610, 80
        %v637 = vadd.s32 %v610, 112
        %v638 = vadd.s32 %v610, 144
        %v639 = vadd.s32 %v610, 176
        %v640 = vadd.s32 %v610, 208
        %v641 = vadd.s32 %v610, 240
        %vm642 = vcmp.eq.s32.totalorder %v449, %v634
        %vm643 = vcmp.eq.s32.totalorder %v450, %v635
        %vm644 = vcmp.eq.s32.totalorder %v451, %v636
        %vm645 = vcmp.eq.s32.totalorder %v452, %v637
        %vm646 = vcmp.eq.s32.totalorder %v453, %v638
        %vm647 = vcmp.eq.s32.totalorder %v454, %v639
        %vm648 = vcmp.eq.s32.totalorder %v455, %v640
        %vm649 = vcmp.eq.s32.totalorder %v456, %v641
        %v650 = vsel %vm642, %v441, 0.0
        %v651 = vsel %vm643, %v442, 0.0
        %v652 = vsel %vm644, %v443, 0.0
        %v653 = vsel %vm645, %v444, 0.0
        %v654 = vsel %vm646, %v445, 0.0
        %v655 = vsel %vm647, %v446, 0.0
        %v656 = vsel %vm648, %v447, 0.0
        %v657 = vsel %vm649, %v448, 0.0
        %s658 = scalar_lea.vmem [#allocation2], 304
        %659 = vst.msk [vmem:[%s658 + $0x1] sm:$0xff] %vm459, %v626
        %660 = vst.msk [vmem:[%s658 + $0x11] sm:$0xff] %vm459, %v650
        %661 = vst.msk [vmem:[%s658 + $0x21] sm:$0xff] %vm459, %v627
        %662 = vst.msk [vmem:[%s658 + $0x31] sm:$0xff] %vm459, %v651
        %663 = vst.msk [vmem:[%s658 + $0x41] sm:$0xff] %vm459, %v628
        %664 = vst.msk [vmem:[%s658 + $0x51] sm:$0xff] %vm459, %v652
        %665 = vst.msk [vmem:[%s658 + $0x61] sm:$0xff] %vm459, %v629
        %666 = vst.msk [vmem:[%s658 + $0x71] sm:$0xff] %vm459, %v653
        %667 = vst.msk [vmem:[%s658 + $0x81] sm:$0xff] %vm459, %v630
        %668 = vst.msk [vmem:[%s658 + $0x91] sm:$0xff] %vm459, %v654
        %669 = vst.msk [vmem:[%s658 + $0xa1] sm:$0xff] %vm459, %v631
        %670 = vst.msk [vmem:[%s658 + $0xb1] sm:$0xff] %vm459, %v655
        %671 = vst.msk [vmem:[%s658 + $0xc1] sm:$0xff] %vm459, %v632
        %672 = vst.msk [vmem:[%s658 + $0xd1] sm:$0xff] %vm459, %v656
        %673 = vst.msk [vmem:[%s658 + $0xe1] sm:$0xff] %vm459, %v633
        %674 = vst.msk [vmem:[%s658 + $0xf1] sm:$0xff] %vm459, %v657
        %vm675 = vcmask 1048504
        %676 = vst.msk [vmem:[#allocation3] sm:$0xff] %vm675, 0.0
        %677 = vst.msk [vmem:[#allocation3 + $0x18] sm:$0xff] %vm675, 0.0
        %vm678 = vcmask 72704
        %679 = vst.msk [vmem:[#allocation3 + $0x10] sm:$0xff] %vm678, 0.0
        %680 = vst.msk [vmem:[#allocation3 + $0x28] sm:$0xff] %vm678, 0.0
        %s681 = scalar_lea.vmem [#allocation3], 48
        %682 = vst.msk [vmem:[%s681] sm:$0xff] %vm675, 0.0
        %683 = vst.msk [vmem:[%s681 + $0x18] sm:$0xff] %vm675, 0.0
        %684 = vst.msk [vmem:[%s681 + $0x10] sm:$0xff] %vm678, 0.0
        %685 = vst.msk [vmem:[%s681 + $0x28] sm:$0xff] %vm678, 0.0
        %v686 = vld [vmem:[%s568] sm:$0xff]
        %v687 = vld [vmem:[%s568 + $0x10] sm:$0xff]
        %v688 = vld [vmem:[%s568 + $0x20] sm:$0xff]
        %v689 = vld [vmem:[%s568 + $0x30] sm:$0xff]
        %v690 = vld [vmem:[%s568 + $0x40] sm:$0xff]
        %v691 = vld [vmem:[%s568 + $0x50] sm:$0xff]
        %v692 = vld [vmem:[%s568 + $0x60] sm:$0xff]
        %v693 = vld [vmem:[%s568 + $0x70] sm:$0xff]
        %v694 = vld [vmem:[%s568 + $0x80] sm:$0xff]
        %v695 = vld [vmem:[%s568 + $0x90] sm:$0xff]
        %v696 = vld [vmem:[%s568 + $0xa0] sm:$0xff]
        %v697 = vld [vmem:[%s568 + $0xb0] sm:$0xff]
        %v698 = vld [vmem:[%s568 + $0xc0] sm:$0xff]
        %v699 = vld [vmem:[%s568 + $0xd0] sm:$0xff]
        %v700 = vld [vmem:[%s568 + $0xe0] sm:$0xff]
        %v701 = vld [vmem:[%s568 + $0xf0] sm:$0xff]
        %v702 = vpack.c.bf16 %v687, %v686
        %v703 = vpack.c.bf16 %v689, %v688
        %v704 = vpack.c.bf16 %v691, %v690
        %v705 = vpack.c.bf16 %v693, %v692
        %v706 = vpack.c.bf16 %v695, %v694
        %v707 = vpack.c.bf16 %v697, %v696
        %v708 = vpack.c.bf16 %v699, %v698
        %v709 = vpack.c.bf16 %v701, %v700
        %710 = vst.msk [vmem:[#allocation4] sm:$0xff] %vm459, %v702
        %711 = vst.msk [vmem:[#allocation4 + $0x8] sm:$0xff] %vm459, %v703
        %712 = vst.msk [vmem:[#allocation4 + $0x10] sm:$0xff] %vm459, %v704
        %713 = vst.msk [vmem:[#allocation4 + $0x18] sm:$0xff] %vm459, %v705
        %714 = vst.msk [vmem:[#allocation4 + $0x20] sm:$0xff] %vm459, %v706
        %715 = vst.msk [vmem:[#allocation4 + $0x28] sm:$0xff] %vm459, %v707
        %716 = vst.msk [vmem:[#allocation4 + $0x30] sm:$0xff] %vm459, %v708
        %717 = vst.msk [vmem:[#allocation4 + $0x38] sm:$0xff] %vm459, %v709
        %v718 = vld [vmem:[#allocation2 + $0x1] sm:$0xff]
        %v719 = vld [vmem:[#allocation2 + $0x11] sm:$0xff]
        %v720 = vld [vmem:[#allocation2 + $0x21] sm:$0xff]
        %v721 = vld [vmem:[#allocation2 + $0x31] sm:$0xff]
        %v722 = vld [vmem:[#allocation2 + $0x41] sm:$0xff]
        %v723 = vld [vmem:[#allocation2 + $0x51] sm:$0xff]
        %v724 = vld [vmem:[#allocation2 + $0x61] sm:$0xff]
        %v725 = vld [vmem:[#allocation2 + $0x71] sm:$0xff]
        %v726 = vld [vmem:[#allocation2 + $0x81] sm:$0xff]
        %v727 = vld [vmem:[#allocation2 + $0x91] sm:$0xff]
        %v728 = vld [vmem:[#allocation2 + $0xa1] sm:$0xff]
        %v729 = vld [vmem:[#allocation2 + $0xb1] sm:$0xff]
        %v730 = vld [vmem:[#allocation2 + $0xc1] sm:$0xff]
        %v731 = vld [vmem:[#allocation2 + $0xd1] sm:$0xff]
        %v732 = vld [vmem:[#allocation2 + $0xe1] sm:$0xff]
        %v733 = vld [vmem:[#allocation2 + $0xf1] sm:$0xff]
        %v734 = vpack.c.bf16 %v719, %v718
        %v735 = vpack.c.bf16 %v721, %v720
        %v736 = vpack.c.bf16 %v723, %v722
        %v737 = vpack.c.bf16 %v725, %v724
        %v738 = vpack.c.bf16 %v727, %v726
        %v739 = vpack.c.bf16 %v729, %v728
        %v740 = vpack.c.bf16 %v731, %v730
        %v741 = vpack.c.bf16 %v733, %v732
        %750 = vrot.lane.b32.xlu0 %v734, 8
        %v751 = vpop.permute.xlu0 %750
        %752 = vrot.lane.b32.xlu0 %v735, 8
        %v753 = vpop.permute.xlu0 %752
        %754 = vrot.lane.b32.xlu0 %v736, 8
        %v755 = vpop.permute.xlu0 %754
        %756 = vrot.lane.b32.xlu0 %v737, 8
        %v757 = vpop.permute.xlu0 %756
        %758 = vrot.lane.b32.xlu0 %v738, 8
        %v759 = vpop.permute.xlu0 %758
        %760 = vrot.lane.b32.xlu0 %v739, 8
        %v761 = vpop.permute.xlu0 %760
        %762 = vrot.lane.b32.xlu0 %v740, 8
        %v763 = vpop.permute.xlu0 %762
        %764 = vrot.lane.b32.xlu0 %v741, 8
        %v765 = vpop.permute.xlu0 %764
        %vm774 = vcmask 130112
        %775 = vst.msk [vmem:[#allocation4] sm:$0xff] %vm774, %v751
        %776 = vst.msk [vmem:[#allocation4 + $0x8] sm:$0xff] %vm774, %v753
        %777 = vst.msk [vmem:[#allocation4 + $0x10] sm:$0xff] %vm774, %v755
        %778 = vst.msk [vmem:[#allocation4 + $0x18] sm:$0xff] %vm774, %v757
        %779 = vst.msk [vmem:[#allocation4 + $0x20] sm:$0xff] %vm774, %v759
        %780 = vst.msk [vmem:[#allocation4 + $0x28] sm:$0xff] %vm774, %v761
        %781 = vst.msk [vmem:[#allocation4 + $0x30] sm:$0xff] %vm774, %v763
        %782 = vst.msk [vmem:[#allocation4 + $0x38] sm:$0xff] %vm774, %v765
        %v783 = vld [vmem:[%s568 + $0x1] sm:$0xff]
        %v784 = vld [vmem:[%s568 + $0x11] sm:$0xff]
        %v785 = vld [vmem:[%s568 + $0x21] sm:$0xff]
        %v786 = vld [vmem:[%s568 + $0x31] sm:$0xff]
        %v787 = vld [vmem:[%s568 + $0x41] sm:$0xff]
        %v788 = vld [vmem:[%s568 + $0x51] sm:$0xff]
        %v789 = vld [vmem:[%s568 + $0x61] sm:$0xff]
        %v790 = vld [vmem:[%s568 + $0x71] sm:$0xff]
        %v791 = vld [vmem:[%s568 + $0x81] sm:$0xff]
        %v792 = vld [vmem:[%s568 + $0x91] sm:$0xff]
        %v793 = vld [vmem:[%s568 + $0xa1] sm:$0xff]
        %v794 = vld [vmem:[%s568 + $0xb1] sm:$0xff]
        %v795 = vld [vmem:[%s568 + $0xc1] sm:$0xff]
        %v796 = vld [vmem:[%s568 + $0xd1] sm:$0xff]
        %v797 = vld [vmem:[%s568 + $0xe1] sm:$0xff]
        %v798 = vld [vmem:[%s568 + $0xf1] sm:$0xff]
        %v799 = vpack.c.bf16 %v784, %v783
        %v800 = vpack.c.bf16 %v786, %v785
        %v801 = vpack.c.bf16 %v788, %v787
        %v802 = vpack.c.bf16 %v790, %v789
        %v803 = vpack.c.bf16 %v792, %v791
        %v804 = vpack.c.bf16 %v794, %v793
        %v805 = vpack.c.bf16 %v796, %v795
        %v806 = vpack.c.bf16 %v798, %v797
        %815 = vrot.lane.b32.xlu0 %v799, 16
        %v816 = vpop.permute.xlu0 %815
        %817 = vrot.lane.b32.xlu0 %v800, 16
        %v818 = vpop.permute.xlu0 %817
        %819 = vrot.lane.b32.xlu0 %v801, 16
        %v820 = vpop.permute.xlu0 %819
        %821 = vrot.lane.b32.xlu0 %v802, 16
        %v822 = vpop.permute.xlu0 %821
        %823 = vrot.lane.b32.xlu0 %v803, 16
        %v824 = vpop.permute.xlu0 %823
        %825 = vrot.lane.b32.xlu0 %v804, 16
        %v826 = vpop.permute.xlu0 %825
        %827 = vrot.lane.b32.xlu0 %v805, 16
        %v828 = vpop.permute.xlu0 %827
        %829 = vrot.lane.b32.xlu0 %v806, 16
        %v830 = vpop.permute.xlu0 %829
        %vm839 = vcmask 195712
        %840 = vst.msk [vmem:[#allocation4] sm:$0xff] %vm839, %v816
        %841 = vst.msk [vmem:[#allocation4 + $0x8] sm:$0xff] %vm839, %v818
        %842 = vst.msk [vmem:[#allocation4 + $0x10] sm:$0xff] %vm839, %v820
        %843 = vst.msk [vmem:[#allocation4 + $0x18] sm:$0xff] %vm839, %v822
        %844 = vst.msk [vmem:[#allocation4 + $0x20] sm:$0xff] %vm839, %v824
        %845 = vst.msk [vmem:[#allocation4 + $0x28] sm:$0xff] %vm839, %v826
        %846 = vst.msk [vmem:[#allocation4 + $0x30] sm:$0xff] %vm839, %v828
        %847 = vst.msk [vmem:[#allocation4 + $0x38] sm:$0xff] %vm839, %v830
        %v848 = vld [vmem:[%s658] sm:$0xff]
        %v849 = vld [vmem:[%s658 + $0x10] sm:$0xff]
        %v850 = vld [vmem:[%s658 + $0x20] sm:$0xff]
        %v851 = vld [vmem:[%s658 + $0x30] sm:$0xff]
        %v852 = vld [vmem:[%s658 + $0x40] sm:$0xff]
        %v853 = vld [vmem:[%s658 + $0x50] sm:$0xff]
        %v854 = vld [vmem:[%s658 + $0x60] sm:$0xff]
        %v855 = vld [vmem:[%s658 + $0x70] sm:$0xff]
        %v856 = vld [vmem:[%s658 + $0x80] sm:$0xff]
        %v857 = vld [vmem:[%s658 + $0x90] sm:$0xff]
        %v858 = vld [vmem:[%s658 + $0xa0] sm:$0xff]
        %v859 = vld [vmem:[%s658 + $0xb0] sm:$0xff]
        %v860 = vld [vmem:[%s658 + $0xc0] sm:$0xff]
        %v861 = vld [vmem:[%s658 + $0xd0] sm:$0xff]
        %v862 = vld [vmem:[%s658 + $0xe0] sm:$0xff]
        %v863 = vld [vmem:[%s658 + $0xf0] sm:$0xff]
        %v864 = vpack.c.bf16 %v849, %v848
        %v865 = vpack.c.bf16 %v851, %v850
        %v866 = vpack.c.bf16 %v853, %v852
        %v867 = vpack.c.bf16 %v855, %v854
        %v868 = vpack.c.bf16 %v857, %v856
        %v869 = vpack.c.bf16 %v859, %v858
        %v870 = vpack.c.bf16 %v861, %v860
        %v871 = vpack.c.bf16 %v863, %v862
        %880 = vrot.lane.b32.xlu0 %v864, 24
        %v881 = vpop.permute.xlu0 %880
        %882 = vrot.lane.b32.xlu0 %v865, 24
        %v883 = vpop.permute.xlu0 %882
        %884 = vrot.lane.b32.xlu0 %v866, 24
        %v885 = vpop.permute.xlu0 %884
        %886 = vrot.lane.b32.xlu0 %v867, 24
        %v887 = vpop.permute.xlu0 %886
        %888 = vrot.lane.b32.xlu0 %v868, 24
        %v889 = vpop.permute.xlu0 %888
        %890 = vrot.lane.b32.xlu0 %v869, 24
        %v891 = vpop.permute.xlu0 %890
        %892 = vrot.lane.b32.xlu0 %v870, 24
        %v893 = vpop.permute.xlu0 %892
        %894 = vrot.lane.b32.xlu0 %v871, 24
        %v895 = vpop.permute.xlu0 %894
        %vm904 = vcmask 261312
        %905 = vst.msk [vmem:[#allocation4] sm:$0xff] %vm904, %v881
        %906 = vst.msk [vmem:[#allocation4 + $0x8] sm:$0xff] %vm904, %v883
        %907 = vst.msk [vmem:[#allocation4 + $0x10] sm:$0xff] %vm904, %v885
        %908 = vst.msk [vmem:[#allocation4 + $0x18] sm:$0xff] %vm904, %v887
        %909 = vst.msk [vmem:[#allocation4 + $0x20] sm:$0xff] %vm904, %v889
        %910 = vst.msk [vmem:[#allocation4 + $0x28] sm:$0xff] %vm904, %v891
        %911 = vst.msk [vmem:[#allocation4 + $0x30] sm:$0xff] %vm904, %v893
        %912 = vst.msk [vmem:[#allocation4 + $0x38] sm:$0xff] %vm904, %v895
        %v913 = vld [vmem:[%s551 + $0x1] sm:$0xff]
        %v914 = vld [vmem:[%s551 + $0x11] sm:$0xff]
        %v915 = vld [vmem:[%s551 + $0x21] sm:$0xff]
        %v916 = vld [vmem:[%s551 + $0x31] sm:$0xff]
        %v917 = vld [vmem:[%s551 + $0x41] sm:$0xff]
        %v918 = vld [vmem:[%s551 + $0x51] sm:$0xff]
        %v919 = vld [vmem:[%s551 + $0x61] sm:$0xff]
        %v920 = vld [vmem:[%s551 + $0x71] sm:$0xff]
        %v921 = vld [vmem:[%s551 + $0x81] sm:$0xff]
        %v922 = vld [vmem:[%s551 + $0x91] sm:$0xff]
        %v923 = vld [vmem:[%s551 + $0xa1] sm:$0xff]
        %v924 = vld [vmem:[%s551 + $0xb1] sm:$0xff]
        %v925 = vld [vmem:[%s551 + $0xc1] sm:$0xff]
        %v926 = vld [vmem:[%s551 + $0xd1] sm:$0xff]
        %v927 = vld [vmem:[%s551 + $0xe1] sm:$0xff]
        %v928 = vld [vmem:[%s551 + $0xf1] sm:$0xff]
        %v929 = vpack.c.bf16 %v914, %v913
        %v930 = vpack.c.bf16 %v916, %v915
        %v931 = vpack.c.bf16 %v918, %v917
        %v932 = vpack.c.bf16 %v920, %v919
        %v933 = vpack.c.bf16 %v922, %v921
        %v934 = vpack.c.bf16 %v924, %v923
        %v935 = vpack.c.bf16 %v926, %v925
        %v936 = vpack.c.bf16 %v928, %v927
        %945 = vrot.lane.b32.xlu0 %v929, 32
        %v946 = vpop.permute.xlu0 %945
        %947 = vrot.lane.b32.xlu0 %v930, 32
        %v948 = vpop.permute.xlu0 %947
        %949 = vrot.lane.b32.xlu0 %v931, 32
        %v950 = vpop.permute.xlu0 %949
        %951 = vrot.lane.b32.xlu0 %v932, 32
        %v952 = vpop.permute.xlu0 %951
        %953 = vrot.lane.b32.xlu0 %v933, 32
        %v954 = vpop.permute.xlu0 %953
        %955 = vrot.lane.b32.xlu0 %v934, 32
        %v956 = vpop.permute.xlu0 %955
        %957 = vrot.lane.b32.xlu0 %v935, 32
        %v958 = vpop.permute.xlu0 %957
        %959 = vrot.lane.b32.xlu0 %v936, 32
        %v960 = vpop.permute.xlu0 %959
        %vm969 = vcmask 326912
        %970 = vst.msk [vmem:[#allocation4] sm:$0xff] %vm969, %v946
        %971 = vst.msk [vmem:[#allocation4 + $0x8] sm:$0xff] %vm969, %v948
        %972 = vst.msk [vmem:[#allocation4 + $0x10] sm:$0xff] %vm969, %v950
        %973 = vst.msk [vmem:[#allocation4 + $0x18] sm:$0xff] %vm969, %v952
        %974 = vst.msk [vmem:[#allocation4 + $0x20] sm:$0xff] %vm969, %v954
        %975 = vst.msk [vmem:[#allocation4 + $0x28] sm:$0xff] %vm969, %v956
        %976 = vst.msk [vmem:[#allocation4 + $0x30] sm:$0xff] %vm969, %v958
        %977 = vst.msk [vmem:[#allocation4 + $0x38] sm:$0xff] %vm969, %v960
        %v978 = vld [vmem:[%s658 + $0x1] sm:$0xff]
        %v979 = vld [vmem:[%s658 + $0x11] sm:$0xff]
        %v980 = vld [vmem:[%s658 + $0x21] sm:$0xff]
        %v981 = vld [vmem:[%s658 + $0x31] sm:$0xff]
        %v982 = vld [vmem:[%s658 + $0x41] sm:$0xff]
        %v983 = vld [vmem:[%s658 + $0x51] sm:$0xff]
        %v984 = vld [vmem:[%s658 + $0x61] sm:$0xff]
        %v985 = vld [vmem:[%s658 + $0x71] sm:$0xff]
        %v986 = vld [vmem:[%s658 + $0x81] sm:$0xff]
        %v987 = vld [vmem:[%s658 + $0x91] sm:$0xff]
        %v988 = vld [vmem:[%s658 + $0xa1] sm:$0xff]
        %v989 = vld [vmem:[%s658 + $0xb1] sm:$0xff]
        %v990 = vld [vmem:[%s658 + $0xc1] sm:$0xff]
        %v991 = vld [vmem:[%s658 + $0xd1] sm:$0xff]
        %v992 = vld [vmem:[%s658 + $0xe1] sm:$0xff]
        %v993 = vld [vmem:[%s658 + $0xf1] sm:$0xff]
        %v994 = vpack.c.bf16 %v979, %v978
        %v995 = vpack.c.bf16 %v981, %v980
        %v996 = vpack.c.bf16 %v983, %v982
        %v997 = vpack.c.bf16 %v985, %v984
        %v998 = vpack.c.bf16 %v987, %v986
        %v999 = vpack.c.bf16 %v989, %v988
        %v1000 = vpack.c.bf16 %v991, %v990
        %v1001 = vpack.c.bf16 %v993, %v992
        %1010 = vrot.lane.b32.xlu0 %v994, 40
        %v1011 = vpop.permute.xlu0 %1010
        %1012 = vrot.lane.b32.xlu0 %v995, 40
        %v1013 = vpop.permute.xlu0 %1012
        %1014 = vrot.lane.b32.xlu0 %v996, 40
        %v1015 = vpop.permute.xlu0 %1014
        %1016 = vrot.lane.b32.xlu0 %v997, 40
        %v1017 = vpop.permute.xlu0 %1016
        %1018 = vrot.lane.b32.xlu0 %v998, 40
        %v1019 = vpop.permute.xlu0 %1018
        %1020 = vrot.lane.b32.xlu0 %v999, 40
        %v1021 = vpop.permute.xlu0 %1020
        %1022 = vrot.lane.b32.xlu0 %v1000, 40
        %v1023 = vpop.permute.xlu0 %1022
        %1024 = vrot.lane.b32.xlu0 %v1001, 40
        %v1025 = vpop.permute.xlu0 %1024
        %vm1034 = vcmask 392512
        %1035 = vst.msk [vmem:[#allocation4] sm:$0xff] %vm1034, %v1011
        %1036 = vst.msk [vmem:[#allocation4 + $0x8] sm:$0xff] %vm1034, %v1013
        %1037 = vst.msk [vmem:[#allocation4 + $0x10] sm:$0xff] %vm1034, %v1015
        %1038 = vst.msk [vmem:[#allocation4 + $0x18] sm:$0xff] %vm1034, %v1017
        %1039 = vst.msk [vmem:[#allocation4 + $0x20] sm:$0xff] %vm1034, %v1019
        %1040 = vst.msk [vmem:[#allocation4 + $0x28] sm:$0xff] %vm1034, %v1021
        %1041 = vst.msk [vmem:[#allocation4 + $0x30] sm:$0xff] %vm1034, %v1023
        %1042 = vst.msk [vmem:[#allocation4 + $0x38] sm:$0xff] %vm1034, %v1025
        %s1043 = scalar_lea.vmem [#allocation2], 320
        %v1044 = vld [vmem:[%s1043] sm:$0xff]
        %v1045 = vld [vmem:[%s1043 + $0x10] sm:$0xff]
        %v1046 = vld [vmem:[%s1043 + $0x20] sm:$0xff]
        %v1047 = vld [vmem:[%s1043 + $0x30] sm:$0xff]
        %v1048 = vld [vmem:[%s1043 + $0x40] sm:$0xff]
        %v1049 = vld [vmem:[%s1043 + $0x50] sm:$0xff]
        %v1050 = vld [vmem:[%s1043 + $0x60] sm:$0xff]
        %v1051 = vld [vmem:[%s1043 + $0x70] sm:$0xff]
        %v1052 = vld [vmem:[%s1043 + $0x80] sm:$0xff]
        %v1053 = vld [vmem:[%s1043 + $0x90] sm:$0xff]
        %v1054 = vld [vmem:[%s1043 + $0xa0] sm:$0xff]
        %v1055 = vld [vmem:[%s1043 + $0xb0] sm:$0xff]
        %v1056 = vld [vmem:[%s1043 + $0xc0] sm:$0xff]
        %v1057 = vld [vmem:[%s1043 + $0xd0] sm:$0xff]
        %v1058 = vld [vmem:[%s1043 + $0xe0] sm:$0xff]
        %v1059 = vld [vmem:[%s1043 + $0xf0] sm:$0xff]
        %v1060 = vpack.c.bf16 %v1045, %v1044
        %v1061 = vpack.c.bf16 %v1047, %v1046
        %v1062 = vpack.c.bf16 %v1049, %v1048
        %v1063 = vpack.c.bf16 %v1051, %v1050
        %v1064 = vpack.c.bf16 %v1053, %v1052
        %v1065 = vpack.c.bf16 %v1055, %v1054
        %v1066 = vpack.c.bf16 %v1057, %v1056
        %v1067 = vpack.c.bf16 %v1059, %v1058
        %1076 = vrot.lane.b32.xlu0 %v1060, 48
        %v1077 = vpop.permute.xlu0 %1076
        %1078 = vrot.lane.b32.xlu0 %v1061, 48
        %v1079 = vpop.permute.xlu0 %1078
        %1080 = vrot.lane.b32.xlu0 %v1062, 48
        %v1081 = vpop.permute.xlu0 %1080
        %1082 = vrot.lane.b32.xlu0 %v1063, 48
        %v1083 = vpop.permute.xlu0 %1082
        %1084 = vrot.lane.b32.xlu0 %v1064, 48
        %v1085 = vpop.permute.xlu0 %1084
        %1086 = vrot.lane.b32.xlu0 %v1065, 48
        %v1087 = vpop.permute.xlu0 %1086
        %1088 = vrot.lane.b32.xlu0 %v1066, 48
        %v1089 = vpop.permute.xlu0 %1088
        %1090 = vrot.lane.b32.xlu0 %v1067, 48
        %v1091 = vpop.permute.xlu0 %1090
        %vm1100 = vcmask 458112
        %1101 = vst.msk [vmem:[#allocation4] sm:$0xff] %vm1100, %v1077
        %1102 = vst.msk [vmem:[#allocation4 + $0x8] sm:$0xff] %vm1100, %v1079
        %1103 = vst.msk [vmem:[#allocation4 + $0x10] sm:$0xff] %vm1100, %v1081
        %1104 = vst.msk [vmem:[#allocation4 + $0x18] sm:$0xff] %vm1100, %v1083
        %1105 = vst.msk [vmem:[#allocation4 + $0x20] sm:$0xff] %vm1100, %v1085
        %1106 = vst.msk [vmem:[#allocation4 + $0x28] sm:$0xff] %vm1100, %v1087
        %1107 = vst.msk [vmem:[#allocation4 + $0x30] sm:$0xff] %vm1100, %v1089
        %1108 = vst.msk [vmem:[#allocation4 + $0x38] sm:$0xff] %vm1100, %v1091
        %s1109 = scalar_lea.vmem [#allocation2], 32
        %v1110 = vld [vmem:[%s1109 + $0x1] sm:$0xff]
        %v1111 = vld [vmem:[%s1109 + $0x11] sm:$0xff]
        %v1112 = vld [vmem:[%s1109 + $0x21] sm:$0xff]
        %v1113 = vld [vmem:[%s1109 + $0x31] sm:$0xff]
        %v1114 = vld [vmem:[%s1109 + $0x41] sm:$0xff]
        %v1115 = vld [vmem:[%s1109 + $0x51] sm:$0xff]
        %v1116 = vld [vmem:[%s1109 + $0x61] sm:$0xff]
        %v1117 = vld [vmem:[%s1109 + $0x71] sm:$0xff]
        %v1118 = vld [vmem:[%s1109 + $0x81] sm:$0xff]
        %v1119 = vld [vmem:[%s1109 + $0x91] sm:$0xff]
        %v1120 = vld [vmem:[%s1109 + $0xa1] sm:$0xff]
        %v1121 = vld [vmem:[%s1109 + $0xb1] sm:$0xff]
        %v1122 = vld [vmem:[%s1109 + $0xc1] sm:$0xff]
        %v1123 = vld [vmem:[%s1109 + $0xd1] sm:$0xff]
        %v1124 = vld [vmem:[%s1109 + $0xe1] sm:$0xff]
        %v1125 = vld [vmem:[%s1109 + $0xf1] sm:$0xff]
        %v1126 = vpack.c.bf16 %v1111, %v1110
        %v1127 = vpack.c.bf16 %v1113, %v1112
        %v1128 = vpack.c.bf16 %v1115, %v1114
        %v1129 = vpack.c.bf16 %v1117, %v1116
        %v1130 = vpack.c.bf16 %v1119, %v1118
        %v1131 = vpack.c.bf16 %v1121, %v1120
        %v1132 = vpack.c.bf16 %v1123, %v1122
        %v1133 = vpack.c.bf16 %v1125, %v1124
        %1142 = vrot.lane.b32.xlu0 %v1126, 56
        %v1143 = vpop.permute.xlu0 %1142
        %1144 = vrot.lane.b32.xlu0 %v1127, 56
        %v1145 = vpop.permute.xlu0 %1144
        %1146 = vrot.lane.b32.xlu0 %v1128, 56
        %v1147 = vpop.permute.xlu0 %1146
        %1148 = vrot.lane.b32.xlu0 %v1129, 56
        %v1149 = vpop.permute.xlu0 %1148
        %1150 = vrot.lane.b32.xlu0 %v1130, 56
        %v1151 = vpop.permute.xlu0 %1150
        %1152 = vrot.lane.b32.xlu0 %v1131, 56
        %v1153 = vpop.permute.xlu0 %1152
        %1154 = vrot.lane.b32.xlu0 %v1132, 56
        %v1155 = vpop.permute.xlu0 %1154
        %1156 = vrot.lane.b32.xlu0 %v1133, 56
        %v1157 = vpop.permute.xlu0 %1156
        %vm1166 = vcmask 523712
        %1167 = vst.msk [vmem:[#allocation4] sm:$0xff] %vm1166, %v1143
        %1168 = vst.msk [vmem:[#allocation4 + $0x8] sm:$0xff] %vm1166, %v1145
        %1169 = vst.msk [vmem:[#allocation4 + $0x10] sm:$0xff] %vm1166, %v1147
        %1170 = vst.msk [vmem:[#allocation4 + $0x18] sm:$0xff] %vm1166, %v1149
        %1171 = vst.msk [vmem:[#allocation4 + $0x20] sm:$0xff] %vm1166, %v1151
        %1172 = vst.msk [vmem:[#allocation4 + $0x28] sm:$0xff] %vm1166, %v1153
        %1173 = vst.msk [vmem:[#allocation4 + $0x30] sm:$0xff] %vm1166, %v1155
        %1174 = vst.msk [vmem:[#allocation4 + $0x38] sm:$0xff] %vm1166, %v1157
        %v1175 = vld [vmem:[%s1043 + $0x1] sm:$0xff]
        %v1176 = vld [vmem:[%s1043 + $0x11] sm:$0xff]
        %v1177 = vld [vmem:[%s1043 + $0x21] sm:$0xff]
        %v1178 = vld [vmem:[%s1043 + $0x31] sm:$0xff]
        %v1179 = vld [vmem:[%s1043 + $0x41] sm:$0xff]
        %v1180 = vld [vmem:[%s1043 + $0x51] sm:$0xff]
        %v1181 = vld [vmem:[%s1043 + $0x61] sm:$0xff]
        %v1182 = vld [vmem:[%s1043 + $0x71] sm:$0xff]
        %v1183 = vld [vmem:[%s1043 + $0x81] sm:$0xff]
        %v1184 = vld [vmem:[%s1043 + $0x91] sm:$0xff]
        %v1185 = vld [vmem:[%s1043 + $0xa1] sm:$0xff]
        %v1186 = vld [vmem:[%s1043 + $0xb1] sm:$0xff]
        %v1187 = vld [vmem:[%s1043 + $0xc1] sm:$0xff]
        %v1188 = vld [vmem:[%s1043 + $0xd1] sm:$0xff]
        %v1189 = vld [vmem:[%s1043 + $0xe1] sm:$0xff]
        %v1190 = vld [vmem:[%s1043 + $0xf1] sm:$0xff]
        %v1191 = vpack.c.bf16 %v1176, %v1175
        %v1192 = vpack.c.bf16 %v1178, %v1177
        %v1193 = vpack.c.bf16 %v1180, %v1179
        %v1194 = vpack.c.bf16 %v1182, %v1181
        %v1195 = vpack.c.bf16 %v1184, %v1183
        %v1196 = vpack.c.bf16 %v1186, %v1185
        %v1197 = vpack.c.bf16 %v1188, %v1187
        %v1198 = vpack.c.bf16 %v1190, %v1189
        %1207 = vrot.lane.b32.xlu0 %v1191, 64
        %v1208 = vpop.permute.xlu0 %1207
        %1209 = vrot.lane.b32.xlu0 %v1192, 64
        %v1210 = vpop.permute.xlu0 %1209
        %1211 = vrot.lane.b32.xlu0 %v1193, 64
        %v1212 = vpop.permute.xlu0 %1211
        %1213 = vrot.lane.b32.xlu0 %v1194, 64
        %v1214 = vpop.permute.xlu0 %1213
        %1215 = vrot.lane.b32.xlu0 %v1195, 64
        %v1216 = vpop.permute.xlu0 %1215
        %1217 = vrot.lane.b32.xlu0 %v1196, 64
        %v1218 = vpop.permute.xlu0 %1217
        %1219 = vrot.lane.b32.xlu0 %v1197, 64
        %v1220 = vpop.permute.xlu0 %1219
        %1221 = vrot.lane.b32.xlu0 %v1198, 64
        %v1222 = vpop.permute.xlu0 %1221
        %vm1231 = vcmask 589312
        %1232 = vst.msk [vmem:[#allocation4] sm:$0xff] %vm1231, %v1208
        %1233 = vst.msk [vmem:[#allocation4 + $0x8] sm:$0xff] %vm1231, %v1210
        %1234 = vst.msk [vmem:[#allocation4 + $0x10] sm:$0xff] %vm1231, %v1212
        %1235 = vst.msk [vmem:[#allocation4 + $0x18] sm:$0xff] %vm1231, %v1214
        %1236 = vst.msk [vmem:[#allocation4 + $0x20] sm:$0xff] %vm1231, %v1216
        %1237 = vst.msk [vmem:[#allocation4 + $0x28] sm:$0xff] %vm1231, %v1218
        %1238 = vst.msk [vmem:[#allocation4 + $0x30] sm:$0xff] %vm1231, %v1220
        %1239 = vst.msk [vmem:[#allocation4 + $0x38] sm:$0xff] %vm1231, %v1222
        %v1240 = vld [vmem:[#allocation2 + $0x1] sm:$0xff]
        %v1241 = vld [vmem:[#allocation2 + $0x11] sm:$0xff]
        %v1242 = vld [vmem:[#allocation2 + $0x21] sm:$0xff]
        %v1243 = vld [vmem:[#allocation2 + $0x31] sm:$0xff]
        %v1244 = vld [vmem:[#allocation2 + $0x41] sm:$0xff]
        %v1245 = vld [vmem:[#allocation2 + $0x51] sm:$0xff]
        %v1246 = vld [vmem:[#allocation2 + $0x61] sm:$0xff]
        %v1247 = vld [vmem:[#allocation2 + $0x71] sm:$0xff]
        %v1248 = vld [vmem:[#allocation2 + $0x81] sm:$0xff]
        %v1249 = vld [vmem:[#allocation2 + $0x91] sm:$0xff]
        %v1250 = vld [vmem:[#allocation2 + $0xa1] sm:$0xff]
        %v1251 = vld [vmem:[#allocation2 + $0xb1] sm:$0xff]
        %v1252 = vld [vmem:[#allocation2 + $0xc1] sm:$0xff]
        %v1253 = vld [vmem:[#allocation2 + $0xd1] sm:$0xff]
        %v1254 = vld [vmem:[#allocation2 + $0xe1] sm:$0xff]
        %v1255 = vld [vmem:[#allocation2 + $0xf1] sm:$0xff]
        %v1256 = vpack.c.bf16 %v1241, %v1240
        %v1257 = vpack.c.bf16 %v1243, %v1242
        %v1258 = vpack.c.bf16 %v1245, %v1244
        %v1259 = vpack.c.bf16 %v1247, %v1246
        %v1260 = vpack.c.bf16 %v1249, %v1248
        %v1261 = vpack.c.bf16 %v1251, %v1250
        %v1262 = vpack.c.bf16 %v1253, %v1252
        %v1263 = vpack.c.bf16 %v1255, %v1254
        %1264 = vst.msk [vmem:[#allocation4 + $0x40] sm:$0xff] %vm459, %v1256
        %1265 = vst.msk [vmem:[#allocation4 + $0x48] sm:$0xff] %vm459, %v1257
        %1266 = vst.msk [vmem:[#allocation4 + $0x50] sm:$0xff] %vm459, %v1258
        %1267 = vst.msk [vmem:[#allocation4 + $0x58] sm:$0xff] %vm459, %v1259
        %1268 = vst.msk [vmem:[#allocation4 + $0x60] sm:$0xff] %vm459, %v1260
        %1269 = vst.msk [vmem:[#allocation4 + $0x68] sm:$0xff] %vm459, %v1261
        %1270 = vst.msk [vmem:[#allocation4 + $0x70] sm:$0xff] %vm459, %v1262
        %1271 = vst.msk [vmem:[#allocation4 + $0x78] sm:$0xff] %vm459, %v1263
        %v1272 = vld [vmem:[%s568 + $0x1] sm:$0xff]
        %v1273 = vld [vmem:[%s568 + $0x11] sm:$0xff]
        %v1274 = vld [vmem:[%s568 + $0x21] sm:$0xff]
        %v1275 = vld [vmem:[%s568 + $0x31] sm:$0xff]
        %v1276 = vld [vmem:[%s568 + $0x41] sm:$0xff]
        %v1277 = vld [vmem:[%s568 + $0x51] sm:$0xff]
        %v1278 = vld [vmem:[%s568 + $0x61] sm:$0xff]
        %v1279 = vld [vmem:[%s568 + $0x71] sm:$0xff]
        %v1280 = vld [vmem:[%s568 + $0x81] sm:$0xff]
        %v1281 = vld [vmem:[%s568 + $0x91] sm:$0xff]
        %v1282 = vld [vmem:[%s568 + $0xa1] sm:$0xff]
        %v1283 = vld [vmem:[%s568 + $0xb1] sm:$0xff]
        %v1284 = vld [vmem:[%s568 + $0xc1] sm:$0xff]
        %v1285 = vld [vmem:[%s568 + $0xd1] sm:$0xff]
        %v1286 = vld [vmem:[%s568 + $0xe1] sm:$0xff]
        %v1287 = vld [vmem:[%s568 + $0xf1] sm:$0xff]
        %v1288 = vpack.c.bf16 %v1273, %v1272
        %v1289 = vpack.c.bf16 %v1275, %v1274
        %v1290 = vpack.c.bf16 %v1277, %v1276
        %v1291 = vpack.c.bf16 %v1279, %v1278
        %v1292 = vpack.c.bf16 %v1281, %v1280
        %v1293 = vpack.c.bf16 %v1283, %v1282
        %v1294 = vpack.c.bf16 %v1285, %v1284
        %v1295 = vpack.c.bf16 %v1287, %v1286
        %1304 = vrot.lane.b32.xlu0 %v1288, 8
        %v1305 = vpop.permute.xlu0 %1304
        %1306 = vrot.lane.b32.xlu0 %v1289, 8
        %v1307 = vpop.permute.xlu0 %1306
        %1308 = vrot.lane.b32.xlu0 %v1290, 8
        %v1309 = vpop.permute.xlu0 %1308
        %1310 = vrot.lane.b32.xlu0 %v1291, 8
        %v1311 = vpop.permute.xlu0 %1310
        %1312 = vrot.lane.b32.xlu0 %v1292, 8
        %v1313 = vpop.permute.xlu0 %1312
        %1314 = vrot.lane.b32.xlu0 %v1293, 8
        %v1315 = vpop.permute.xlu0 %1314
        %1316 = vrot.lane.b32.xlu0 %v1294, 8
        %v1317 = vpop.permute.xlu0 %1316
        %1318 = vrot.lane.b32.xlu0 %v1295, 8
        %v1319 = vpop.permute.xlu0 %1318
        %1328 = vst.msk [vmem:[#allocation4 + $0x40] sm:$0xff] %vm774, %v1305
        %1329 = vst.msk [vmem:[#allocation4 + $0x48] sm:$0xff] %vm774, %v1307
        %1330 = vst.msk [vmem:[#allocation4 + $0x50] sm:$0xff] %vm774, %v1309
        %1331 = vst.msk [vmem:[#allocation4 + $0x58] sm:$0xff] %vm774, %v1311
        %1332 = vst.msk [vmem:[#allocation4 + $0x60] sm:$0xff] %vm774, %v1313
        %1333 = vst.msk [vmem:[#allocation4 + $0x68] sm:$0xff] %vm774, %v1315
        %1334 = vst.msk [vmem:[#allocation4 + $0x70] sm:$0xff] %vm774, %v1317
        %1335 = vst.msk [vmem:[#allocation4 + $0x78] sm:$0xff] %vm774, %v1319
        %v1336 = vld [vmem:[#allocation2 + $0x2] sm:$0xff]
        %v1337 = vld [vmem:[#allocation2 + $0x12] sm:$0xff]
        %v1338 = vld [vmem:[#allocation2 + $0x22] sm:$0xff]
        %v1339 = vld [vmem:[#allocation2 + $0x32] sm:$0xff]
        %v1340 = vld [vmem:[#allocation2 + $0x42] sm:$0xff]
        %v1341 = vld [vmem:[#allocation2 + $0x52] sm:$0xff]
        %v1342 = vld [vmem:[#allocation2 + $0x62] sm:$0xff]
        %v1343 = vld [vmem:[#allocation2 + $0x72] sm:$0xff]
        %v1344 = vld [vmem:[#allocation2 + $0x82] sm:$0xff]
        %v1345 = vld [vmem:[#allocation2 + $0x92] sm:$0xff]
        %v1346 = vld [vmem:[#allocation2 + $0xa2] sm:$0xff]
        %v1347 = vld [vmem:[#allocation2 + $0xb2] sm:$0xff]
        %v1348 = vld [vmem:[#allocation2 + $0xc2] sm:$0xff]
        %v1349 = vld [vmem:[#allocation2 + $0xd2] sm:$0xff]
        %v1350 = vld [vmem:[#allocation2 + $0xe2] sm:$0xff]
        %v1351 = vld [vmem:[#allocation2 + $0xf2] sm:$0xff]
        %v1352 = vpack.c.bf16 %v1337, %v1336
        %v1353 = vpack.c.bf16 %v1339, %v1338
        %v1354 = vpack.c.bf16 %v1341, %v1340
        %v1355 = vpack.c.bf16 %v1343, %v1342
        %v1356 = vpack.c.bf16 %v1345, %v1344
        %v1357 = vpack.c.bf16 %v1347, %v1346
        %v1358 = vpack.c.bf16 %v1349, %v1348
        %v1359 = vpack.c.bf16 %v1351, %v1350
        %1368 = vrot.lane.b32.xlu0 %v1352, 16
        %v1369 = vpop.permute.xlu0 %1368
        %1370 = vrot.lane.b32.xlu0 %v1353, 16
        %v1371 = vpop.permute.xlu0 %1370
        %1372 = vrot.lane.b32.xlu0 %v1354, 16
        %v1373 = vpop.permute.xlu0 %1372
        %1374 = vrot.lane.b32.xlu0 %v1355, 16
        %v1375 = vpop.permute.xlu0 %1374
        %1376 = vrot.lane.b32.xlu0 %v1356, 16
        %v1377 = vpop.permute.xlu0 %1376
        %1378 = vrot.lane.b32.xlu0 %v1357, 16
        %v1379 = vpop.permute.xlu0 %1378
        %1380 = vrot.lane.b32.xlu0 %v1358, 16
        %v1381 = vpop.permute.xlu0 %1380
        %1382 = vrot.lane.b32.xlu0 %v1359, 16
        %v1383 = vpop.permute.xlu0 %1382
        %1392 = vst.msk [vmem:[#allocation4 + $0x40] sm:$0xff] %vm839, %v1369
        %1393 = vst.msk [vmem:[#allocation4 + $0x48] sm:$0xff] %vm839, %v1371
        %1394 = vst.msk [vmem:[#allocation4 + $0x50] sm:$0xff] %vm839, %v1373
        %1395 = vst.msk [vmem:[#allocation4 + $0x58] sm:$0xff] %vm839, %v1375
        %1396 = vst.msk [vmem:[#allocation4 + $0x60] sm:$0xff] %vm839, %v1377
        %1397 = vst.msk [vmem:[#allocation4 + $0x68] sm:$0xff] %vm839, %v1379
        %1398 = vst.msk [vmem:[#allocation4 + $0x70] sm:$0xff] %vm839, %v1381
        %1399 = vst.msk [vmem:[#allocation4 + $0x78] sm:$0xff] %vm839, %v1383
        %v1400 = vld [vmem:[%s551 + $0x1] sm:$0xff]
        %v1401 = vld [vmem:[%s551 + $0x11] sm:$0xff]
        %v1402 = vld [vmem:[%s551 + $0x21] sm:$0xff]
        %v1403 = vld [vmem:[%s551 + $0x31] sm:$0xff]
        %v1404 = vld [vmem:[%s551 + $0x41] sm:$0xff]
        %v1405 = vld [vmem:[%s551 + $0x51] sm:$0xff]
        %v1406 = vld [vmem:[%s551 + $0x61] sm:$0xff]
        %v1407 = vld [vmem:[%s551 + $0x71] sm:$0xff]
        %v1408 = vld [vmem:[%s551 + $0x81] sm:$0xff]
        %v1409 = vld [vmem:[%s551 + $0x91] sm:$0xff]
        %v1410 = vld [vmem:[%s551 + $0xa1] sm:$0xff]
        %v1411 = vld [vmem:[%s551 + $0xb1] sm:$0xff]
        %v1412 = vld [vmem:[%s551 + $0xc1] sm:$0xff]
        %v1413 = vld [vmem:[%s551 + $0xd1] sm:$0xff]
        %v1414 = vld [vmem:[%s551 + $0xe1] sm:$0xff]
        %v1415 = vld [vmem:[%s551 + $0xf1] sm:$0xff]
        %v1416 = vpack.c.bf16 %v1401, %v1400
        %v1417 = vpack.c.bf16 %v1403, %v1402
        %v1418 = vpack.c.bf16 %v1405, %v1404
        %v1419 = vpack.c.bf16 %v1407, %v1406
        %v1420 = vpack.c.bf16 %v1409, %v1408
        %v1421 = vpack.c.bf16 %v1411, %v1410
        %v1422 = vpack.c.bf16 %v1413, %v1412
        %v1423 = vpack.c.bf16 %v1415, %v1414
        %1432 = vrot.lane.b32.xlu0 %v1416, 24
        %v1433 = vpop.permute.xlu0 %1432
        %1434 = vrot.lane.b32.xlu0 %v1417, 24
        %v1435 = vpop.permute.xlu0 %1434
        %1436 = vrot.lane.b32.xlu0 %v1418, 24
        %v1437 = vpop.permute.xlu0 %1436
        %1438 = vrot.lane.b32.xlu0 %v1419, 24
        %v1439 = vpop.permute.xlu0 %1438
        %1440 = vrot.lane.b32.xlu0 %v1420, 24
        %v1441 = vpop.permute.xlu0 %1440
        %1442 = vrot.lane.b32.xlu0 %v1421, 24
        %v1443 = vpop.permute.xlu0 %1442
        %1444 = vrot.lane.b32.xlu0 %v1422, 24
        %v1445 = vpop.permute.xlu0 %1444
        %1446 = vrot.lane.b32.xlu0 %v1423, 24
        %v1447 = vpop.permute.xlu0 %1446
        %1456 = vst.msk [vmem:[#allocation4 + $0x40] sm:$0xff] %vm904, %v1433
        %1457 = vst.msk [vmem:[#allocation4 + $0x48] sm:$0xff] %vm904, %v1435
        %1458 = vst.msk [vmem:[#allocation4 + $0x50] sm:$0xff] %vm904, %v1437
        %1459 = vst.msk [vmem:[#allocation4 + $0x58] sm:$0xff] %vm904, %v1439
        %1460 = vst.msk [vmem:[#allocation4 + $0x60] sm:$0xff] %vm904, %v1441
        %1461 = vst.msk [vmem:[#allocation4 + $0x68] sm:$0xff] %vm904, %v1443
        %1462 = vst.msk [vmem:[#allocation4 + $0x70] sm:$0xff] %vm904, %v1445
        %1463 = vst.msk [vmem:[#allocation4 + $0x78] sm:$0xff] %vm904, %v1447
        %v1464 = vld [vmem:[%s658 + $0x1] sm:$0xff]
        %v1465 = vld [vmem:[%s658 + $0x11] sm:$0xff]
        %v1466 = vld [vmem:[%s658 + $0x21] sm:$0xff]
        %v1467 = vld [vmem:[%s658 + $0x31] sm:$0xff]
        %v1468 = vld [vmem:[%s658 + $0x41] sm:$0xff]
        %v1469 = vld [vmem:[%s658 + $0x51] sm:$0xff]
        %v1470 = vld [vmem:[%s658 + $0x61] sm:$0xff]
        %v1471 = vld [vmem:[%s658 + $0x71] sm:$0xff]
        %v1472 = vld [vmem:[%s658 + $0x81] sm:$0xff]
        %v1473 = vld [vmem:[%s658 + $0x91] sm:$0xff]
        %v1474 = vld [vmem:[%s658 + $0xa1] sm:$0xff]
        %v1475 = vld [vmem:[%s658 + $0xb1] sm:$0xff]
        %v1476 = vld [vmem:[%s658 + $0xc1] sm:$0xff]
        %v1477 = vld [vmem:[%s658 + $0xd1] sm:$0xff]
        %v1478 = vld [vmem:[%s658 + $0xe1] sm:$0xff]
        %v1479 = vld [vmem:[%s658 + $0xf1] sm:$0xff]
        %v1480 = vpack.c.bf16 %v1465, %v1464
        %v1481 = vpack.c.bf16 %v1467, %v1466
        %v1482 = vpack.c.bf16 %v1469, %v1468
        %v1483 = vpack.c.bf16 %v1471, %v1470
        %v1484 = vpack.c.bf16 %v1473, %v1472
        %v1485 = vpack.c.bf16 %v1475, %v1474
        %v1486 = vpack.c.bf16 %v1477, %v1476
        %v1487 = vpack.c.bf16 %v1479, %v1478
        %1496 = vrot.lane.b32.xlu0 %v1480, 32
        %v1497 = vpop.permute.xlu0 %1496
        %1498 = vrot.lane.b32.xlu0 %v1481, 32
        %v1499 = vpop.permute.xlu0 %1498
        %1500 = vrot.lane.b32.xlu0 %v1482, 32
        %v1501 = vpop.permute.xlu0 %1500
        %1502 = vrot.lane.b32.xlu0 %v1483, 32
        %v1503 = vpop.permute.xlu0 %1502
        %1504 = vrot.lane.b32.xlu0 %v1484, 32
        %v1505 = vpop.permute.xlu0 %1504
        %1506 = vrot.lane.b32.xlu0 %v1485, 32
        %v1507 = vpop.permute.xlu0 %1506
        %1508 = vrot.lane.b32.xlu0 %v1486, 32
        %v1509 = vpop.permute.xlu0 %1508
        %1510 = vrot.lane.b32.xlu0 %v1487, 32
        %v1511 = vpop.permute.xlu0 %1510
        %1520 = vst.msk [vmem:[#allocation4 + $0x40] sm:$0xff] %vm969, %v1497
        %1521 = vst.msk [vmem:[#allocation4 + $0x48] sm:$0xff] %vm969, %v1499
        %1522 = vst.msk [vmem:[#allocation4 + $0x50] sm:$0xff] %vm969, %v1501
        %1523 = vst.msk [vmem:[#allocation4 + $0x58] sm:$0xff] %vm969, %v1503
        %1524 = vst.msk [vmem:[#allocation4 + $0x60] sm:$0xff] %vm969, %v1505
        %1525 = vst.msk [vmem:[#allocation4 + $0x68] sm:$0xff] %vm969, %v1507
        %1526 = vst.msk [vmem:[#allocation4 + $0x70] sm:$0xff] %vm969, %v1509
        %1527 = vst.msk [vmem:[#allocation4 + $0x78] sm:$0xff] %vm969, %v1511
        %v1528 = vld [vmem:[%s551 + $0x2] sm:$0xff]
        %v1529 = vld [vmem:[%s551 + $0x12] sm:$0xff]
        %v1530 = vld [vmem:[%s551 + $0x22] sm:$0xff]
        %v1531 = vld [vmem:[%s551 + $0x32] sm:$0xff]
        %v1532 = vld [vmem:[%s551 + $0x42] sm:$0xff]
        %v1533 = vld [vmem:[%s551 + $0x52] sm:$0xff]
        %v1534 = vld [vmem:[%s551 + $0x62] sm:$0xff]
        %v1535 = vld [vmem:[%s551 + $0x72] sm:$0xff]
        %v1536 = vld [vmem:[%s551 + $0x82] sm:$0xff]
        %v1537 = vld [vmem:[%s551 + $0x92] sm:$0xff]
        %v1538 = vld [vmem:[%s551 + $0xa2] sm:$0xff]
        %v1539 = vld [vmem:[%s551 + $0xb2] sm:$0xff]
        %v1540 = vld [vmem:[%s551 + $0xc2] sm:$0xff]
        %v1541 = vld [vmem:[%s551 + $0xd2] sm:$0xff]
        %v1542 = vld [vmem:[%s551 + $0xe2] sm:$0xff]
        %v1543 = vld [vmem:[%s551 + $0xf2] sm:$0xff]
        %v1544 = vpack.c.bf16 %v1529, %v1528
        %v1545 = vpack.c.bf16 %v1531, %v1530
        %v1546 = vpack.c.bf16 %v1533, %v1532
        %v1547 = vpack.c.bf16 %v1535, %v1534
        %v1548 = vpack.c.bf16 %v1537, %v1536
        %v1549 = vpack.c.bf16 %v1539, %v1538
        %v1550 = vpack.c.bf16 %v1541, %v1540
        %v1551 = vpack.c.bf16 %v1543, %v1542
        %1560 = vrot.lane.b32.xlu0 %v1544, 40
        %v1561 = vpop.permute.xlu0 %1560
        %1562 = vrot.lane.b32.xlu0 %v1545, 40
        %v1563 = vpop.permute.xlu0 %1562
        %1564 = vrot.lane.b32.xlu0 %v1546, 40
        %v1565 = vpop.permute.xlu0 %1564
        %1566 = vrot.lane.b32.xlu0 %v1547, 40
        %v1567 = vpop.permute.xlu0 %1566
        %1568 = vrot.lane.b32.xlu0 %v1548, 40
        %v1569 = vpop.permute.xlu0 %1568
        %1570 = vrot.lane.b32.xlu0 %v1549, 40
        %v1571 = vpop.permute.xlu0 %1570
        %1572 = vrot.lane.b32.xlu0 %v1550, 40
        %v1573 = vpop.permute.xlu0 %1572
        %1574 = vrot.lane.b32.xlu0 %v1551, 40
        %v1575 = vpop.permute.xlu0 %1574
        %1584 = vst.msk [vmem:[#allocation4 + $0x40] sm:$0xff] %vm1034, %v1561
        %1585 = vst.msk [vmem:[#allocation4 + $0x48] sm:$0xff] %vm1034, %v1563
        %1586 = vst.msk [vmem:[#allocation4 + $0x50] sm:$0xff] %vm1034, %v1565
        %1587 = vst.msk [vmem:[#allocation4 + $0x58] sm:$0xff] %vm1034, %v1567
        %1588 = vst.msk [vmem:[#allocation4 + $0x60] sm:$0xff] %vm1034, %v1569
        %1589 = vst.msk [vmem:[#allocation4 + $0x68] sm:$0xff] %vm1034, %v1571
        %1590 = vst.msk [vmem:[#allocation4 + $0x70] sm:$0xff] %vm1034, %v1573
        %1591 = vst.msk [vmem:[#allocation4 + $0x78] sm:$0xff] %vm1034, %v1575
        %v1592 = vld [vmem:[%s1109 + $0x1] sm:$0xff]
        %v1593 = vld [vmem:[%s1109 + $0x11] sm:$0xff]
        %v1594 = vld [vmem:[%s1109 + $0x21] sm:$0xff]
        %v1595 = vld [vmem:[%s1109 + $0x31] sm:$0xff]
        %v1596 = vld [vmem:[%s1109 + $0x41] sm:$0xff]
        %v1597 = vld [vmem:[%s1109 + $0x51] sm:$0xff]
        %v1598 = vld [vmem:[%s1109 + $0x61] sm:$0xff]
        %v1599 = vld [vmem:[%s1109 + $0x71] sm:$0xff]
        %v1600 = vld [vmem:[%s1109 + $0x81] sm:$0xff]
        %v1601 = vld [vmem:[%s1109 + $0x91] sm:$0xff]
        %v1602 = vld [vmem:[%s1109 + $0xa1] sm:$0xff]
        %v1603 = vld [vmem:[%s1109 + $0xb1] sm:$0xff]
        %v1604 = vld [vmem:[%s1109 + $0xc1] sm:$0xff]
        %v1605 = vld [vmem:[%s1109 + $0xd1] sm:$0xff]
        %v1606 = vld [vmem:[%s1109 + $0xe1] sm:$0xff]
        %v1607 = vld [vmem:[%s1109 + $0xf1] sm:$0xff]
        %v1608 = vpack.c.bf16 %v1593, %v1592
        %v1609 = vpack.c.bf16 %v1595, %v1594
        %v1610 = vpack.c.bf16 %v1597, %v1596
        %v1611 = vpack.c.bf16 %v1599, %v1598
        %v1612 = vpack.c.bf16 %v1601, %v1600
        %v1613 = vpack.c.bf16 %v1603, %v1602
        %v1614 = vpack.c.bf16 %v1605, %v1604
        %v1615 = vpack.c.bf16 %v1607, %v1606
        %1624 = vrot.lane.b32.xlu0 %v1608, 48
        %v1625 = vpop.permute.xlu0 %1624
        %1626 = vrot.lane.b32.xlu0 %v1609, 48
        %v1627 = vpop.permute.xlu0 %1626
        %1628 = vrot.lane.b32.xlu0 %v1610, 48
        %v1629 = vpop.permute.xlu0 %1628
        %1630 = vrot.lane.b32.xlu0 %v1611, 48
        %v1631 = vpop.permute.xlu0 %1630
        %1632 = vrot.lane.b32.xlu0 %v1612, 48
        %v1633 = vpop.permute.xlu0 %1632
        %1634 = vrot.lane.b32.xlu0 %v1613, 48
        %v1635 = vpop.permute.xlu0 %1634
        %1636 = vrot.lane.b32.xlu0 %v1614, 48
        %v1637 = vpop.permute.xlu0 %1636
        %1638 = vrot.lane.b32.xlu0 %v1615, 48
        %v1639 = vpop.permute.xlu0 %1638
        %1648 = vst.msk [vmem:[#allocation4 + $0x40] sm:$0xff] %vm1100, %v1625
        %1649 = vst.msk [vmem:[#allocation4 + $0x48] sm:$0xff] %vm1100, %v1627
        %1650 = vst.msk [vmem:[#allocation4 + $0x50] sm:$0xff] %vm1100, %v1629
        %1651 = vst.msk [vmem:[#allocation4 + $0x58] sm:$0xff] %vm1100, %v1631
        %1652 = vst.msk [vmem:[#allocation4 + $0x60] sm:$0xff] %vm1100, %v1633
        %1653 = vst.msk [vmem:[#allocation4 + $0x68] sm:$0xff] %vm1100, %v1635
        %1654 = vst.msk [vmem:[#allocation4 + $0x70] sm:$0xff] %vm1100, %v1637
        %1655 = vst.msk [vmem:[#allocation4 + $0x78] sm:$0xff] %vm1100, %v1639
        %v1656 = vld [vmem:[%s1043 + $0x1] sm:$0xff]
        %v1657 = vld [vmem:[%s1043 + $0x11] sm:$0xff]
        %v1658 = vld [vmem:[%s1043 + $0x21] sm:$0xff]
        %v1659 = vld [vmem:[%s1043 + $0x31] sm:$0xff]
        %v1660 = vld [vmem:[%s1043 + $0x41] sm:$0xff]
        %v1661 = vld [vmem:[%s1043 + $0x51] sm:$0xff]
        %v1662 = vld [vmem:[%s1043 + $0x61] sm:$0xff]
        %v1663 = vld [vmem:[%s1043 + $0x71] sm:$0xff]
        %v1664 = vld [vmem:[%s1043 + $0x81] sm:$0xff]
        %v1665 = vld [vmem:[%s1043 + $0x91] sm:$0xff]
        %v1666 = vld [vmem:[%s1043 + $0xa1] sm:$0xff]
        %v1667 = vld [vmem:[%s1043 + $0xb1] sm:$0xff]
        %v1668 = vld [vmem:[%s1043 + $0xc1] sm:$0xff]
        %v1669 = vld [vmem:[%s1043 + $0xd1] sm:$0xff]
        %v1670 = vld [vmem:[%s1043 + $0xe1] sm:$0xff]
        %v1671 = vld [vmem:[%s1043 + $0xf1] sm:$0xff]
        %v1672 = vpack.c.bf16 %v1657, %v1656
        %v1673 = vpack.c.bf16 %v1659, %v1658
        %v1674 = vpack.c.bf16 %v1661, %v1660
        %v1675 = vpack.c.bf16 %v1663, %v1662
        %v1676 = vpack.c.bf16 %v1665, %v1664
        %v1677 = vpack.c.bf16 %v1667, %v1666
        %v1678 = vpack.c.bf16 %v1669, %v1668
        %v1679 = vpack.c.bf16 %v1671, %v1670
        %1688 = vrot.lane.b32.xlu0 %v1672, 56
        %v1689 = vpop.permute.xlu0 %1688
        %1690 = vrot.lane.b32.xlu0 %v1673, 56
        %v1691 = vpop.permute.xlu0 %1690
        %1692 = vrot.lane.b32.xlu0 %v1674, 56
        %v1693 = vpop.permute.xlu0 %1692
        %1694 = vrot.lane.b32.xlu0 %v1675, 56
        %v1695 = vpop.permute.xlu0 %1694
        %1696 = vrot.lane.b32.xlu0 %v1676, 56
        %v1697 = vpop.permute.xlu0 %1696
        %1698 = vrot.lane.b32.xlu0 %v1677, 56
        %v1699 = vpop.permute.xlu0 %1698
        %1700 = vrot.lane.b32.xlu0 %v1678, 56
        %v1701 = vpop.permute.xlu0 %1700
        %1702 = vrot.lane.b32.xlu0 %v1679, 56
        %v1703 = vpop.permute.xlu0 %1702
        %1712 = vst.msk [vmem:[#allocation4 + $0x40] sm:$0xff] %vm1166, %v1689
        %1713 = vst.msk [vmem:[#allocation4 + $0x48] sm:$0xff] %vm1166, %v1691
        %1714 = vst.msk [vmem:[#allocation4 + $0x50] sm:$0xff] %vm1166, %v1693
        %1715 = vst.msk [vmem:[#allocation4 + $0x58] sm:$0xff] %vm1166, %v1695
        %1716 = vst.msk [vmem:[#allocation4 + $0x60] sm:$0xff] %vm1166, %v1697
        %1717 = vst.msk [vmem:[#allocation4 + $0x68] sm:$0xff] %vm1166, %v1699
        %1718 = vst.msk [vmem:[#allocation4 + $0x70] sm:$0xff] %vm1166, %v1701
        %1719 = vst.msk [vmem:[#allocation4 + $0x78] sm:$0xff] %vm1166, %v1703
        %v1720 = vld [vmem:[%s1109 + $0x2] sm:$0xff]
        %v1721 = vld [vmem:[%s1109 + $0x12] sm:$0xff]
        %v1722 = vld [vmem:[%s1109 + $0x22] sm:$0xff]
        %v1723 = vld [vmem:[%s1109 + $0x32] sm:$0xff]
        %v1724 = vld [vmem:[%s1109 + $0x42] sm:$0xff]
        %v1725 = vld [vmem:[%s1109 + $0x52] sm:$0xff]
        %v1726 = vld [vmem:[%s1109 + $0x62] sm:$0xff]
        %v1727 = vld [vmem:[%s1109 + $0x72] sm:$0xff]
        %v1728 = vld [vmem:[%s1109 + $0x82] sm:$0xff]
        %v1729 = vld [vmem:[%s1109 + $0x92] sm:$0xff]
        %v1730 = vld [vmem:[%s1109 + $0xa2] sm:$0xff]
        %v1731 = vld [vmem:[%s1109 + $0xb2] sm:$0xff]
        %v1732 = vld [vmem:[%s1109 + $0xc2] sm:$0xff]
        %v1733 = vld [vmem:[%s1109 + $0xd2] sm:$0xff]
        %v1734 = vld [vmem:[%s1109 + $0xe2] sm:$0xff]
        %v1735 = vld [vmem:[%s1109 + $0xf2] sm:$0xff]
        %v1736 = vpack.c.bf16 %v1721, %v1720
        %v1737 = vpack.c.bf16 %v1723, %v1722
        %v1738 = vpack.c.bf16 %v1725, %v1724
        %v1739 = vpack.c.bf16 %v1727, %v1726
        %v1740 = vpack.c.bf16 %v1729, %v1728
        %v1741 = vpack.c.bf16 %v1731, %v1730
        %v1742 = vpack.c.bf16 %v1733, %v1732
        %v1743 = vpack.c.bf16 %v1735, %v1734
        %1752 = vrot.lane.b32.xlu0 %v1736, 64
        %v1753 = vpop.permute.xlu0 %1752
        %1754 = vrot.lane.b32.xlu0 %v1737, 64
        %v1755 = vpop.permute.xlu0 %1754
        %1756 = vrot.lane.b32.xlu0 %v1738, 64
        %v1757 = vpop.permute.xlu0 %1756
        %1758 = vrot.lane.b32.xlu0 %v1739, 64
        %v1759 = vpop.permute.xlu0 %1758
        %1760 = vrot.lane.b32.xlu0 %v1740, 64
        %v1761 = vpop.permute.xlu0 %1760
        %1762 = vrot.lane.b32.xlu0 %v1741, 64
        %v1763 = vpop.permute.xlu0 %1762
        %1764 = vrot.lane.b32.xlu0 %v1742, 64
        %v1765 = vpop.permute.xlu0 %1764
        %1766 = vrot.lane.b32.xlu0 %v1743, 64
        %v1767 = vpop.permute.xlu0 %1766
        %1776 = vst.msk [vmem:[#allocation4 + $0x40] sm:$0xff] %vm1231, %v1753
        %1777 = vst.msk [vmem:[#allocation4 + $0x48] sm:$0xff] %vm1231, %v1755
        %1778 = vst.msk [vmem:[#allocation4 + $0x50] sm:$0xff] %vm1231, %v1757
        %1779 = vst.msk [vmem:[#allocation4 + $0x58] sm:$0xff] %vm1231, %v1759
        %1780 = vst.msk [vmem:[#allocation4 + $0x60] sm:$0xff] %vm1231, %v1761
        %1781 = vst.msk [vmem:[#allocation4 + $0x68] sm:$0xff] %vm1231, %v1763
        %1782 = vst.msk [vmem:[#allocation4 + $0x70] sm:$0xff] %vm1231, %v1765
        %1783 = vst.msk [vmem:[#allocation4 + $0x78] sm:$0xff] %vm1231, %v1767
        %v1784 = vld [vmem:[%s4] sm:$0xf]
        %v1785 = vld [vmem:[#allocation4] sm:$0xff]
        %v1786 = vld [vmem:[#allocation4 + $0x8] sm:$0xff]
        %v1787 = vld [vmem:[#allocation4 + $0x10] sm:$0xff]
        %v1788 = vld [vmem:[#allocation4 + $0x18] sm:$0xff]
        %v1789 = vld [vmem:[#allocation4 + $0x20] sm:$0xff]
        %v1790 = vld [vmem:[#allocation4 + $0x28] sm:$0xff]
        %v1791 = vld [vmem:[#allocation4 + $0x30] sm:$0xff]
        %v1792 = vld [vmem:[#allocation4 + $0x38] sm:$0xff]
        %v1793 = vld [vmem:[#allocation4 + $0x40] sm:$0xff]
        %v1794 = vld [vmem:[#allocation4 + $0x48] sm:$0xff]
        %v1795 = vld [vmem:[#allocation4 + $0x50] sm:$0xff]
        %v1796 = vld [vmem:[#allocation4 + $0x58] sm:$0xff]
        %v1797 = vld [vmem:[#allocation4 + $0x60] sm:$0xff]
        %v1798 = vld [vmem:[#allocation4 + $0x68] sm:$0xff]
        %v1799 = vld [vmem:[#allocation4 + $0x70] sm:$0xff]
        %v1800 = vld [vmem:[#allocation4 + $0x78] sm:$0xff]
        %vm1801 = vcmask 588800
        %v1803 = vsel %vm1801, %v1784, 0
        %v1806 = vsel %vm1801, %v1785, 0
        %v1809 = vsel %vm1801, %v1786, 0
        %v1812 = vsel %vm1801, %v1787, 0
        %v1815 = vsel %vm1801, %v1788, 0
        %v1818 = vsel %vm1801, %v1789, 0
        %v1821 = vsel %vm1801, %v1790, 0
        %v1824 = vsel %vm1801, %v1791, 0
        %v1827 = vsel %vm1801, %v1792, 0
        %v1830 = vsel %vm1801, %v1793, 0
        %v1833 = vsel %vm1801, %v1794, 0
        %v1836 = vsel %vm1801, %v1795, 0
        %v1839 = vsel %vm1801, %v1796, 0
        %v1842 = vsel %vm1801, %v1797, 0
        %v1845 = vsel %vm1801, %v1798, 0
        %v1848 = vsel %vm1801, %v1799, 0
        %v1851 = vsel %vm1801, %v1800, 0
        %1853 = vmatprep.subr.bf16.mxu0 0
        %1854 = vmatpush1.bf16.xpose.msra.mxu0 %v1806
        %1855 = vmatprep.subr.bf16.mxu0 0
        %1856 = vmatpush1.bf16.xpose.msra.mxu0 %v1809
        %1857 = vmatprep.subr.bf16.mxu0 0
        %1858 = vmatpush1.bf16.xpose.msra.mxu0 %v1812
        %1859 = vmatprep.subr.bf16.mxu0 0
        %1860 = vmatpush1.bf16.xpose.msra.mxu0 %v1815
        %1861 = vmatprep.subr.bf16.mxu0 0
        %1862 = vmatpush1.bf16.xpose.msra.mxu0 %v1818
        %1863 = vmatprep.subr.bf16.mxu0 0
        %1864 = vmatpush1.bf16.xpose.msra.mxu0 %v1821
        %1865 = vmatprep.subr.bf16.mxu0 0
        %1866 = vmatpush1.bf16.xpose.msra.mxu0 %v1824
        %1867 = vmatprep.subr.bf16.mxu0 0
        %1868 = vmatpush1.bf16.xpose.msra.mxu0 %v1827
        %1869 = vmatprep.subr.bf16.mxu0 0
        %1870 = vmatpush1.bf16.xpose.msra.mxu0 %v1830
        %1871 = vmatprep.subr.bf16.mxu0 0
        %1872 = vmatpush1.bf16.xpose.msra.mxu0 %v1833
        %1873 = vmatprep.subr.bf16.mxu0 0
        %1874 = vmatpush1.bf16.xpose.msra.mxu0 %v1836
        %1875 = vmatprep.subr.bf16.mxu0 0
        %1876 = vmatpush1.bf16.xpose.msra.mxu0 %v1839
        %1877 = vmatprep.subr.bf16.mxu0 0
        %1878 = vmatpush1.bf16.xpose.msra.mxu0 %v1842
        %1879 = vmatprep.subr.bf16.mxu0 0
        %1880 = vmatpush1.bf16.xpose.msra.mxu0 %v1845
        %1881 = vmatprep.subr.bf16.mxu0 0
        %1882 = vmatpush1.bf16.xpose.msra.mxu0 %v1848
        %1883 = vmatprep.subr.bf16.mxu0 0
        %1884 = vmatpush1.bf16.xpose.msra.mxu0 %v1851
        %1885 = vmatprep.mubr.bf16.mxu0 0
        %1886 = vmatmul.mubr.bf16.gmra.mrb[0].mxu0 %v1803
        %v1887 = vpop.f32.mrb[0].mxu0
        %v1888 = vadd.f32 0.0, %v1887
        %v1889 = vpop.f32.mrb[0].mxu0
        %v1890 = vadd.f32 0.0, %v1889
        %v1891 = vpop.f32.mrb[0].mxu0
        %v1892 = vpop.f32.mrb[0].mxu0
        %1893 = vdwg.mxu0
        %v1894 = vld [vmem:[%s5] sm:$0xff]
        %1896 = vset.pattern.permute.xlu0 0
        %1897 = vperm.xlu0 %1896, %v1894
        %v1898 = vpop.permute.xlu0 %1897
        %v1900 = vmul.f32 %v1888, %v1898
        %v1901 = vmul.f32 %v1890, %v1898
        %v1902 = vld [vmem:[%s6] sm:$0xff]
        %1904 = vset.pattern.permute.xlu0 0
        %1905 = vperm.xlu0 %1904, %v1902
        %v1906 = vpop.permute.xlu0 %1905
        %v1908 = vadd.f32 %v1900, %v1906
        %v1909 = vadd.f32 %v1901, %v1906
        %v1910 = vmax.f32 %v1908, 0.0
        %v1911 = vmax.f32 %v1909, 0.0
        %1912 = vst [vmem:[#allocation3 + $0x8] sm:$0xff] %v1910
        %1913 = vst [vmem:[%s681 + $0x8] sm:$0xff] %v1911
        %v1914 = vld [vmem:[%s437] sm:$0xff]
        %1915 = vst [vmem:[#allocation3 + $0x20] sm:$0xff] %v1914
        %s1916 = scalar_lea.vmem %s437, 8
        %v1917 = vld [vmem:[%s1916] sm:$0xff]
        %1918 = vst [vmem:[%s681 + $0x20] sm:$0xff] %v1917
        %v1919 = vld [vmem:[%s681] sm:$0xff]
        %v1920 = vld [vmem:[%s681 + $0x8] sm:$0xff]
        %v1921 = vld [vmem:[%s681 + $0x18] sm:$0xff]
        %v1922 = vld [vmem:[%s681 + $0x20] sm:$0xff]
        %v1923 = vlaneseq
        %v1924 = vshrl.u32 %v1923, 7
        %v1925 = vsub.s32 0, %v1924
        %v1926 = vrot.slane %v439, %v1925
        %1928 = vrot.lane.b32.xlu0 %v1926, 119
        %v1929 = vpop.permute.xlu0 %1928
        %v1931 = vmul.f32 %v1919, %v1929
        %v1932 = vmul.f32 %v1920, %v1929
        %v1933 = vmul.f32 %v1921, %v1929
        %v1934 = vmul.f32 %v1922, %v1929
        %v1935 = vpack.c.bf16 %v1933, %v1931
        %v1936 = vpack.c.bf16 %v1934, %v1932
        %1939 = vrot.lane.b32.xlu0 %v1935, 9
        %v1940 = vpop.permute.xlu0 %1939
        %1941 = vrot.lane.b32.xlu0 %v1936, 9
        %v1942 = vpop.permute.xlu0 %1941
        %vm1943 = vcmask 72704
        %v1944 = vsel %vm1943, %v1940, %v1942
        %1946 = vst [vmem:[#allocation5] sm:$0xff] %v1944
        %v1947 = vld [vmem:[#allocation3] sm:$0xff]
        %v1948 = vld [vmem:[#allocation3 + $0x8] sm:$0xff]
        %v1949 = vld [vmem:[#allocation3 + $0x18] sm:$0xff]
        %v1950 = vld [vmem:[#allocation3 + $0x20] sm:$0xff]
        %v1951 = vpack.c.bf16 %v1949, %v1947
        %v1952 = vpack.c.bf16 %v1950, %v1948
        %1955 = vrot.lane.b32.xlu0 %v1951, 8
        %v1956 = vpop.permute.xlu0 %1955
        %1957 = vrot.lane.b32.xlu0 %v1952, 8
        %v1958 = vpop.permute.xlu0 %1957
        %vm1959 = vcmask 64512
        %v1960 = vsel %vm1959, %v1956, %v1958
        %1962 = vst [vmem:[#allocation5 + $0x10] sm:$0xff] %v1960
        %v1963 = vld [vmem:[%s681] sm:$0xff]
        %v1964 = vld [vmem:[%s681 + $0x8] sm:$0xff]
        %v1965 = vld [vmem:[%s681 + $0x18] sm:$0xff]
        %v1966 = vld [vmem:[%s681 + $0x20] sm:$0xff]
        %v1967 = vpack.c.bf16 %v1965, %v1963
        %v1968 = vpack.c.bf16 %v1966, %v1964
        %1971 = vrot.lane.b32.xlu0 %v1967, 8
        %v1972 = vpop.permute.xlu0 %1971
        %1973 = vrot.lane.b32.xlu0 %v1968, 8
        %v1974 = vpop.permute.xlu0 %1973
        %v1975 = vsel %vm1959, %v1972, %v1974
        %1977 = vst [vmem:[#allocation5 + $0x20] sm:$0xff] %v1975
        %v1978 = vld [vmem:[%s681] sm:$0xff]
        %v1979 = vld [vmem:[%s681 + $0x8] sm:$0xff]
        %v1980 = vld [vmem:[%s681 + $0x18] sm:$0xff]
        %v1981 = vld [vmem:[%s681 + $0x20] sm:$0xff]
        %1982 = vrot.lane.b32.xlu0 %v1926, 127
        %v1983 = vpop.permute.xlu0 %1982
        %v1985 = vmul.f32 %v1978, %v1983
        %v1986 = vmul.f32 %v1979, %v1983
        %v1987 = vmul.f32 %v1980, %v1983
        %v1988 = vmul.f32 %v1981, %v1983
        %v1989 = vpack.c.bf16 %v1987, %v1985
        %v1990 = vpack.c.bf16 %v1988, %v1986
        %1993 = vrot.lane.b32.xlu0 %v1989, 1
        %v1994 = vpop.permute.xlu0 %1993
        %1995 = vrot.lane.b32.xlu0 %v1990, 1
        %v1996 = vpop.permute.xlu0 %1995
        %vm1997 = vcmask 7168
        %v1998 = vsel %vm1997, %v1994, %v1996
        %2000 = vst [vmem:[#allocation5 + $0x30] sm:$0xff] %v1998
        %v2001 = vld [vmem:[#allocation3 + $0x8] sm:$0xff]
        %v2002 = vld [vmem:[#allocation3 + $0x20] sm:$0xff]
        %v2003 = vpack.c.bf16 %v2002, %v2001
        %2004 = vst [vmem:[#allocation5 + $0x40] sm:$0xff] %v2003
        %v2005 = vld [vmem:[%s681 + $0x8] sm:$0xff]
        %v2006 = vld [vmem:[%s681 + $0x20] sm:$0xff]
        %v2007 = vpack.c.bf16 %v2006, %v2005
        %2008 = vst [vmem:[#allocation5 + $0x50] sm:$0xff] %v2007
        %v2009 = vld [vmem:[%s681 + $0x8] sm:$0xff]
        %v2010 = vld [vmem:[%s681 + $0x10] sm:$0xff]
        %v2011 = vld [vmem:[%s681 + $0x20] sm:$0xff]
        %v2012 = vld [vmem:[%s681 + $0x28] sm:$0xff]
        %2013 = vrot.lane.b32.xlu0 %v1926, 7
        %v2014 = vpop.permute.xlu0 %2013
        %v2016 = vmul.f32 %v2009, %v2014
        %v2017 = vmul.f32 %v2010, %v2014
        %v2018 = vmul.f32 %v2011, %v2014
        %v2019 = vmul.f32 %v2012, %v2014
        %v2020 = vpack.c.bf16 %v2018, %v2016
        %v2021 = vpack.c.bf16 %v2019, %v2017
        %2024 = vrot.lane.b32.xlu0 %v2020, 121
        %v2025 = vpop.permute.xlu0 %2024
        %2026 = vrot.lane.b32.xlu0 %v2021, 121
        %v2027 = vpop.permute.xlu0 %2026
        %vm2028 = vcmask 990208
        %v2029 = vsel %vm2028, %v2025, %v2027
        %2031 = vst [vmem:[#allocation5 + $0x60] sm:$0xff] %v2029
        %v2032 = vld [vmem:[#allocation3 + $0x8] sm:$0xff]
        %v2033 = vld [vmem:[#allocation3 + $0x10] sm:$0xff]
        %v2034 = vld [vmem:[#allocation3 + $0x20] sm:$0xff]
        %v2035 = vld [vmem:[#allocation3 + $0x28] sm:$0xff]
        %v2036 = vpack.c.bf16 %v2034, %v2032
        %v2037 = vpack.c.bf16 %v2035, %v2033
        %2040 = vrot.lane.b32.xlu0 %v2036, 120
        %v2041 = vpop.permute.xlu0 %2040
        %2042 = vrot.lane.b32.xlu0 %v2037, 120
        %v2043 = vpop.permute.xlu0 %2042
        %vm2044 = vcmask 982016
        %v2045 = vsel %vm2044, %v2041, %v2043
        %2047 = vst [vmem:[#allocation5 + $0x70] sm:$0xff] %v2045
        %v2048 = vld [vmem:[%s681 + $0x8] sm:$0xff]
        %v2049 = vld [vmem:[%s681 + $0x10] sm:$0xff]
        %v2050 = vld [vmem:[%s681 + $0x20] sm:$0xff]
        %v2051 = vld [vmem:[%s681 + $0x28] sm:$0xff]
        %v2052 = vpack.c.bf16 %v2050, %v2048
        %v2053 = vpack.c.bf16 %v2051, %v2049
        %2056 = vrot.lane.b32.xlu0 %v2052, 120
        %v2057 = vpop.permute.xlu0 %2056
        %2058 = vrot.lane.b32.xlu0 %v2053, 120
        %v2059 = vpop.permute.xlu0 %2058
        %v2060 = vsel %vm2044, %v2057, %v2059
        %2062 = vst [vmem:[#allocation5 + $0x80] sm:$0xff] %v2060
        %v2063 = vld [vmem:[#allocation3] sm:$0xff]
        %v2064 = vld [vmem:[#allocation3 + $0x8] sm:$0xff]
        %v2065 = vld [vmem:[#allocation3 + $0x18] sm:$0xff]
        %v2066 = vld [vmem:[#allocation3 + $0x20] sm:$0xff]
        %v2067 = vpack.c.bf16 %v2065, %v2063
        %v2068 = vpack.c.bf16 %v2066, %v2064
        %2071 = vrot.lane.b32.xlu0 %v2067, 8
        %v2072 = vpop.permute.xlu0 %2071
        %2073 = vrot.lane.b32.xlu0 %v2068, 8
        %v2074 = vpop.permute.xlu0 %2073
        %v2075 = vsel %vm1959, %v2072, %v2074
        %2077 = vst [vmem:[#allocation5 + $0x8] sm:$0xff] %v2075
        %v2078 = vld [vmem:[%s681] sm:$0xff]
        %v2079 = vld [vmem:[%s681 + $0x8] sm:$0xff]
        %v2080 = vld [vmem:[%s681 + $0x18] sm:$0xff]
        %v2081 = vld [vmem:[%s681 + $0x20] sm:$0xff]
        %v2082 = vpack.c.bf16 %v2080, %v2078
        %v2083 = vpack.c.bf16 %v2081, %v2079
        %2086 = vrot.lane.b32.xlu0 %v2082, 8
        %v2087 = vpop.permute.xlu0 %2086
        %2088 = vrot.lane.b32.xlu0 %v2083, 8
        %v2089 = vpop.permute.xlu0 %2088
        %v2090 = vsel %vm1959, %v2087, %v2089
        %2092 = vst [vmem:[#allocation5 + $0x18] sm:$0xff] %v2090
        %v2093 = vld [vmem:[#allocation3] sm:$0xff]
        %v2094 = vld [vmem:[#allocation3 + $0x8] sm:$0xff]
        %v2095 = vld [vmem:[#allocation3 + $0x18] sm:$0xff]
        %v2096 = vld [vmem:[#allocation3 + $0x20] sm:$0xff]
        %v2097 = vlaneseq
        %v2098 = vshrl.u32 %v2097, 7
        %v2099 = vsub.s32 0, %v2098
        %v2100 = vrot.slane %v440, %v2099
        %2102 = vrot.lane.b32.xlu0 %v2100, 121
        %v2103 = vpop.permute.xlu0 %2102
        %v2105 = vmul.f32 %v2093, %v2103
        %v2106 = vmul.f32 %v2094, %v2103
        %v2107 = vmul.f32 %v2095, %v2103
        %v2108 = vmul.f32 %v2096, %v2103
        %v2109 = vpack.c.bf16 %v2107, %v2105
        %v2110 = vpack.c.bf16 %v2108, %v2106
        %2113 = vrot.lane.b32.xlu0 %v2109, 7
        %v2114 = vpop.permute.xlu0 %2113
        %2115 = vrot.lane.b32.xlu0 %v2110, 7
        %v2116 = vpop.permute.xlu0 %2115
        %vm2117 = vcmask 56320
        %v2118 = vsel %vm2117, %v2114, %v2116
        %2120 = vst [vmem:[#allocation5 + $0x28] sm:$0xff] %v2118
        %v2121 = vld [vmem:[#allocation3 + $0x8] sm:$0xff]
        %v2122 = vld [vmem:[#allocation3 + $0x20] sm:$0xff]
        %v2123 = vpack.c.bf16 %v2122, %v2121
        %2124 = vst [vmem:[#allocation5 + $0x38] sm:$0xff] %v2123
        %v2125 = vld [vmem:[%s681 + $0x8] sm:$0xff]
        %v2126 = vld [vmem:[%s681 + $0x20] sm:$0xff]
        %v2127 = vpack.c.bf16 %v2126, %v2125
        %2128 = vst [vmem:[#allocation5 + $0x48] sm:$0xff] %v2127
        %v2129 = vld [vmem:[#allocation3 + $0x8] sm:$0xff]
        %v2130 = vld [vmem:[#allocation3 + $0x10] sm:$0xff]
        %v2131 = vld [vmem:[#allocation3 + $0x20] sm:$0xff]
        %v2132 = vld [vmem:[#allocation3 + $0x28] sm:$0xff]
        %2133 = vrot.lane.b32.xlu0 %v2100, 1
        %v2134 = vpop.permute.xlu0 %2133
        %v2136 = vmul.f32 %v2129, %v2134
        %v2137 = vmul.f32 %v2130, %v2134
        %v2138 = vmul.f32 %v2131, %v2134
        %v2139 = vmul.f32 %v2132, %v2134
        %v2140 = vpack.c.bf16 %v2138, %v2136
        %v2141 = vpack.c.bf16 %v2139, %v2137
        %2144 = vrot.lane.b32.xlu0 %v2140, 127
        %v2145 = vpop.permute.xlu0 %2144
        %2146 = vrot.lane.b32.xlu0 %v2141, 127
        %v2147 = vpop.permute.xlu0 %2146
        %vm2148 = vcmask 1039360
        %v2149 = vsel %vm2148, %v2145, %v2147
        %2151 = vst [vmem:[#allocation5 + $0x58] sm:$0xff] %v2149
        %v2152 = vld [vmem:[#allocation3 + $0x8] sm:$0xff]
        %v2153 = vld [vmem:[#allocation3 + $0x10] sm:$0xff]
        %v2154 = vld [vmem:[#allocation3 + $0x20] sm:$0xff]
        %v2155 = vld [vmem:[#allocation3 + $0x28] sm:$0xff]
        %v2156 = vpack.c.bf16 %v2154, %v2152
        %v2157 = vpack.c.bf16 %v2155, %v2153
        %2160 = vrot.lane.b32.xlu0 %v2156, 120
        %v2161 = vpop.permute.xlu0 %2160
        %2162 = vrot.lane.b32.xlu0 %v2157, 120
        %v2163 = vpop.permute.xlu0 %2162
        %v2164 = vsel %vm2044, %v2161, %v2163
        %2166 = vst [vmem:[#allocation5 + $0x68] sm:$0xff] %v2164
        %v2167 = vld [vmem:[%s681 + $0x8] sm:$0xff]
        %v2168 = vld [vmem:[%s681 + $0x10] sm:$0xff]
        %v2169 = vld [vmem:[%s681 + $0x20] sm:$0xff]
        %v2170 = vld [vmem:[%s681 + $0x28] sm:$0xff]
        %v2171 = vpack.c.bf16 %v2169, %v2167
        %v2172 = vpack.c.bf16 %v2170, %v2168
        %2175 = vrot.lane.b32.xlu0 %v2171, 120
        %v2176 = vpop.permute.xlu0 %2175
        %2177 = vrot.lane.b32.xlu0 %v2172, 120
        %v2178 = vpop.permute.xlu0 %2177
        %v2179 = vsel %vm2044, %v2176, %v2178
        %2181 = vst [vmem:[#allocation5 + $0x78] sm:$0xff] %v2179
        %v2182 = vld [vmem:[#allocation3 + $0x8] sm:$0xff]
        %v2183 = vld [vmem:[#allocation3 + $0x10] sm:$0xff]
        %v2184 = vld [vmem:[#allocation3 + $0x20] sm:$0xff]
        %v2185 = vld [vmem:[#allocation3 + $0x28] sm:$0xff]
        %2186 = vrot.lane.b32.xlu0 %v2100, 9
        %v2187 = vpop.permute.xlu0 %2186
        %v2189 = vmul.f32 %v2182, %v2187
        %v2190 = vmul.f32 %v2183, %v2187
        %v2191 = vmul.f32 %v2184, %v2187
        %v2192 = vmul.f32 %v2185, %v2187
        %v2193 = vpack.c.bf16 %v2191, %v2189
        %v2194 = vpack.c.bf16 %v2192, %v2190
        %2197 = vrot.lane.b32.xlu0 %v2193, 119
        %v2198 = vpop.permute.xlu0 %2197
        %2199 = vrot.lane.b32.xlu0 %v2194, 119
        %v2200 = vpop.permute.xlu0 %2199
        %vm2201 = vcmask 973824
        %v2202 = vsel %vm2201, %v2198, %v2200
        %2204 = vst [vmem:[#allocation5 + $0x88] sm:$0xff] %v2202
        %v2205 = vld [vmem:[%s7] sm:$0xff]
        %v2206 = vld [vmem:[#allocation5] sm:$0xff]
        %v2207 = vld [vmem:[#allocation5 + $0x8] sm:$0xff]
        %v2208 = vld [vmem:[#allocation5 + $0x10] sm:$0xff]
        %v2209 = vld [vmem:[#allocation5 + $0x18] sm:$0xff]
        %v2210 = vld [vmem:[#allocation5 + $0x20] sm:$0xff]
        %v2211 = vld [vmem:[#allocation5 + $0x28] sm:$0xff]
        %v2212 = vld [vmem:[#allocation5 + $0x30] sm:$0xff]
        %v2213 = vld [vmem:[#allocation5 + $0x38] sm:$0xff]
        %v2214 = vld [vmem:[#allocation5 + $0x40] sm:$0xff]
        %v2215 = vld [vmem:[#allocation5 + $0x48] sm:$0xff]
        %v2216 = vld [vmem:[#allocation5 + $0x50] sm:$0xff]
        %v2217 = vld [vmem:[#allocation5 + $0x58] sm:$0xff]
        %v2218 = vld [vmem:[#allocation5 + $0x60] sm:$0xff]
        %v2219 = vld [vmem:[#allocation5 + $0x68] sm:$0xff]
        %v2220 = vld [vmem:[#allocation5 + $0x70] sm:$0xff]
        %v2221 = vld [vmem:[#allocation5 + $0x78] sm:$0xff]
        %v2222 = vld [vmem:[#allocation5 + $0x80] sm:$0xff]
        %v2223 = vld [vmem:[#allocation5 + $0x88] sm:$0xff]
        %v2225 = vunpack.c.l.b16 %v2205
        %v2226 = vunpack.c.h.b16 %v2205
        %v2227 = vpack.c.b16 %v2225, %v2225
        %v2228 = vpack.c.b16 %v2226, %v2226
        %vm2230 = vcmask 130048
        %v2232 = vsel %vm2230, %v2228, 0
        %2234 = vmatprep.subr.bf16.mxu0 %v2207
        %2235 = vmatpush1.bf16.msra.mxu0 %v2206
        %2236 = vmatprep.subr.bf16.mxu0 %v2209
        %2237 = vmatpush1.bf16.msra.mxu0 %v2208
        %2238 = vmatprep.subr.bf16.mxu0 %v2211
        %2239 = vmatpush1.bf16.msra.mxu0 %v2210
        %2240 = vmatprep.subr.bf16.mxu0 %v2213
        %2241 = vmatpush1.bf16.msra.mxu0 %v2212
        %2242 = vmatprep.subr.bf16.mxu0 %v2215
        %2243 = vmatpush1.bf16.msra.mxu0 %v2214
        %2244 = vmatprep.subr.bf16.mxu0 %v2217
        %2245 = vmatpush1.bf16.msra.mxu0 %v2216
        %2246 = vmatprep.subr.bf16.mxu0 %v2219
        %2247 = vmatpush1.bf16.msra.mxu0 %v2218
        %2248 = vmatprep.subr.bf16.mxu0 %v2221
        %2249 = vmatpush1.bf16.msra.mxu0 %v2220
        %2250 = vmatprep.subr.bf16.mxu0 %v2223
        %2251 = vmatpush1.bf16.msra.mxu0 %v2222
        %2252 = vmatprep.subr.bf16.mxu0 0
        %2253 = vmatpush1.bf16.msra.mxu0 0
        %2254 = vmatprep.subr.bf16.mxu0 0
        %2255 = vmatpush1.bf16.msra.mxu0 0
        %2256 = vmatprep.subr.bf16.mxu0 0
        %2257 = vmatpush1.bf16.msra.mxu0 0
        %2258 = vmatprep.subr.bf16.mxu0 0
        %2259 = vmatpush1.bf16.msra.mxu0 0
        %2260 = vmatprep.subr.bf16.mxu0 0
        %2261 = vmatpush1.bf16.msra.mxu0 0
        %2262 = vmatprep.subr.bf16.mxu0 0
        %2263 = vmatpush1.bf16.msra.mxu0 0
        %2264 = vmatprep.subr.bf16.mxu0 0
        %2265 = vmatpush1.bf16.msra.mxu0 0
        %2266 = vmatprep.mubr.bf16.mxu0 %v2232
        %2267 = vmatmul.mubr.bf16.gmra.mrb[0].mxu0 %v2227
        %v2268 = vpop.f32.mrb[0].mxu0
        %v2269 = vadd.f32 0.0, %v2268
        %v2270 = vpop.f32.mrb[0].mxu0
        %v2271 = vadd.f32 0.0, %v2270
        %v2272 = vpop.f32.mrb[0].mxu0
        %v2273 = vpop.f32.mrb[0].mxu0
        %2274 = vdwg.mxu0
        %v2275 = vld [vmem:[%s8] sm:$0xff]
        %2277 = vset.pattern.permute.xlu0 0
        %2278 = vperm.xlu0 %2277, %v2275
        %v2279 = vpop.permute.xlu0 %2278
        %v2281 = vmul.f32 %v2269, %v2279
        %v2282 = vmul.f32 %v2271, %v2279
        %v2283 = vld [vmem:[%s9] sm:$0xff]
        %2285 = vset.pattern.permute.xlu0 0
        %2286 = vperm.xlu0 %2285, %v2283
        %v2287 = vpop.permute.xlu0 %2286
        %v2289 = vadd.f32 %v2281, %v2287
        %v2290 = vadd.f32 %v2282, %v2287
        %v2291 = vmax.f32 %v2289, 0.0
        %v2292 = vmax.f32 %v2290, 0.0
        %2293 = vst [vmem:[%s432] sm:$0xff] %v2291
        %s2294 = scalar_lea.vmem %s432, 8 [#allocation11]
        %2295 = vst [vmem:[%s2294] sm:$0xff] %v2292
        %s2296 = sand.u32 %s263, 1
        %s2297 = scalar_lea.sflag [#allocation8], %s2296
        %s2298 = sand.u32 %s263, 1
        %s2299 = smul.addr %s2298, 16
        %s2300 = scalar_lea.vmem [#allocation11], %s2299
        // Predicated region
        $region69: #{tpu_custom_call.1} parent=59 // pred_check
          %p2301 = pneg %p273
        $region70: #{tpu_custom_call.1} parent=59 // pred_check_branch
          %2303 = sbr.rel (%p2301) target = $region72
        $region71: #{tpu_custom_call.1} parent=59 // pred_region
          %s2305 = ssub.s32 256, 256
          %2306 = vsyncadd %s2297, %s2305
          %s2307 = smul.addr %s30, 2
          %s2308 = smul.addr %s2307, 128
          %s2309 = scalar_lea.hbm %s10, %s2308
          %s2310 = sshll.u32 %s2300, 4
          %s2311 = int_to_ptr.vmem [resolvable:$true] %s2310
          %2316 = dma.vmem_to_hbm [thread:$0]  %s2311, 256, %s2309, %s2297, 128, 128, 8
        $region72: #{tpu_custom_call.1} parent=59 // pred_fallthru
          _
      $region60: #{tpu_custom_call.1} parent=5 // pred_fallthru
        _
      %p2317 = scmp.le.s32.totalorder 2, %s25
      // Predicated region
      $region73: #{tpu_custom_call.1} parent=5 // pred_check
        %p2318 = pneg %p2317
      $region74: #{tpu_custom_call.1} parent=5 // pred_check_branch
        %2320 = sbr.rel (%p2318) target = $region76
      $region75: #{tpu_custom_call.1} parent=5 // pred_region
        %s2321 = ssub.s32 %s25, 2
        // Predicated region
        $region77: #{tpu_custom_call.1} parent=75 // pred_check
          %p2322 = pneg %p279
        $region78: #{tpu_custom_call.1} parent=75 // pred_check_branch
          %2324 = sbr.rel (%p2322) target = $region80
        $region79: #{tpu_custom_call.1} parent=75 // pred_region
          %s2325 = sand.u32 %s264, 1
          %s2326 = scalar_lea.sflag [#allocation8], %s2325
          %s2327 = sand.u32 %s264, 1
          %s2328 = smul.addr %s2327, 16
          %s2329 = scalar_lea.vmem [#allocation11], %s2328
          %2330 = dma.done %s2326, 256
        $region80: #{tpu_custom_call.1} parent=75 // pred_fallthru
          _
      $region76: #{tpu_custom_call.1} parent=5 // pred_fallthru
        _
    $region6: #{tpu_custom_call.1} parent=1 // loop_footer
      %s29 = sadd.s32 1, %s25
    $region7: #{tpu_custom_call.1} parent=1 // loop_footer_branch
      %24 = sbr.rel target = $region3
    $region8: #{tpu_custom_call.1} parent=1 // loop_exit
      _
    %2331 = vsyncpa [#allocation7], 1
    %s2332 = scalar_lea.sflag [#allocation7], 1
    %2333 = vsyncpa %s2332, 1
    %2334 = vsyncpa [#allocation10], 1
    %s2335 = scalar_lea.sflag [#allocation10], 1
    %2336 = vsyncpa %s2335, 1
    %2337 = vsyncpa [#allocation8], 1
    %s2338 = scalar_lea.sflag [#allocation8], 1
    %2339 = vsyncpa %s2338, 1

</llo_original>
